<compile_context>
chip_gen: v7x
topology: tpu7x:2x2x1
jax: 0.10.0
libtpu: 0.0.40
codegen_flags: <defaults>
</compile_context>

<pallas_src>
import math
from functools import partial

import jax
import jax.numpy as jnp
from jax import lax
from jax.experimental import pallas as pl
from jax.experimental.pallas import tpu as pltpu


# ----------------------------------------------------------------------------
# Tiling helper
# ----------------------------------------------------------------------------

def _pick_tile(dim, target, align):
    """Largest tile <= target that divides `dim`.

    Preference: full dim (if <= target), then `align`-aligned divisors descending
    from target, then any divisor.  Never silently returns a non-dividing
    full-extent block for a large dim (old behaviour that could blow the scoped
    VMEM limit)."""
    if dim <= target:
        return dim
    top = (target // align) * align
    for cand in range(top, 0, -align):
        if dim % cand == 0:
            return cand
    for cand in range(min(target, dim), 0, -1):
        if dim % cand == 0:
            return cand
    return dim


# ----------------------------------------------------------------------------
# Tiled linear kernel:  out = act(x @ W + b)
# ----------------------------------------------------------------------------

def _linear_kernel(x_ref, w_ref, b_ref, o_ref, acc_ref, *, activation):
    k = pl.program_id(2)

    @pl.when(k == 0)
    def _():
        acc_ref[...] = jnp.zeros_like(acc_ref)

    acc_ref[...] += jnp.dot(x_ref[...], w_ref[...],
                            preferred_element_type=jnp.float32)

    @pl.when(k == pl.num_programs(2) - 1)
    def _():
        out = acc_ref[...] + b_ref[...].astype(jnp.float32)
        if activation == "relu":
            out = jnp.maximum(out, 0.0)
        o_ref[...] = out.astype(o_ref.dtype)


def pallas_linear(x2d, w_t, b, *, activation=None, tm=512, tn=512, tk=512):
    """x2d: (R, Din); w_t: (Din, Dout) pre-transposed; b: (Dout,). -> (R, Dout).

    MXU operands stay in the input dtype (bf16 inputs => bf16 MXU), accumulation
    in f32.  Tiles of 512 keep HBM streaming near the roofline while staying well
    under the 32 MiB scoped-VMEM default (and v7x's 64 MiB physical VMEM)."""
    R, Din = x2d.shape
    Dout = w_t.shape[1]
    if Dout <= 1024:
        tn = Dout  # avoid re-streaming the x tile; full-row output blocks
    tm = _pick_tile(R, tm, 8)
    tn = _pick_tile(Dout, tn, 128)
    tk = _pick_tile(Din, tk, 128)
    grid = (R // tm, Dout // tn, Din // tk)
    kern = partial(_linear_kernel, activation=activation)
    return pl.pallas_call(
        kern,
        out_shape=jax.ShapeDtypeStruct((R, Dout), x2d.dtype),
        grid_spec=pltpu.PrefetchScalarGridSpec(
            num_scalar_prefetch=0,
            grid=grid,
            in_specs=[
                pl.BlockSpec((tm, tk), lambda i, j, k: (i, k)),
                pl.BlockSpec((tk, tn), lambda i, j, k: (k, j)),
                pl.BlockSpec((1, tn), lambda i, j, k: (0, j)),
            ],
            out_specs=pl.BlockSpec((tm, tn), lambda i, j, k: (i, j)),
            scratch_shapes=[pltpu.VMEM((tm, tn), jnp.float32)],
        ),
        compiler_params=pltpu.CompilerParams(
            dimension_semantics=("parallel", "parallel", "arbitrary")),
    )(x2d, w_t, b.reshape(1, Dout))


# ----------------------------------------------------------------------------
# Tiled linear with fused residual-add + LayerNorm epilogue:
#   out = LayerNorm(residual + x @ W + b) * gamma + beta
# N (= Dout) is untiled so the full row is available at the last k step.
# ----------------------------------------------------------------------------

def _linear_residual_ln_kernel(x_ref, w_ref, b_ref, res_ref, g_ref, beta_ref,
                               o_ref, acc_ref, *, eps):
    k = pl.program_id(1)

    @pl.when(k == 0)
    def _():
        acc_ref[...] = jnp.zeros_like(acc_ref)

    acc_ref[...] += jnp.dot(x_ref[...], w_ref[...],
                            preferred_element_type=jnp.float32)

    @pl.when(k == pl.num_programs(1) - 1)
    def _():
        z = (acc_ref[...] + b_ref[...].astype(jnp.float32)
             + res_ref[...].astype(jnp.float32))
        mean = jnp.mean(z, axis=-1, keepdims=True)
        zc = z - mean
        var = jnp.mean(zc * zc, axis=-1, keepdims=True)
        inv = lax.rsqrt(var + eps)
        o_ref[...] = (zc * inv * g_ref[...].astype(jnp.float32)
                      + beta_ref[...].astype(jnp.float32)).astype(o_ref.dtype)


def pallas_linear_residual_layernorm(x2d, w_t, b, residual, gamma, beta, *,
                                     eps=1e-5, tm=256, tk=512):
    R, Din = x2d.shape
    Dout = w_t.shape[1]
    tm = _pick_tile(R, tm, 8)
    tk = _pick_tile(Din, tk, 128)
    grid = (R // tm, Din // tk)
    kern = partial(_linear_residual_ln_kernel, eps=eps)
    return pl.pallas_call(
        kern,
        out_shape=jax.ShapeDtypeStruct((R, Dout), x2d.dtype),
        grid_spec=pltpu.PrefetchScalarGridSpec(
            num_scalar_prefetch=0,
            grid=grid,
            in_specs=[
                pl.BlockSpec((tm, tk), lambda i, k: (i, k)),
                pl.BlockSpec((tk, Dout), lambda i, k: (k, 0)),
                pl.BlockSpec((1, Dout), lambda i, k: (0, 0)),
                pl.BlockSpec((tm, Dout), lambda i, k: (i, 0)),
                pl.BlockSpec((1, Dout), lambda i, k: (0, 0)),
                pl.BlockSpec((1, Dout), lambda i, k: (0, 0)),
            ],
            out_specs=pl.BlockSpec((tm, Dout), lambda i, k: (i, 0)),
            scratch_shapes=[pltpu.VMEM((tm, Dout), jnp.float32)],
        ),
        compiler_params=pltpu.CompilerParams(
            dimension_semantics=("parallel", "arbitrary")),
    )(x2d, w_t, b.reshape(1, Dout), residual,
      gamma.reshape(1, Dout), beta.reshape(1, Dout))


# ----------------------------------------------------------------------------
# Flash-tiled multi-head self-attention
#   q, k, v: (B, S, E) with head-major column layout [head0 | head1 | ...].
#   grid = (B, S//tq, S//tk); online softmax carried across the kv axis.
# ----------------------------------------------------------------------------

def _flash_mha_kernel(q_ref, k_ref, v_ref, o_ref, m_ref, l_ref, acc_ref, *,
                      num_heads, head_dim, scale):
    kv = pl.program_id(2)

    @pl.when(kv == 0)
    def _():
        m_ref[...] = jnp.full(m_ref.shape, -jnp.inf, dtype=jnp.float32)
        l_ref[...] = jnp.zeros(l_ref.shape, dtype=jnp.float32)
        acc_ref[...] = jnp.zeros(acc_ref.shape, dtype=jnp.float32)

    q_all = q_ref[0]   # (tq, E)
    k_all = k_ref[0]   # (tk, E)
    v_all = v_ref[0]   # (tk, E)

    # TODO(synk): replace the unrolled head loop with a grid axis once head_dim is a
    #             multiple of 128 (lane-dense per-head blocks).
    for h in range(num_heads):
        lo = h * head_dim
        hi = lo + head_dim
        q = q_all[:, lo:hi] * scale          # fold scale into the small operand
        k = k_all[:, lo:hi]
        v = v_all[:, lo:hi]
        # QK^T: contract the last dims (no transpose); f32 accumulation on the MXU.
        s = lax.dot_general(q, k, (((1,), (1,)), ((), ())),
                            preferred_element_type=jnp.float32)   # (tq, tk)
        # TODO(synk): attention mask (masked_fill -> -9e15) not implemented;
        #             module default is mask=None.
        m_prev = m_ref[h]                     # (tq, 1)
        l_prev = l_ref[h]
        m_new = jnp.maximum(m_prev, jnp.max(s, axis=-1, keepdims=True))
        alpha = jnp.exp(m_prev - m_new)
        p = jnp.exp(s - m_new)
        l_ref[h] = alpha * l_prev + jnp.sum(p, axis=-1, keepdims=True)
        acc_ref[:, lo:hi] = (alpha * acc_ref[:, lo:hi]
                             + jnp.dot(p.astype(v.dtype), v,
                                       preferred_element_type=jnp.float32))
        m_ref[h] = m_new

    @pl.when(kv == pl.num_programs(2) - 1)
    def _():
        # Exact per-head normalization on the VMEM scratch, then one lane-dense store.
        for h in range(num_heads):
            lo = h * head_dim
            hi = lo + head_dim
            acc_ref[:, lo:hi] = acc_ref[:, lo:hi] / l_ref[h]
        o_ref[0] = acc_ref[...].astype(o_ref.dtype)


def pallas_attention(q, k, v, num_heads, *, tq=256, tk=256):
    """q, k, v: (B, S, E), head-major column layout -> (B, S, E)."""
    B, S, E = q.shape
    head_dim = E // num_heads
    scale = 1.0 / math.sqrt(head_dim)
    tq = _pick_tile(S, tq, 128)
    tk = _pick_tile(S, tk, 128)
    grid = (B, S // tq, S // tk)
    kern = partial(_flash_mha_kernel, num_heads=num_heads,
                   head_dim=head_dim, scale=scale)
    return pl.pallas_call(
        kern,
        out_shape=jax.ShapeDtypeStruct((B, S, E), q.dtype),
        grid_spec=pltpu.PrefetchScalarGridSpec(
            num_scalar_prefetch=0,
            grid=grid,
            in_specs=[
                pl.BlockSpec((1, tq, E), lambda b, qi, ki: (b, qi, 0)),
                pl.BlockSpec((1, tk, E), lambda b, qi, ki: (b, ki, 0)),
                pl.BlockSpec((1, tk, E), lambda b, qi, ki: (b, ki, 0)),
            ],
            out_specs=pl.BlockSpec((1, tq, E), lambda b, qi, ki: (b, qi, 0)),
            scratch_shapes=[
                pltpu.VMEM((num_heads, tq, 1), jnp.float32),   # running max
                pltpu.VMEM((num_heads, tq, 1), jnp.float32),   # running sum
                pltpu.VMEM((tq, E), jnp.float32),              # output accumulator
            ],
        ),
        compiler_params=pltpu.CompilerParams(
            dimension_semantics=("parallel", "parallel", "arbitrary")),
    )(q, k, v)


# ----------------------------------------------------------------------------
# Encoder block / TransformerEncoder forward
# ----------------------------------------------------------------------------

def encoder_block_forward(p, x, num_heads):
    B, S, D = x.shape
    x2d = x.reshape(B * S, D)

    # --- multi-head self-attention ---
    q = pallas_linear(x2d, p["q_w_t"], p["q_b"])     # (B*S, E)
    k = pallas_linear(x2d, p["k_w_t"], p["k_b"])
    v = pallas_linear(x2d, p["v_w_t"], p["v_b"])
    E = q.shape[1]
    attn = pallas_attention(q.reshape(B, S, E), k.reshape(B, S, E),
                            v.reshape(B, S, E), num_heads)           # (B, S, E)
    # o-projection with fused residual-add + LayerNorm epilogue.
    # TODO(synk): dropout layers are identity at the module default p=0.0 (inference).
    x2d = pallas_linear_residual_layernorm(
        attn.reshape(B * S, E), p["o_w_t"], p["o_b"], x2d,
        p["ln1_g"], p["ln1_b"])

    # --- feed-forward network (ReLU fused into the first matmul epilogue) ---
    h = pallas_linear(x2d, p["ff1_w_t"], p["ff1_b"], activation="relu")
    x2d = pallas_linear_residual_layernorm(
        h, p["ff2_w_t"], p["ff2_b"], x2d, p["ln2_g"], p["ln2_b"])

    return x2d.reshape(B, S, D)


def transformer_encoder_forward(layer_params, x, num_heads):
    for p in layer_params:
        x = encoder_block_forward(p, x, num_heads)
    return x


# ----------------------------------------------------------------------------
# Parameters (weights pre-transposed to (Din, Dout); QKV split head-major)
# ----------------------------------------------------------------------------

def qkv_torch_to_kernel_layout(qkv_w_t, qkv_b, num_heads):
    """Convert the PyTorch qkv_proj layout (out-features interleaved per head as
    [q_h | k_h | v_h]) into three head-major (Din, E) matrices + biases.
    qkv_w_t is qkv_proj.weight.T, shape (Din, 3E); qkv_b is (3E,).
    Real PyTorch checkpoints must go through this same permutation."""
    d_in, e3 = qkv_w_t.shape
    e = e3 // 3
    head_dim = e // num_heads
    w = qkv_w_t.reshape(d_in, num_heads, 3, head_dim)
    b = qkv_b.reshape(num_heads, 3, head_dim)
    q_w = w[:, :, 0, :].reshape(d_in, e)
    k_w = w[:, :, 1, :].reshape(d_in, e)
    v_w = w[:, :, 2, :].reshape(d_in, e)
    return (q_w, k_w, v_w,
            b[:, 0, :].reshape(e), b[:, 1, :].reshape(e), b[:, 2, :].reshape(e))


def xavier_uniform_t(key, fan_in, fan_out, dtype=jnp.float32):
    bound = math.sqrt(6.0 / (fan_in + fan_out))
    return jax.random.uniform(key, (fan_in, fan_out), dtype,
                              minval=-bound, maxval=bound)


def init_layer_params(key, d_model, num_heads, d_ff):
    k1, k2, k3, k4 = jax.random.split(key, 4)
    # Initialise qkv_proj exactly like the torch module (xavier over the full
    # (3E, D) matrix), then permute once into the kernel's head-major layout.
    qkv_w_t = xavier_uniform_t(k1, d_model, 3 * d_model)
    qkv_b = jnp.zeros((3 * d_model,), jnp.float32)
    q_w, k_w, v_w, q_b, k_b, v_b = qkv_torch_to_kernel_layout(qkv_w_t, qkv_b,
                                                              num_heads)
    return {
        "q_w_t": q_w, "q_b": q_b,
        "k_w_t": k_w, "k_b": k_b,
        "v_w_t": v_w, "v_b": v_b,
        "o_w_t": xavier_uniform_t(k2, d_model, d_model),
        "o_b": jnp.zeros((d_model,), jnp.float32),
        "ff1_w_t": xavier_uniform_t(k3, d_model, d_ff),
        "ff1_b": jnp.zeros((d_ff,), jnp.float32),
        "ff2_w_t": xavier_uniform_t(k4, d_ff, d_model),
        "ff2_b": jnp.zeros((d_model,), jnp.float32),
        "ln1_g": jnp.ones((d_model,), jnp.float32),
        "ln1_b": jnp.zeros((d_model,), jnp.float32),
        "ln2_g": jnp.ones((d_model,), jnp.float32),
        "ln2_b": jnp.zeros((d_model,), jnp.float32),
    }


def init_encoder_params(key, num_layers, d_model, num_heads, d_ff):
    keys = jax.random.split(key, num_layers)
    return [init_layer_params(k, d_model, num_heads, d_ff) for k in keys]


# ----------------------------------------------------------------------------
# Pure-jnp reference (mirrors the PyTorch module, mask=None, dropout=0.0)
# ----------------------------------------------------------------------------

def _layernorm_ref(z, g, b, eps=1e-5):
    mean = jnp.mean(z, axis=-1, keepdims=True)
    var = jnp.mean((z - mean) ** 2, axis=-1, keepdims=True)
    return (z - mean) / jnp.sqrt(var + eps) * g + b


def reference_block_forward(p, x, num_heads):
    B, S, D = x.shape
    head_dim = D // num_heads

    def heads(t):  # (B, S, E) -> (B, H, S, Dh)
        return t.reshape(B, S, num_heads, head_dim).transpose(0, 2, 1, 3)

    q = heads(x @ p["q_w_t"] + p["q_b"])
    k = heads(x @ p["k_w_t"] + p["k_b"])
    v = heads(x @ p["v_w_t"] + p["v_b"])
    logits = jnp.einsum("bhqd,bhkd->bhqk", q, k) / math.sqrt(head_dim)
    attn = jax.nn.softmax(logits, axis=-1)
    vals = jnp.einsum("bhqk,bhkd->bhqd", attn, v)
    vals = vals.transpose(0, 2, 1, 3).reshape(B, S, D)
    o = vals @ p["o_w_t"] + p["o_b"]
    x = _layernorm_ref(x + o, p["ln1_g"], p["ln1_b"])
    h = jnp.maximum(x @ p["ff1_w_t"] + p["ff1_b"], 0.0)
    ff = h @ p["ff2_w_t"] + p["ff2_b"]
    x = _layernorm_ref(x + ff, p["ln2_g"], p["ln2_b"])
    return x


def reference_encoder_forward(layer_params, x, num_heads):
    for p in layer_params:
        x = reference_block_forward(p, x, num_heads)
    return x


# ----------------------------------------------------------------------------
# Demo / sanity check
# ----------------------------------------------------------------------------

if __name__ == "__main__":
    B, S = 2, 8
    input_dim, num_heads, dim_feedforward = 32, 4, 64
    num_layers = 2

    key = jax.random.PRNGKey(0)
    kx, kp = jax.random.split(key)
    x = jax.random.normal(kx, (B, S, input_dim), dtype=jnp.float32)
    params = init_encoder_params(kp, num_layers, input_dim, num_heads,
                                 dim_feedforward)

    fwd = jax.jit(transformer_encoder_forward, static_argnums=2)

    # f32 path: exact comparison against the pure-jnp reference.
    out = jax.block_until_ready(fwd(params, x, num_heads))
    ref = reference_encoder_forward(params, x, num_heads)
    assert out.shape == (B, S, input_dim)
    assert jnp.allclose(out, ref, atol=1e-4, rtol=1e-4), "f32 mismatch vs reference"

    # bf16 path: MXU operands in bf16 (f32 accumulation, f32 softmax/LN math).
    params_bf16 = jax.tree_util.tree_map(lambda a: a.astype(jnp.bfloat16), params)
    out_bf16 = jax.block_until_ready(fwd(params_bf16, x.astype(jnp.bfloat16),
                                         num_heads))
    assert out_bf16.shape == (B, S, input_dim)
    assert out_bf16.dtype == jnp.bfloat16
    assert float(jnp.max(jnp.abs(out_bf16.astype(jnp.float32) - ref))) < 0.5

    print("KERNEL_OK")
</pallas_src>

<mosaic_0001>
module attributes {stable_mosaic.version = 11 : i64} {
  func.func @_linear_kernel(%arg0: i32, %arg1: i32, %arg2: i32, %arg3: memref<16x32xf32, #tpu.memory_space<vmem>>, %arg4: memref<32x32xf32, #tpu.memory_space<vmem>>, %arg5: memref<1x32xf32, #tpu.memory_space<vmem>>, %arg6: memref<16x32xf32, #tpu.memory_space<vmem>>, %arg7: memref<16x32xf32, #tpu.memory_space<vmem>>) attributes {dimension_semantics = [#tpu.dimension_semantics<parallel>, #tpu.dimension_semantics<parallel>, #tpu.dimension_semantics<arbitrary>], iteration_bounds = array<i64: 1, 1, 1>, scalar_prefetch = 0 : i64, scratch_operands = 1 : i64, tpu.core_type = #tpu.core_type<tc>, window_params = [{transform_indices = @transform_0, window_bounds = array<i64: 16, 32>}, {transform_indices = @transform_1, window_bounds = array<i64: 32, 32>}, {transform_indices = @transform_2, window_bounds = array<i64: 1, 32>}, {transform_indices = @transform_3, window_bounds = array<i64: 16, 32>}]} {
    %c0_i32 = arith.constant 0 : i32
    %0 = arith.cmpi eq, %arg2, %c0_i32 : i32
    %1 = arith.extui %0 : i1 to i32
    %c0_i32_0 = arith.constant 0 : i32
    %2 = arith.cmpi ne, %1, %c0_i32_0 : i32
    scf.if %2 {
      %cst_10 = arith.constant 0.000000e+00 : f32
      %12 = vector.broadcast %cst_10 : f32 to vector<16x32xf32>
      %c0_11 = arith.constant 0 : index
      %c0_12 = arith.constant 0 : index
      %13 = vector.load %arg7[%c0_11, %c0_12] : memref<16x32xf32, #tpu.memory_space<vmem>>, vector<16x32xf32>
      tpu.vector_store %arg7[%c0_11, %c0_12], %12 {strides = array<i32>} : memref<16x32xf32, #tpu.memory_space<vmem>>, vector<16x32xf32>,
    } else {
    }
    %c0 = arith.constant 0 : index
    %c0_1 = arith.constant 0 : index
    %3 = vector.load %arg7[%c0, %c0_1] : memref<16x32xf32, #tpu.memory_space<vmem>>, vector<16x32xf32>
    %c0_2 = arith.constant 0 : index
    %c0_3 = arith.constant 0 : index
    %4 = vector.load %arg3[%c0_2, %c0_3] : memref<16x32xf32, #tpu.memory_space<vmem>>, vector<16x32xf32>
    %c0_4 = arith.constant 0 : index
    %c0_5 = arith.constant 0 : index
    %5 = vector.load %arg4[%c0_4, %c0_5] : memref<32x32xf32, #tpu.memory_space<vmem>>, vector<32x32xf32>
    %cst = arith.constant dense<0.000000e+00> : vector<16x32xf32>
    %6 = tpu.matmul %4, %5, %cst {dimension_numbers = #tpu.dot_dimension_numbers<[1], [0], [0], [1], [0, 0, 1, 1], [], []>} : vector<16x32xf32>, vector<32x32xf32>, vector<16x32xf32> -> vector<16x32xf32>
    %7 = arith.addf %3, %6 : vector<16x32xf32>
    %c0_6 = arith.constant 0 : index
    %c0_7 = arith.constant 0 : index
    %8 = vector.load %arg7[%c0_6, %c0_7] : memref<16x32xf32, #tpu.memory_space<vmem>>, vector<16x32xf32>
    tpu.vector_store %arg7[%c0_6, %c0_7], %7 {strides = array<i32>} : memref<16x32xf32, #tpu.memory_space<vmem>>, vector<16x32xf32>,
    %c0_i32_8 = arith.constant 0 : i32
    %9 = arith.cmpi eq, %arg2, %c0_i32_8 : i32
    %10 = arith.extui %9 : i1 to i32
    %c0_i32_9 = arith.constant 0 : i32
    %11 = arith.cmpi ne, %10, %c0_i32_9 : i32
    scf.if %11 {
      %c0_10 = arith.constant 0 : index
      %c0_11 = arith.constant 0 : index
      %12 = vector.load %arg7[%c0_10, %c0_11] : memref<16x32xf32, #tpu.memory_space<vmem>>, vector<16x32xf32>
      %c0_12 = arith.constant 0 : index
      %c0_13 = arith.constant 0 : index
      %13 = vector.load %arg5[%c0_12, %c0_13] : memref<1x32xf32, #tpu.memory_space<vmem>>, vector<1x32xf32>
      %14 = vector.broadcast %13 : vector<1x32xf32> to vector<16x32xf32>
      %15 = arith.addf %12, %14 : vector<16x32xf32>
      %c0_14 = arith.constant 0 : index
      %c0_15 = arith.constant 0 : index
      %16 = vector.load %arg6[%c0_14, %c0_15] : memref<16x32xf32, #tpu.memory_space<vmem>>, vector<16x32xf32>
      tpu.vector_store %arg6[%c0_14, %c0_15], %15 {strides = array<i32>} : memref<16x32xf32, #tpu.memory_space<vmem>>, vector<16x32xf32>,
    } else {
    }
    return
  }
  func.func @transform_0(%arg0: i32, %arg1: i32, %arg2: i32) -> (i32, i32) {
    %c0_i32 = arith.constant 0 : i32
    return %arg0, %arg2 : i32, i32
  }
  func.func @transform_1(%arg0: i32, %arg1: i32, %arg2: i32) -> (i32, i32) {
    %c0_i32 = arith.constant 0 : i32
    return %arg2, %arg1 : i32, i32
  }
  func.func @transform_2(%arg0: i32, %arg1: i32, %arg2: i32) -> (i32, i32) {
    %c0_i32 = arith.constant 0 : i32
    %c0_i32_0 = arith.constant 0 : i32
    return %c0_i32, %arg1 : i32, i32
  }
  func.func @transform_3(%arg0: i32, %arg1: i32, %arg2: i32) -> (i32, i32) {
    %c0_i32 = arith.constant 0 : i32
    return %arg0, %arg1 : i32, i32
  }
}

module attributes {stable_mosaic.version = 11 : i64} {
  func.func @_linear_kernel(%arg0: i32, %arg1: i32, %arg2: i32, %arg3: memref<16x32xf32, #tpu.memory_space<vmem>>, %arg4: memref<32x64xf32, #tpu.memory_space<vmem>>, %arg5: memref<1x64xf32, #tpu.memory_space<vmem>>, %arg6: memref<16x64xf32, #tpu.memory_space<vmem>>, %arg7: memref<16x64xf32, #tpu.memory_space<vmem>>) attributes {dimension_semantics = [#tpu.dimension_semantics<parallel>, #tpu.dimension_semantics<parallel>, #tpu.dimension_semantics<arbitrary>], iteration_bounds = array<i64: 1, 1, 1>, scalar_prefetch = 0 : i64, scratch_operands = 1 : i64, tpu.core_type = #tpu.core_type<tc>, window_params = [{transform_indices = @transform_0, window_bounds = array<i64: 16, 32>}, {transform_indices = @transform_1, window_bounds = array<i64: 32, 64>}, {transform_indices = @transform_2, window_bounds = array<i64: 1, 64>}, {transform_indices = @transform_3, window_bounds = array<i64: 16, 64>}]} {
    %c0_i32 = arith.constant 0 : i32
    %0 = arith.cmpi eq, %arg2, %c0_i32 : i32
    %1 = arith.extui %0 : i1 to i32
    %c0_i32_0 = arith.constant 0 : i32
    %2 = arith.cmpi ne, %1, %c0_i32_0 : i32
    scf.if %2 {
      %cst_10 = arith.constant 0.000000e+00 : f32
      %12 = vector.broadcast %cst_10 : f32 to vector<16x64xf32>
      %c0_11 = arith.constant 0 : index
      %c0_12 = arith.constant 0 : index
      %13 = vector.load %arg7[%c0_11, %c0_12] : memref<16x64xf32, #tpu.memory_space<vmem>>, vector<16x64xf32>
      tpu.vector_store %arg7[%c0_11, %c0_12], %12 {strides = array<i32>} : memref<16x64xf32, #tpu.memory_space<vmem>>, vector<16x64xf32>,
    } else {
    }
    %c0 = arith.constant 0 : index
    %c0_1 = arith.constant 0 : index
    %3 = vector.load %arg7[%c0, %c0_1] : memref<16x64xf32, #tpu.memory_space<vmem>>, vector<16x64xf32>
    %c0_2 = arith.constant 0 : index
    %c0_3 = arith.constant 0 : index
    %4 = vector.load %arg3[%c0_2, %c0_3] : memref<16x32xf32, #tpu.memory_space<vmem>>, vector<16x32xf32>
    %c0_4 = arith.constant 0 : index
    %c0_5 = arith.constant 0 : index
    %5 = vector.load %arg4[%c0_4, %c0_5] : memref<32x64xf32, #tpu.memory_space<vmem>>, vector<32x64xf32>
    %cst = arith.constant dense<0.000000e+00> : vector<16x64xf32>
    %6 = tpu.matmul %4, %5, %cst {dimension_numbers = #tpu.dot_dimension_numbers<[1], [0], [0], [1], [0, 0, 1, 1], [], []>} : vector<16x32xf32>, vector<32x64xf32>, vector<16x64xf32> -> vector<16x64xf32>
    %7 = arith.addf %3, %6 : vector<16x64xf32>
    %c0_6 = arith.constant 0 : index
    %c0_7 = arith.constant 0 : index
    %8 = vector.load %arg7[%c0_6, %c0_7] : memref<16x64xf32, #tpu.memory_space<vmem>>, vector<16x64xf32>
    tpu.vector_store %arg7[%c0_6, %c0_7], %7 {strides = array<i32>} : memref<16x64xf32, #tpu.memory_space<vmem>>, vector<16x64xf32>,
    %c0_i32_8 = arith.constant 0 : i32
    %9 = arith.cmpi eq, %arg2, %c0_i32_8 : i32
    %10 = arith.extui %9 : i1 to i32
    %c0_i32_9 = arith.constant 0 : i32
    %11 = arith.cmpi ne, %10, %c0_i32_9 : i32
    scf.if %11 {
      %c0_10 = arith.constant 0 : index
      %c0_11 = arith.constant 0 : index
      %12 = vector.load %arg7[%c0_10, %c0_11] : memref<16x64xf32, #tpu.memory_space<vmem>>, vector<16x64xf32>
      %c0_12 = arith.constant 0 : index
      %c0_13 = arith.constant 0 : index
      %13 = vector.load %arg5[%c0_12, %c0_13] : memref<1x64xf32, #tpu.memory_space<vmem>>, vector<1x64xf32>
      %14 = vector.broadcast %13 : vector<1x64xf32> to vector<16x64xf32>
      %15 = arith.addf %12, %14 : vector<16x64xf32>
      %cst_14 = arith.constant 0.000000e+00 : f32
      %16 = vector.broadcast %cst_14 : f32 to vector<16x64xf32>
      %17 = arith.maximumf %15, %16 : vector<16x64xf32>
      %c0_15 = arith.constant 0 : index
      %c0_16 = arith.constant 0 : index
      %18 = vector.load %arg6[%c0_15, %c0_16] : memref<16x64xf32, #tpu.memory_space<vmem>>, vector<16x64xf32>
      tpu.vector_store %arg6[%c0_15, %c0_16], %17 {strides = array<i32>} : memref<16x64xf32, #tpu.memory_space<vmem>>, vector<16x64xf32>,
    } else {
    }
    return
  }
  func.func @transform_0(%arg0: i32, %arg1: i32, %arg2: i32) -> (i32, i32) {
    %c0_i32 = arith.constant 0 : i32
    return %arg0, %arg2 : i32, i32
  }
  func.func @transform_1(%arg0: i32, %arg1: i32, %arg2: i32) -> (i32, i32) {
    %c0_i32 = arith.constant 0 : i32
    return %arg2, %arg1 : i32, i32
  }
  func.func @transform_2(%arg0: i32, %arg1: i32, %arg2: i32) -> (i32, i32) {
    %c0_i32 = arith.constant 0 : i32
    %c0_i32_0 = arith.constant 0 : i32
    return %c0_i32, %arg1 : i32, i32
  }
  func.func @transform_3(%arg0: i32, %arg1: i32, %arg2: i32) -> (i32, i32) {
    %c0_i32 = arith.constant 0 : i32
    return %arg0, %arg1 : i32, i32
  }
}

module attributes {stable_mosaic.version = 11 : i64} {
  func.func @_linear_residual_ln_kernel(%arg0: i32, %arg1: i32, %arg2: memref<16x32xf32, #tpu.memory_space<vmem>>, %arg3: memref<32x32xf32, #tpu.memory_space<vmem>>, %arg4: memref<1x32xf32, #tpu.memory_space<vmem>>, %arg5: memref<16x32xf32, #tpu.memory_space<vmem>>, %arg6: memref<1x32xf32, #tpu.memory_space<vmem>>, %arg7: memref<1x32xf32, #tpu.memory_space<vmem>>, %arg8: memref<16x32xf32, #tpu.memory_space<vmem>>, %arg9: memref<16x32xf32, #tpu.memory_space<vmem>>) attributes {dimension_semantics = [#tpu.dimension_semantics<parallel>, #tpu.dimension_semantics<arbitrary>], iteration_bounds = array<i64: 1, 1>, scalar_prefetch = 0 : i64, scratch_operands = 1 : i64, tpu.core_type = #tpu.core_type<tc>, window_params = [{transform_indices = @transform_0, window_bounds = array<i64: 16, 32>}, {transform_indices = @transform_1, window_bounds = array<i64: 32, 32>}, {pipeline_mode = #tpu.pipeline_mode<synchronous>, transform_indices = @transform_2, window_bounds = array<i64: 1, 32>}, {transform_indices = @transform_3, window_bounds = array<i64: 16, 32>}, {pipeline_mode = #tpu.pipeline_mode<synchronous>, transform_indices = @transform_4, window_bounds = array<i64: 1, 32>}, {pipeline_mode = #tpu.pipeline_mode<synchronous>, transform_indices = @transform_5, window_bounds = array<i64: 1, 32>}, {transform_indices = @transform_6, window_bounds = array<i64: 16, 32>}]} {
    %c0_i32 = arith.constant 0 : i32
    %0 = arith.cmpi eq, %arg1, %c0_i32 : i32
    %1 = arith.extui %0 : i1 to i32
    %c0_i32_0 = arith.constant 0 : i32
    %2 = arith.cmpi ne, %1, %c0_i32_0 : i32
    scf.if %2 {
      %cst_10 = arith.constant 0.000000e+00 : f32
      %12 = vector.broadcast %cst_10 : f32 to vector<16x32xf32>
      %c0_11 = arith.constant 0 : index
      %c0_12 = arith.constant 0 : index
      %13 = vector.load %arg9[%c0_11, %c0_12] : memref<16x32xf32, #tpu.memory_space<vmem>>, vector<16x32xf32>
      tpu.vector_store %arg9[%c0_11, %c0_12], %12 {strides = array<i32>} : memref<16x32xf32, #tpu.memory_space<vmem>>, vector<16x32xf32>,
    } else {
    }
    %c0 = arith.constant 0 : index
    %c0_1 = arith.constant 0 : index
    %3 = vector.load %arg9[%c0, %c0_1] : memref<16x32xf32, #tpu.memory_space<vmem>>, vector<16x32xf32>
    %c0_2 = arith.constant 0 : index
    %c0_3 = arith.constant 0 : index
    %4 = vector.load %arg2[%c0_2, %c0_3] : memref<16x32xf32, #tpu.memory_space<vmem>>, vector<16x32xf32>
    %c0_4 = arith.constant 0 : index
    %c0_5 = arith.constant 0 : index
    %5 = vector.load %arg3[%c0_4, %c0_5] : memref<32x32xf32, #tpu.memory_space<vmem>>, vector<32x32xf32>
    %cst = arith.constant dense<0.000000e+00> : vector<16x32xf32>
    %6 = tpu.matmul %4, %5, %cst {dimension_numbers = #tpu.dot_dimension_numbers<[1], [0], [0], [1], [0, 0, 1, 1], [], []>} : vector<16x32xf32>, vector<32x32xf32>, vector<16x32xf32> -> vector<16x32xf32>
    %7 = arith.addf %3, %6 : vector<16x32xf32>
    %c0_6 = arith.constant 0 : index
    %c0_7 = arith.constant 0 : index
    %8 = vector.load %arg9[%c0_6, %c0_7] : memref<16x32xf32, #tpu.memory_space<vmem>>, vector<16x32xf32>
    tpu.vector_store %arg9[%c0_6, %c0_7], %7 {strides = array<i32>} : memref<16x32xf32, #tpu.memory_space<vmem>>, vector<16x32xf32>,
    %c0_i32_8 = arith.constant 0 : i32
    %9 = arith.cmpi eq, %arg1, %c0_i32_8 : i32
    %10 = arith.extui %9 : i1 to i32
    %c0_i32_9 = arith.constant 0 : i32
    %11 = arith.cmpi ne, %10, %c0_i32_9 : i32
    scf.if %11 {
      %c0_10 = arith.constant 0 : index
      %c0_11 = arith.constant 0 : index
      %12 = vector.load %arg9[%c0_10, %c0_11] : memref<16x32xf32, #tpu.memory_space<vmem>>, vector<16x32xf32>
      %c0_12 = arith.constant 0 : index
      %c0_13 = arith.constant 0 : index
      %13 = vector.load %arg4[%c0_12, %c0_13] : memref<1x32xf32, #tpu.memory_space<vmem>>, vector<1x32xf32>
      %14 = vector.broadcast %13 : vector<1x32xf32> to vector<16x32xf32>
      %15 = arith.addf %12, %14 : vector<16x32xf32>
      %c0_14 = arith.constant 0 : index
      %c0_15 = arith.constant 0 : index
      %16 = vector.load %arg5[%c0_14, %c0_15] : memref<16x32xf32, #tpu.memory_space<vmem>>, vector<16x32xf32>
      %17 = arith.addf %15, %16 : vector<16x32xf32>
      %cst_16 = arith.constant dense<0.000000e+00> : vector<16xf32>
      %18 = vector.multi_reduction <add>, %17, %cst_16 [1] : vector<16x32xf32> to vector<16xf32>
      %19 = vector.shape_cast %18 : vector<16xf32> to vector<16x1xf32>
      %cst_17 = arith.constant 3.200000e+01 : f32
      %20 = vector.broadcast %cst_17 : f32 to vector<16x1xf32>
      %21 = arith.divf %19, %20 : vector<16x1xf32>
      %22 = vector.broadcast %21 : vector<16x1xf32> to vector<16x32xf32>
      %23 = arith.subf %17, %22 : vector<16x32xf32>
      %24 = arith.mulf %23, %23 : vector<16x32xf32>
      %cst_18 = arith.constant dense<0.000000e+00> : vector<16xf32>
      %25 = vector.multi_reduction <add>, %24, %cst_18 [1] : vector<16x32xf32> to vector<16xf32>
      %26 = vector.shape_cast %25 : vector<16xf32> to vector<16x1xf32>
      %cst_19 = arith.constant 3.200000e+01 : f32
      %27 = vector.broadcast %cst_19 : f32 to vector<16x1xf32>
      %28 = arith.divf %26, %27 : vector<16x1xf32>
      %cst_20 = arith.constant 9.99999974E-6 : f32
      %29 = vector.broadcast %cst_20 : f32 to vector<16x1xf32>
      %30 = arith.addf %28, %29 : vector<16x1xf32>
      %31 = math.rsqrt %30 : vector<16x1xf32>
      %32 = vector.broadcast %31 : vector<16x1xf32> to vector<16x32xf32>
      %33 = arith.mulf %23, %32 : vector<16x32xf32>
      %c0_21 = arith.constant 0 : index
      %c0_22 = arith.constant 0 : index
      %34 = vector.load %arg6[%c0_21, %c0_22] : memref<1x32xf32, #tpu.memory_space<vmem>>, vector<1x32xf32>
      %35 = vector.broadcast %34 : vector<1x32xf32> to vector<16x32xf32>
      %36 = arith.mulf %33, %35 : vector<16x32xf32>
      %c0_23 = arith.constant 0 : index
      %c0_24 = arith.constant 0 : index
      %37 = vector.load %arg7[%c0_23, %c0_24] : memref<1x32xf32, #tpu.memory_space<vmem>>, vector<1x32xf32>
      %38 = vector.broadcast %37 : vector<1x32xf32> to vector<16x32xf32>
      %39 = arith.addf %36, %38 : vector<16x32xf32>
      %c0_25 = arith.constant 0 : index
      %c0_26 = arith.constant 0 : index
      %40 = vector.load %arg8[%c0_25, %c0_26] : memref<16x32xf32, #tpu.memory_space<vmem>>, vector<16x32xf32>
      tpu.vector_store %arg8[%c0_25, %c0_26], %39 {strides = array<i32>} : memref<16x32xf32, #tpu.memory_space<vmem>>, vector<16x32xf32>,
    } else {
    }
    return
  }
  func.func @transform_0(%arg0: i32, %arg1: i32) -> (i32, i32) {
    %c0_i32 = arith.constant 0 : i32
    return %arg0, %arg1 : i32, i32
  }
  func.func @transform_1(%arg0: i32, %arg1: i32) -> (i32, i32) {
    %c0_i32 = arith.constant 0 : i32
    %c0_i32_0 = arith.constant 0 : i32
    return %arg1, %c0_i32 : i32, i32
  }
  func.func @transform_2(%arg0: i32, %arg1: i32) -> (i32, i32) {
    %c0_i32 = arith.constant 0 : i32
    %c0_i32_0 = arith.constant 0 : i32
    %c0_i32_1 = arith.constant 0 : i32
    return %c0_i32, %c0_i32_0 : i32, i32
  }
  func.func @transform_3(%arg0: i32, %arg1: i32) -> (i32, i32) {
    %c0_i32 = arith.constant 0 : i32
    %c0_i32_0 = arith.constant 0 : i32
    return %arg0, %c0_i32 : i32, i32
  }
  func.func @transform_4(%arg0: i32, %arg1: i32) -> (i32, i32) {
    %c0_i32 = arith.constant 0 : i32
    %c0_i32_0 = arith.constant 0 : i32
    %c0_i32_1 = arith.constant 0 : i32
    return %c0_i32, %c0_i32_0 : i32, i32
  }
  func.func @transform_5(%arg0: i32, %arg1: i32) -> (i32, i32) {
    %c0_i32 = arith.constant 0 : i32
    %c0_i32_0 = arith.constant 0 : i32
    %c0_i32_1 = arith.constant 0 : i32
    return %c0_i32, %c0_i32_0 : i32, i32
  }
  func.func @transform_6(%arg0: i32, %arg1: i32) -> (i32, i32) {
    %c0_i32 = arith.constant 0 : i32
    %c0_i32_0 = arith.constant 0 : i32
    return %arg0, %c0_i32 : i32, i32
  }
}

module attributes {stable_mosaic.version = 11 : i64} {
  func.func @_flash_mha_kernel(%arg0: i32, %arg1: i32, %arg2: i32, %arg3: memref<1x8x32xf32, #tpu.memory_space<vmem>>, %arg4: memref<1x8x32xf32, #tpu.memory_space<vmem>>, %arg5: memref<1x8x32xf32, #tpu.memory_space<vmem>>, %arg6: memref<1x8x32xf32, #tpu.memory_space<vmem>>, %arg7: memref<4x8x1xf32, #tpu.memory_space<vmem>>, %arg8: memref<4x8x1xf32, #tpu.memory_space<vmem>>, %arg9: memref<8x32xf32, #tpu.memory_space<vmem>>) attributes {dimension_semantics = [#tpu.dimension_semantics<parallel>, #tpu.dimension_semantics<parallel>, #tpu.dimension_semantics<arbitrary>], iteration_bounds = array<i64: 2, 1, 1>, scalar_prefetch = 0 : i64, scratch_operands = 3 : i64, tpu.core_type = #tpu.core_type<tc>, window_params = [{transform_indices = @transform_0, window_bounds = array<i64: 1, 8, 32>}, {transform_indices = @transform_1, window_bounds = array<i64: 1, 8, 32>}, {transform_indices = @transform_2, window_bounds = array<i64: 1, 8, 32>}, {transform_indices = @transform_3, window_bounds = array<i64: 1, 8, 32>}]} {
    %c0_i32 = arith.constant 0 : i32
    %0 = arith.cmpi eq, %arg2, %c0_i32 : i32
    %1 = arith.extui %0 : i1 to i32
    %c0_i32_0 = arith.constant 0 : i32
    %2 = arith.cmpi ne, %1, %c0_i32_0 : i32
    scf.if %2 {
      %cst_88 = arith.constant 0xFF800000 : f32
      %148 = vector.broadcast %cst_88 : f32 to vector<4x8x1xf32>
      %c0_89 = arith.constant 0 : index
      %c0_90 = arith.constant 0 : index
      %c0_91 = arith.constant 0 : index
      %149 = vector.load %arg7[%c0_89, %c0_90, %c0_91] : memref<4x8x1xf32, #tpu.memory_space<vmem>>, vector<4x8x1xf32>
      tpu.vector_store %arg7[%c0_89, %c0_90, %c0_91], %148 {strides = array<i32>} : memref<4x8x1xf32, #tpu.memory_space<vmem>>, vector<4x8x1xf32>,
      %cst_92 = arith.constant 0.000000e+00 : f32
      %150 = vector.broadcast %cst_92 : f32 to vector<4x8x1xf32>
      %c0_93 = arith.constant 0 : index
      %c0_94 = arith.constant 0 : index
      %c0_95 = arith.constant 0 : index
      %151 = vector.load %arg8[%c0_93, %c0_94, %c0_95] : memref<4x8x1xf32, #tpu.memory_space<vmem>>, vector<4x8x1xf32>
      tpu.vector_store %arg8[%c0_93, %c0_94, %c0_95], %150 {strides = array<i32>} : memref<4x8x1xf32, #tpu.memory_space<vmem>>, vector<4x8x1xf32>,
      %cst_96 = arith.constant 0.000000e+00 : f32
      %152 = vector.broadcast %cst_96 : f32 to vector<8x32xf32>
      %c0_97 = arith.constant 0 : index
      %c0_98 = arith.constant 0 : index
      %153 = vector.load %arg9[%c0_97, %c0_98] : memref<8x32xf32, #tpu.memory_space<vmem>>, vector<8x32xf32>
      tpu.vector_store %arg9[%c0_97, %c0_98], %152 {strides = array<i32>} : memref<8x32xf32, #tpu.memory_space<vmem>>, vector<8x32xf32>,
    } else {
    }
    %c0 = arith.constant 0 : index
    %c0_1 = arith.constant 0 : index
    %c0_2 = arith.constant 0 : index
    %3 = vector.load %arg3[%c0, %c0_1, %c0_2] : memref<1x8x32xf32, #tpu.memory_space<vmem>>, vector<1x8x32xf32>
    %4 = vector.shape_cast %3 : vector<1x8x32xf32> to vector<8x32xf32>
    %c0_3 = arith.constant 0 : index
    %c0_4 = arith.constant 0 : index
    %c0_5 = arith.constant 0 : index
    %5 = vector.load %arg4[%c0_3, %c0_4, %c0_5] : memref<1x8x32xf32, #tpu.memory_space<vmem>>, vector<1x8x32xf32>
    %6 = vector.shape_cast %5 : vector<1x8x32xf32> to vector<8x32xf32>
    %c0_6 = arith.constant 0 : index
    %c0_7 = arith.constant 0 : index
    %c0_8 = arith.constant 0 : index
    %7 = vector.load %arg5[%c0_6, %c0_7, %c0_8] : memref<1x8x32xf32, #tpu.memory_space<vmem>>, vector<1x8x32xf32>
    %8 = vector.shape_cast %7 : vector<1x8x32xf32> to vector<8x32xf32>
    %9 = vector.extract_strided_slice %4 {offsets = [0, 0], sizes = [8, 8], strides = [1, 1]} : vector<8x32xf32> to vector<8x8xf32>
    %cst = arith.constant 0.353553385 : f32
    %10 = vector.broadcast %cst : f32 to vector<8x8xf32>
    %11 = arith.mulf %9, %10 : vector<8x8xf32>
    %12 = vector.extract_strided_slice %6 {offsets = [0, 0], sizes = [8, 8], strides = [1, 1]} : vector<8x32xf32> to vector<8x8xf32>
    %13 = vector.extract_strided_slice %8 {offsets = [0, 0], sizes = [8, 8], strides = [1, 1]} : vector<8x32xf32> to vector<8x8xf32>
    %cst_9 = arith.constant dense<0.000000e+00> : vector<8x8xf32>
    %14 = tpu.matmul %11, %12, %cst_9 {dimension_numbers = #tpu.dot_dimension_numbers<[1], [1], [0], [0], [0, 0, 1, 0], [], []>} : vector<8x8xf32>, vector<8x8xf32>, vector<8x8xf32> -> vector<8x8xf32>
    %c0_10 = arith.constant 0 : index
    %c0_11 = arith.constant 0 : index
    %c0_12 = arith.constant 0 : index
    %15 = vector.load %arg7[%c0_10, %c0_11, %c0_12] : memref<4x8x1xf32, #tpu.memory_space<vmem>>, vector<1x8x1xf32>
    %16 = vector.shape_cast %15 : vector<1x8x1xf32> to vector<8x1xf32>
    %c0_13 = arith.constant 0 : index
    %c0_14 = arith.constant 0 : index
    %c0_15 = arith.constant 0 : index
    %17 = vector.load %arg8[%c0_13, %c0_14, %c0_15] : memref<4x8x1xf32, #tpu.memory_space<vmem>>, vector<1x8x1xf32>
    %18 = vector.shape_cast %17 : vector<1x8x1xf32> to vector<8x1xf32>
    %cst_16 = arith.constant dense<0xFF800000> : vector<8xf32>
    %19 = vector.multi_reduction <maximumf>, %14, %cst_16 [1] : vector<8x8xf32> to vector<8xf32>
    %20 = vector.shape_cast %19 : vector<8xf32> to vector<8x1xf32>
    %21 = arith.maximumf %16, %20 : vector<8x1xf32>
    %22 = arith.subf %16, %21 : vector<8x1xf32>
    %23 = math.exp %22 : vector<8x1xf32>
    %24 = vector.broadcast %21 : vector<8x1xf32> to vector<8x8xf32>
    %25 = arith.subf %14, %24 : vector<8x8xf32>
    %26 = math.exp %25 : vector<8x8xf32>
    %27 = arith.mulf %23, %18 : vector<8x1xf32>
    %cst_17 = arith.constant dense<0.000000e+00> : vector<8xf32>
    %28 = vector.multi_reduction <add>, %26, %cst_17 [1] : vector<8x8xf32> to vector<8xf32>
    %29 = vector.shape_cast %28 : vector<8xf32> to vector<8x1xf32>
    %30 = arith.addf %27, %29 : vector<8x1xf32>
    %c0_18 = arith.constant 0 : index
    %c0_19 = arith.constant 0 : index
    %c0_20 = arith.constant 0 : index
    %31 = vector.load %arg8[%c0_18, %c0_19, %c0_20] : memref<4x8x1xf32, #tpu.memory_space<vmem>>, vector<1x8x1xf32>
    %32 = vector.shape_cast %31 : vector<1x8x1xf32> to vector<8x1xf32>
    %33 = vector.shape_cast %30 : vector<8x1xf32> to vector<1x8x1xf32>
    tpu.vector_store %arg8[%c0_18, %c0_19, %c0_20], %33 {strides = array<i32>} : memref<4x8x1xf32, #tpu.memory_space<vmem>>, vector<1x8x1xf32>,
    %c0_21 = arith.constant 0 : index
    %c0_22 = arith.constant 0 : index
    %34 = vector.load %arg9[%c0_21, %c0_22] : memref<8x32xf32, #tpu.memory_space<vmem>>, vector<8x8xf32>
    %35 = vector.broadcast %23 : vector<8x1xf32> to vector<8x8xf32>
    %36 = arith.mulf %35, %34 : vector<8x8xf32>
    %cst_23 = arith.constant dense<0.000000e+00> : vector<8x8xf32>
    %37 = tpu.matmul %26, %13, %cst_23 {dimension_numbers = #tpu.dot_dimension_numbers<[1], [0], [0], [1], [0, 0, 1, 1], [], []>} : vector<8x8xf32>, vector<8x8xf32>, vector<8x8xf32> -> vector<8x8xf32>
    %38 = arith.addf %36, %37 : vector<8x8xf32>
    %c0_24 = arith.constant 0 : index
    %c0_25 = arith.constant 0 : index
    %39 = vector.load %arg9[%c0_24, %c0_25] : memref<8x32xf32, #tpu.memory_space<vmem>>, vector<8x8xf32>
    tpu.vector_store %arg9[%c0_24, %c0_25], %38 {strides = array<i32>} : memref<8x32xf32, #tpu.memory_space<vmem>>, vector<8x8xf32>,
    %c0_26 = arith.constant 0 : index
    %c0_27 = arith.constant 0 : index
    %c0_28 = arith.constant 0 : index
    %40 = vector.load %arg7[%c0_26, %c0_27, %c0_28] : memref<4x8x1xf32, #tpu.memory_space<vmem>>, vector<1x8x1xf32>
    %41 = vector.shape_cast %40 : vector<1x8x1xf32> to vector<8x1xf32>
    %42 = vector.shape_cast %21 : vector<8x1xf32> to vector<1x8x1xf32>
    tpu.vector_store %arg7[%c0_26, %c0_27, %c0_28], %42 {strides = array<i32>} : memref<4x8x1xf32, #tpu.memory_space<vmem>>, vector<1x8x1xf32>,
    %43 = vector.extract_strided_slice %4 {offsets = [0, 8], sizes = [8, 8], strides = [1, 1]} : vector<8x32xf32> to vector<8x8xf32>
    %cst_29 = arith.constant 0.353553385 : f32
    %44 = vector.broadcast %cst_29 : f32 to vector<8x8xf32>
    %45 = arith.mulf %43, %44 : vector<8x8xf32>
    %46 = vector.extract_strided_slice %6 {offsets = [0, 8], sizes = [8, 8], strides = [1, 1]} : vector<8x32xf32> to vector<8x8xf32>
    %47 = vector.extract_strided_slice %8 {offsets = [0, 8], sizes = [8, 8], strides = [1, 1]} : vector<8x32xf32> to vector<8x8xf32>
    %cst_30 = arith.constant dense<0.000000e+00> : vector<8x8xf32>
    %48 = tpu.matmul %45, %46, %cst_30 {dimension_numbers = #tpu.dot_dimension_numbers<[1], [1], [0], [0], [0, 0, 1, 0], [], []>} : vector<8x8xf32>, vector<8x8xf32>, vector<8x8xf32> -> vector<8x8xf32>
    %c1 = arith.constant 1 : index
    %c0_31 = arith.constant 0 : index
    %c0_32 = arith.constant 0 : index
    %49 = vector.load %arg7[%c1, %c0_31, %c0_32] : memref<4x8x1xf32, #tpu.memory_space<vmem>>, vector<1x8x1xf32>
    %50 = vector.shape_cast %49 : vector<1x8x1xf32> to vector<8x1xf32>
    %c1_33 = arith.constant 1 : index
    %c0_34 = arith.constant 0 : index
    %c0_35 = arith.constant 0 : index
    %51 = vector.load %arg8[%c1_33, %c0_34, %c0_35] : memref<4x8x1xf32, #tpu.memory_space<vmem>>, vector<1x8x1xf32>
    %52 = vector.shape_cast %51 : vector<1x8x1xf32> to vector<8x1xf32>
    %cst_36 = arith.constant dense<0xFF800000> : vector<8xf32>
    %53 = vector.multi_reduction <maximumf>, %48, %cst_36 [1] : vector<8x8xf32> to vector<8xf32>
    %54 = vector.shape_cast %53 : vector<8xf32> to vector<8x1xf32>
    %55 = arith.maximumf %50, %54 : vector<8x1xf32>
    %56 = arith.subf %50, %55 : vector<8x1xf32>
    %57 = math.exp %56 : vector<8x1xf32>
    %58 = vector.broadcast %55 : vector<8x1xf32> to vector<8x8xf32>
    %59 = arith.subf %48, %58 : vector<8x8xf32>
    %60 = math.exp %59 : vector<8x8xf32>
    %61 = arith.mulf %57, %52 : vector<8x1xf32>
    %cst_37 = arith.constant dense<0.000000e+00> : vector<8xf32>
    %62 = vector.multi_reduction <add>, %60, %cst_37 [1] : vector<8x8xf32> to vector<8xf32>
    %63 = vector.shape_cast %62 : vector<8xf32> to vector<8x1xf32>
    %64 = arith.addf %61, %63 : vector<8x1xf32>
    %c1_38 = arith.constant 1 : index
    %c0_39 = arith.constant 0 : index
    %c0_40 = arith.constant 0 : index
    %65 = vector.load %arg8[%c1_38, %c0_39, %c0_40] : memref<4x8x1xf32, #tpu.memory_space<vmem>>, vector<1x8x1xf32>
    %66 = vector.shape_cast %65 : vector<1x8x1xf32> to vector<8x1xf32>
    %67 = vector.shape_cast %64 : vector<8x1xf32> to vector<1x8x1xf32>
    tpu.vector_store %arg8[%c1_38, %c0_39, %c0_40], %67 {strides = array<i32>} : memref<4x8x1xf32, #tpu.memory_space<vmem>>, vector<1x8x1xf32>,
    %c0_41 = arith.constant 0 : index
    %c8 = arith.constant 8 : index
    %68 = vector.load %arg9[%c0_41, %c8] : memref<8x32xf32, #tpu.memory_space<vmem>>, vector<8x8xf32>
    %69 = vector.broadcast %57 : vector<8x1xf32> to vector<8x8xf32>
    %70 = arith.mulf %69, %68 : vector<8x8xf32>
    %cst_42 = arith.constant dense<0.000000e+00> : vector<8x8xf32>
    %71 = tpu.matmul %60, %47, %cst_42 {dimension_numbers = #tpu.dot_dimension_numbers<[1], [0], [0], [1], [0, 0, 1, 1], [], []>} : vector<8x8xf32>, vector<8x8xf32>, vector<8x8xf32> -> vector<8x8xf32>
    %72 = arith.addf %70, %71 : vector<8x8xf32>
    %c0_43 = arith.constant 0 : index
    %c8_44 = arith.constant 8 : index
    %73 = vector.load %arg9[%c0_43, %c8_44] : memref<8x32xf32, #tpu.memory_space<vmem>>, vector<8x8xf32>
    tpu.vector_store %arg9[%c0_43, %c8_44], %72 {strides = array<i32>} : memref<8x32xf32, #tpu.memory_space<vmem>>, vector<8x8xf32>,
    %c1_45 = arith.constant 1 : index
    %c0_46 = arith.constant 0 : index
    %c0_47 = arith.constant 0 : index
    %74 = vector.load %arg7[%c1_45, %c0_46, %c0_47] : memref<4x8x1xf32, #tpu.memory_space<vmem>>, vector<1x8x1xf32>
    %75 = vector.shape_cast %74 : vector<1x8x1xf32> to vector<8x1xf32>
    %76 = vector.shape_cast %55 : vector<8x1xf32> to vector<1x8x1xf32>
    tpu.vector_store %arg7[%c1_45, %c0_46, %c0_47], %76 {strides = array<i32>} : memref<4x8x1xf32, #tpu.memory_space<vmem>>, vector<1x8x1xf32>,
    %77 = vector.extract_strided_slice %4 {offsets = [0, 16], sizes = [8, 8], strides = [1, 1]} : vector<8x32xf32> to vector<8x8xf32>
    %cst_48 = arith.constant 0.353553385 : f32
    %78 = vector.broadcast %cst_48 : f32 to vector<8x8xf32>
    %79 = arith.mulf %77, %78 : vector<8x8xf32>
    %80 = vector.extract_strided_slice %6 {offsets = [0, 16], sizes = [8, 8], strides = [1, 1]} : vector<8x32xf32> to vector<8x8xf32>
    %81 = vector.extract_strided_slice %8 {offsets = [0, 16], sizes = [8, 8], strides = [1, 1]} : vector<8x32xf32> to vector<8x8xf32>
    %cst_49 = arith.constant dense<0.000000e+00> : vector<8x8xf32>
    %82 = tpu.matmul %79, %80, %cst_49 {dimension_numbers = #tpu.dot_dimension_numbers<[1], [1], [0], [0], [0, 0, 1, 0], [], []>} : vector<8x8xf32>, vector<8x8xf32>, vector<8x8xf32> -> vector<8x8xf32>
    %c2 = arith.constant 2 : index
    %c0_50 = arith.constant 0 : index
    %c0_51 = arith.constant 0 : index
    %83 = vector.load %arg7[%c2, %c0_50, %c0_51] : memref<4x8x1xf32, #tpu.memory_space<vmem>>, vector<1x8x1xf32>
    %84 = vector.shape_cast %83 : vector<1x8x1xf32> to vector<8x1xf32>
    %c2_52 = arith.constant 2 : index
    %c0_53 = arith.constant 0 : index
    %c0_54 = arith.constant 0 : index
    %85 = vector.load %arg8[%c2_52, %c0_53, %c0_54] : memref<4x8x1xf32, #tpu.memory_space<vmem>>, vector<1x8x1xf32>
    %86 = vector.shape_cast %85 : vector<1x8x1xf32> to vector<8x1xf32>
    %cst_55 = arith.constant dense<0xFF800000> : vector<8xf32>
    %87 = vector.multi_reduction <maximumf>, %82, %cst_55 [1] : vector<8x8xf32> to vector<8xf32>
    %88 = vector.shape_cast %87 : vector<8xf32> to vector<8x1xf32>
    %89 = arith.maximumf %84, %88 : vector<8x1xf32>
    %90 = arith.subf %84, %89 : vector<8x1xf32>
    %91 = math.exp %90 : vector<8x1xf32>
    %92 = vector.broadcast %89 : vector<8x1xf32> to vector<8x8xf32>
    %93 = arith.subf %82, %92 : vector<8x8xf32>
    %94 = math.exp %93 : vector<8x8xf32>
    %95 = arith.mulf %91, %86 : vector<8x1xf32>
    %cst_56 = arith.constant dense<0.000000e+00> : vector<8xf32>
    %96 = vector.multi_reduction <add>, %94, %cst_56 [1] : vector<8x8xf32> to vector<8xf32>
    %97 = vector.shape_cast %96 : vector<8xf32> to vector<8x1xf32>
    %98 = arith.addf %95, %97 : vector<8x1xf32>
    %c2_57 = arith.constant 2 : index
    %c0_58 = arith.constant 0 : index
    %c0_59 = arith.constant 0 : index
    %99 = vector.load %arg8[%c2_57, %c0_58, %c0_59] : memref<4x8x1xf32, #tpu.memory_space<vmem>>, vector<1x8x1xf32>
    %100 = vector.shape_cast %99 : vector<1x8x1xf32> to vector<8x1xf32>
    %101 = vector.shape_cast %98 : vector<8x1xf32> to vector<1x8x1xf32>
    tpu.vector_store %arg8[%c2_57, %c0_58, %c0_59], %101 {strides = array<i32>} : memref<4x8x1xf32, #tpu.memory_space<vmem>>, vector<1x8x1xf32>,
    %c0_60 = arith.constant 0 : index
    %c16 = arith.constant 16 : index
    %102 = vector.load %arg9[%c0_60, %c16] : memref<8x32xf32, #tpu.memory_space<vmem>>, vector<8x8xf32>
    %103 = vector.broadcast %91 : vector<8x1xf32> to vector<8x8xf32>
    %104 = arith.mulf %103, %102 : vector<8x8xf32>
    %cst_61 = arith.constant dense<0.000000e+00> : vector<8x8xf32>
    %105 = tpu.matmul %94, %81, %cst_61 {dimension_numbers = #tpu.dot_dimension_numbers<[1], [0], [0], [1], [0, 0, 1, 1], [], []>} : vector<8x8xf32>, vector<8x8xf32>, vector<8x8xf32> -> vector<8x8xf32>
    %106 = arith.addf %104, %105 : vector<8x8xf32>
    %c0_62 = arith.constant 0 : index
    %c16_63 = arith.constant 16 : index
    %107 = vector.load %arg9[%c0_62, %c16_63] : memref<8x32xf32, #tpu.memory_space<vmem>>, vector<8x8xf32>
    tpu.vector_store %arg9[%c0_62, %c16_63], %106 {strides = array<i32>} : memref<8x32xf32, #tpu.memory_space<vmem>>, vector<8x8xf32>,
    %c2_64 = arith.constant 2 : index
    %c0_65 = arith.constant 0 : index
    %c0_66 = arith.constant 0 : index
    %108 = vector.load %arg7[%c2_64, %c0_65, %c0_66] : memref<4x8x1xf32, #tpu.memory_space<vmem>>, vector<1x8x1xf32>
    %109 = vector.shape_cast %108 : vector<1x8x1xf32> to vector<8x1xf32>
    %110 = vector.shape_cast %89 : vector<8x1xf32> to vector<1x8x1xf32>
    tpu.vector_store %arg7[%c2_64, %c0_65, %c0_66], %110 {strides = array<i32>} : memref<4x8x1xf32, #tpu.memory_space<vmem>>, vector<1x8x1xf32>,
    %111 = vector.extract_strided_slice %4 {offsets = [0, 24], sizes = [8, 8], strides = [1, 1]} : vector<8x32xf32> to vector<8x8xf32>
    %cst_67 = arith.constant 0.353553385 : f32
    %112 = vector.broadcast %cst_67 : f32 to vector<8x8xf32>
    %113 = arith.mulf %111, %112 : vector<8x8xf32>
    %114 = vector.extract_strided_slice %6 {offsets = [0, 24], sizes = [8, 8], strides = [1, 1]} : vector<8x32xf32> to vector<8x8xf32>
    %115 = vector.extract_strided_slice %8 {offsets = [0, 24], sizes = [8, 8], strides = [1, 1]} : vector<8x32xf32> to vector<8x8xf32>
    %cst_68 = arith.constant dense<0.000000e+00> : vector<8x8xf32>
    %116 = tpu.matmul %113, %114, %cst_68 {dimension_numbers = #tpu.dot_dimension_numbers<[1], [1], [0], [0], [0, 0, 1, 0], [], []>} : vector<8x8xf32>, vector<8x8xf32>, vector<8x8xf32> -> vector<8x8xf32>
    %c3 = arith.constant 3 : index
    %c0_69 = arith.constant 0 : index
    %c0_70 = arith.constant 0 : index
    %117 = vector.load %arg7[%c3, %c0_69, %c0_70] : memref<4x8x1xf32, #tpu.memory_space<vmem>>, vector<1x8x1xf32>
    %118 = vector.shape_cast %117 : vector<1x8x1xf32> to vector<8x1xf32>
    %c3_71 = arith.constant 3 : index
    %c0_72 = arith.constant 0 : index
    %c0_73 = arith.constant 0 : index
    %119 = vector.load %arg8[%c3_71, %c0_72, %c0_73] : memref<4x8x1xf32, #tpu.memory_space<vmem>>, vector<1x8x1xf32>
    %120 = vector.shape_cast %119 : vector<1x8x1xf32> to vector<8x1xf32>
    %cst_74 = arith.constant dense<0xFF800000> : vector<8xf32>
    %121 = vector.multi_reduction <maximumf>, %116, %cst_74 [1] : vector<8x8xf32> to vector<8xf32>
    %122 = vector.shape_cast %121 : vector<8xf32> to vector<8x1xf32>
    %123 = arith.maximumf %118, %122 : vector<8x1xf32>
    %124 = arith.subf %118, %123 : vector<8x1xf32>
    %125 = math.exp %124 : vector<8x1xf32>
    %126 = vector.broadcast %123 : vector<8x1xf32> to vector<8x8xf32>
    %127 = arith.subf %116, %126 : vector<8x8xf32>
    %128 = math.exp %127 : vector<8x8xf32>
    %129 = arith.mulf %125, %120 : vector<8x1xf32>
    %cst_75 = arith.constant dense<0.000000e+00> : vector<8xf32>
    %130 = vector.multi_reduction <add>, %128, %cst_75 [1] : vector<8x8xf32> to vector<8xf32>
    %131 = vector.shape_cast %130 : vector<8xf32> to vector<8x1xf32>
    %132 = arith.addf %129, %131 : vector<8x1xf32>
    %c3_76 = arith.constant 3 : index
    %c0_77 = arith.constant 0 : index
    %c0_78 = arith.constant 0 : index
    %133 = vector.load %arg8[%c3_76, %c0_77, %c0_78] : memref<4x8x1xf32, #tpu.memory_space<vmem>>, vector<1x8x1xf32>
    %134 = vector.shape_cast %133 : vector<1x8x1xf32> to vector<8x1xf32>
    %135 = vector.shape_cast %132 : vector<8x1xf32> to vector<1x8x1xf32>
    tpu.vector_store %arg8[%c3_76, %c0_77, %c0_78], %135 {strides = array<i32>} : memref<4x8x1xf32, #tpu.memory_space<vmem>>, vector<1x8x1xf32>,
    %c0_79 = arith.constant 0 : index
    %c24 = arith.constant 24 : index
    %136 = vector.load %arg9[%c0_79, %c24] : memref<8x32xf32, #tpu.memory_space<vmem>>, vector<8x8xf32>
    %137 = vector.broadcast %125 : vector<8x1xf32> to vector<8x8xf32>
    %138 = arith.mulf %137, %136 : vector<8x8xf32>
    %cst_80 = arith.constant dense<0.000000e+00> : vector<8x8xf32>
    %139 = tpu.matmul %128, %115, %cst_80 {dimension_numbers = #tpu.dot_dimension_numbers<[1], [0], [0], [1], [0, 0, 1, 1], [], []>} : vector<8x8xf32>, vector<8x8xf32>, vector<8x8xf32> -> vector<8x8xf32>
    %140 = arith.addf %138, %139 : vector<8x8xf32>
    %c0_81 = arith.constant 0 : index
    %c24_82 = arith.constant 24 : index
    %141 = vector.load %arg9[%c0_81, %c24_82] : memref<8x32xf32, #tpu.memory_space<vmem>>, vector<8x8xf32>
    tpu.vector_store %arg9[%c0_81, %c24_82], %140 {strides = array<i32>} : memref<8x32xf32, #tpu.memory_space<vmem>>, vector<8x8xf32>,
    %c3_83 = arith.constant 3 : index
    %c0_84 = arith.constant 0 : index
    %c0_85 = arith.constant 0 : index
    %142 = vector.load %arg7[%c3_83, %c0_84, %c0_85] : memref<4x8x1xf32, #tpu.memory_space<vmem>>, vector<1x8x1xf32>
    %143 = vector.shape_cast %142 : vector<1x8x1xf32> to vector<8x1xf32>
    %144 = vector.shape_cast %123 : vector<8x1xf32> to vector<1x8x1xf32>
    tpu.vector_store %arg7[%c3_83, %c0_84, %c0_85], %144 {strides = array<i32>} : memref<4x8x1xf32, #tpu.memory_space<vmem>>, vector<1x8x1xf32>,
    %c0_i32_86 = arith.constant 0 : i32
    %145 = arith.cmpi eq, %arg2, %c0_i32_86 : i32
    %146 = arith.extui %145 : i1 to i32
    %c0_i32_87 = arith.constant 0 : i32
    %147 = arith.cmpi ne, %146, %c0_i32_87 : i32
    scf.if %147 {
      %c0_88 = arith.constant 0 : index
      %c0_89 = arith.constant 0 : index
      %148 = vector.load %arg9[%c0_88, %c0_89] : memref<8x32xf32, #tpu.memory_space<vmem>>, vector<8x8xf32>
      %c0_90 = arith.constant 0 : index
      %c0_91 = arith.constant 0 : index
      %c0_92 = arith.constant 0 : index
      %149 = vector.load %arg8[%c0_90, %c0_91, %c0_92] : memref<4x8x1xf32, #tpu.memory_space<vmem>>, vector<1x8x1xf32>
      %150 = vector.shape_cast %149 : vector<1x8x1xf32> to vector<8x1xf32>
      %151 = vector.broadcast %150 : vector<8x1xf32> to vector<8x8xf32>
      %152 = arith.divf %148, %151 : vector<8x8xf32>
      %c0_93 = arith.constant 0 : index
      %c0_94 = arith.constant 0 : index
      %153 = vector.load %arg9[%c0_93, %c0_94] : memref<8x32xf32, #tpu.memory_space<vmem>>, vector<8x8xf32>
      tpu.vector_store %arg9[%c0_93, %c0_94], %152 {strides = array<i32>} : memref<8x32xf32, #tpu.memory_space<vmem>>, vector<8x8xf32>,
      %c0_95 = arith.constant 0 : index
      %c8_96 = arith.constant 8 : index
      %154 = vector.load %arg9[%c0_95, %c8_96] : memref<8x32xf32, #tpu.memory_space<vmem>>, vector<8x8xf32>
      %c1_97 = arith.constant 1 : index
      %c0_98 = arith.constant 0 : index
      %c0_99 = arith.constant 0 : index
      %155 = vector.load %arg8[%c1_97, %c0_98, %c0_99] : memref<4x8x1xf32, #tpu.memory_space<vmem>>, vector<1x8x1xf32>
      %156 = vector.shape_cast %155 : vector<1x8x1xf32> to vector<8x1xf32>
      %157 = vector.broadcast %156 : vector<8x1xf32> to vector<8x8xf32>
      %158 = arith.divf %154, %157 : vector<8x8xf32>
      %c0_100 = arith.constant 0 : index
      %c8_101 = arith.constant 8 : index
      %159 = vector.load %arg9[%c0_100, %c8_101] : memref<8x32xf32, #tpu.memory_space<vmem>>, vector<8x8xf32>
      tpu.vector_store %arg9[%c0_100, %c8_101], %158 {strides = array<i32>} : memref<8x32xf32, #tpu.memory_space<vmem>>, vector<8x8xf32>,
      %c0_102 = arith.constant 0 : index
      %c16_103 = arith.constant 16 : index
      %160 = vector.load %arg9[%c0_102, %c16_103] : memref<8x32xf32, #tpu.memory_space<vmem>>, vector<8x8xf32>
      %c2_104 = arith.constant 2 : index
      %c0_105 = arith.constant 0 : index
      %c0_106 = arith.constant 0 : index
      %161 = vector.load %arg8[%c2_104, %c0_105, %c0_106] : memref<4x8x1xf32, #tpu.memory_space<vmem>>, vector<1x8x1xf32>
      %162 = vector.shape_cast %161 : vector<1x8x1xf32> to vector<8x1xf32>
      %163 = vector.broadcast %162 : vector<8x1xf32> to vector<8x8xf32>
      %164 = arith.divf %160, %163 : vector<8x8xf32>
      %c0_107 = arith.constant 0 : index
      %c16_108 = arith.constant 16 : index
      %165 = vector.load %arg9[%c0_107, %c16_108] : memref<8x32xf32, #tpu.memory_space<vmem>>, vector<8x8xf32>
      tpu.vector_store %arg9[%c0_107, %c16_108], %164 {strides = array<i32>} : memref<8x32xf32, #tpu.memory_space<vmem>>, vector<8x8xf32>,
      %c0_109 = arith.constant 0 : index
      %c24_110 = arith.constant 24 : index
      %166 = vector.load %arg9[%c0_109, %c24_110] : memref<8x32xf32, #tpu.memory_space<vmem>>, vector<8x8xf32>
      %c3_111 = arith.constant 3 : index
      %c0_112 = arith.constant 0 : index
      %c0_113 = arith.constant 0 : index
      %167 = vector.load %arg8[%c3_111, %c0_112, %c0_113] : memref<4x8x1xf32, #tpu.memory_space<vmem>>, vector<1x8x1xf32>
      %168 = vector.shape_cast %167 : vector<1x8x1xf32> to vector<8x1xf32>
      %169 = vector.broadcast %168 : vector<8x1xf32> to vector<8x8xf32>
      %170 = arith.divf %166, %169 : vector<8x8xf32>
      %c0_114 = arith.constant 0 : index
      %c24_115 = arith.constant 24 : index
      %171 = vector.load %arg9[%c0_114, %c24_115] : memref<8x32xf32, #tpu.memory_space<vmem>>, vector<8x8xf32>
      tpu.vector_store %arg9[%c0_114, %c24_115], %170 {strides = array<i32>} : memref<8x32xf32, #tpu.memory_space<vmem>>, vector<8x8xf32>,
      %c0_116 = arith.constant 0 : index
      %c0_117 = arith.constant 0 : index
      %172 = vector.load %arg9[%c0_116, %c0_117] : memref<8x32xf32, #tpu.memory_space<vmem>>, vector<8x32xf32>
      %c0_118 = arith.constant 0 : index
      %c0_119 = arith.constant 0 : index
      %c0_120 = arith.constant 0 : index
      %173 = vector.load %arg6[%c0_118, %c0_119, %c0_120] : memref<1x8x32xf32, #tpu.memory_space<vmem>>, vector<1x8x32xf32>
      %174 = vector.shape_cast %173 : vector<1x8x32xf32> to vector<8x32xf32>
      %175 = vector.shape_cast %172 : vector<8x32xf32> to vector<1x8x32xf32>
      tpu.vector_store %arg6[%c0_118, %c0_119, %c0_120], %175 {strides = array<i32>} : memref<1x8x32xf32, #tpu.memory_space<vmem>>, vector<1x8x32xf32>,
    } else {
    }
    return
  }
  func.func @transform_0(%arg0: i32, %arg1: i32, %arg2: i32) -> (i32, i32, i32) {
    %c0_i32 = arith.constant 0 : i32
    %c0_i32_0 = arith.constant 0 : i32
    return %arg0, %arg1, %c0_i32 : i32, i32, i32
  }
  func.func @transform_1(%arg0: i32, %arg1: i32, %arg2: i32) -> (i32, i32, i32) {
    %c0_i32 = arith.constant 0 : i32
    %c0_i32_0 = arith.constant 0 : i32
    return %arg0, %arg2, %c0_i32 : i32, i32, i32
  }
  func.func @transform_2(%arg0: i32, %arg1: i32, %arg2: i32) -> (i32, i32, i32) {
    %c0_i32 = arith.constant 0 : i32
    %c0_i32_0 = arith.constant 0 : i32
    return %arg0, %arg2, %c0_i32 : i32, i32, i32
  }
  func.func @transform_3(%arg0: i32, %arg1: i32, %arg2: i32) -> (i32, i32, i32) {
    %c0_i32 = arith.constant 0 : i32
    %c0_i32_0 = arith.constant 0 : i32
    return %arg0, %arg1, %c0_i32 : i32, i32, i32
  }
}

module attributes {stable_mosaic.version = 11 : i64} {
  func.func @_linear_residual_ln_kernel(%arg0: i32, %arg1: i32, %arg2: memref<16x64xf32, #tpu.memory_space<vmem>>, %arg3: memref<64x32xf32, #tpu.memory_space<vmem>>, %arg4: memref<1x32xf32, #tpu.memory_space<vmem>>, %arg5: memref<16x32xf32, #tpu.memory_space<vmem>>, %arg6: memref<1x32xf32, #tpu.memory_space<vmem>>, %arg7: memref<1x32xf32, #tpu.memory_space<vmem>>, %arg8: memref<16x32xf32, #tpu.memory_space<vmem>>, %arg9: memref<16x32xf32, #tpu.memory_space<vmem>>) attributes {dimension_semantics = [#tpu.dimension_semantics<parallel>, #tpu.dimension_semantics<arbitrary>], iteration_bounds = array<i64: 1, 1>, scalar_prefetch = 0 : i64, scratch_operands = 1 : i64, tpu.core_type = #tpu.core_type<tc>, window_params = [{transform_indices = @transform_0, window_bounds = array<i64: 16, 64>}, {transform_indices = @transform_1, window_bounds = array<i64: 64, 32>}, {pipeline_mode = #tpu.pipeline_mode<synchronous>, transform_indices = @transform_2, window_bounds = array<i64: 1, 32>}, {transform_indices = @transform_3, window_bounds = array<i64: 16, 32>}, {pipeline_mode = #tpu.pipeline_mode<synchronous>, transform_indices = @transform_4, window_bounds = array<i64: 1, 32>}, {pipeline_mode = #tpu.pipeline_mode<synchronous>, transform_indices = @transform_5, window_bounds = array<i64: 1, 32>}, {transform_indices = @transform_6, window_bounds = array<i64: 16, 32>}]} {
    %c0_i32 = arith.constant 0 : i32
    %0 = arith.cmpi eq, %arg1, %c0_i32 : i32
    %1 = arith.extui %0 : i1 to i32
    %c0_i32_0 = arith.constant 0 : i32
    %2 = arith.cmpi ne, %1, %c0_i32_0 : i32
    scf.if %2 {
      %cst_10 = arith.constant 0.000000e+00 : f32
      %12 = vector.broadcast %cst_10 : f32 to vector<16x32xf32>
      %c0_11 = arith.constant 0 : index
      %c0_12 = arith.constant 0 : index
      %13 = vector.load %arg9[%c0_11, %c0_12] : memref<16x32xf32, #tpu.memory_space<vmem>>, vector<16x32xf32>
      tpu.vector_store %arg9[%c0_11, %c0_12], %12 {strides = array<i32>} : memref<16x32xf32, #tpu.memory_space<vmem>>, vector<16x32xf32>,
    } else {
    }
    %c0 = arith.constant 0 : index
    %c0_1 = arith.constant 0 : index
    %3 = vector.load %arg9[%c0, %c0_1] : memref<16x32xf32, #tpu.memory_space<vmem>>, vector<16x32xf32>
    %c0_2 = arith.constant 0 : index
    %c0_3 = arith.constant 0 : index
    %4 = vector.load %arg2[%c0_2, %c0_3] : memref<16x64xf32, #tpu.memory_space<vmem>>, vector<16x64xf32>
    %c0_4 = arith.constant 0 : index
    %c0_5 = arith.constant 0 : index
    %5 = vector.load %arg3[%c0_4, %c0_5] : memref<64x32xf32, #tpu.memory_space<vmem>>, vector<64x32xf32>
    %cst = arith.constant dense<0.000000e+00> : vector<16x32xf32>
    %6 = tpu.matmul %4, %5, %cst {dimension_numbers = #tpu.dot_dimension_numbers<[1], [0], [0], [1], [0, 0, 1, 1], [], []>} : vector<16x64xf32>, vector<64x32xf32>, vector<16x32xf32> -> vector<16x32xf32>
    %7 = arith.addf %3, %6 : vector<16x32xf32>
    %c0_6 = arith.constant 0 : index
    %c0_7 = arith.constant 0 : index
    %8 = vector.load %arg9[%c0_6, %c0_7] : memref<16x32xf32, #tpu.memory_space<vmem>>, vector<16x32xf32>
    tpu.vector_store %arg9[%c0_6, %c0_7], %7 {strides = array<i32>} : memref<16x32xf32, #tpu.memory_space<vmem>>, vector<16x32xf32>,
    %c0_i32_8 = arith.constant 0 : i32
    %9 = arith.cmpi eq, %arg1, %c0_i32_8 : i32
    %10 = arith.extui %9 : i1 to i32
    %c0_i32_9 = arith.constant 0 : i32
    %11 = arith.cmpi ne, %10, %c0_i32_9 : i32
    scf.if %11 {
      %c0_10 = arith.constant 0 : index
      %c0_11 = arith.constant 0 : index
      %12 = vector.load %arg9[%c0_10, %c0_11] : memref<16x32xf32, #tpu.memory_space<vmem>>, vector<16x32xf32>
      %c0_12 = arith.constant 0 : index
      %c0_13 = arith.constant 0 : index
      %13 = vector.load %arg4[%c0_12, %c0_13] : memref<1x32xf32, #tpu.memory_space<vmem>>, vector<1x32xf32>
      %14 = vector.broadcast %13 : vector<1x32xf32> to vector<16x32xf32>
      %15 = arith.addf %12, %14 : vector<16x32xf32>
      %c0_14 = arith.constant 0 : index
      %c0_15 = arith.constant 0 : index
      %16 = vector.load %arg5[%c0_14, %c0_15] : memref<16x32xf32, #tpu.memory_space<vmem>>, vector<16x32xf32>
      %17 = arith.addf %15, %16 : vector<16x32xf32>
      %cst_16 = arith.constant dense<0.000000e+00> : vector<16xf32>
      %18 = vector.multi_reduction <add>, %17, %cst_16 [1] : vector<16x32xf32> to vector<16xf32>
      %19 = vector.shape_cast %18 : vector<16xf32> to vector<16x1xf32>
      %cst_17 = arith.constant 3.200000e+01 : f32
      %20 = vector.broadcast %cst_17 : f32 to vector<16x1xf32>
      %21 = arith.divf %19, %20 : vector<16x1xf32>
      %22 = vector.broadcast %21 : vector<16x1xf32> to vector<16x32xf32>
      %23 = arith.subf %17, %22 : vector<16x32xf32>
      %24 = arith.mulf %23, %23 : vector<16x32xf32>
      %cst_18 = arith.constant dense<0.000000e+00> : vector<16xf32>
      %25 = vector.multi_reduction <add>, %24, %cst_18 [1] : vector<16x32xf32> to vector<16xf32>
      %26 = vector.shape_cast %25 : vector<16xf32> to vector<16x1xf32>
      %cst_19 = arith.constant 3.200000e+01 : f32
      %27 = vector.broadcast %cst_19 : f32 to vector<16x1xf32>
      %28 = arith.divf %26, %27 : vector<16x1xf32>
      %cst_20 = arith.constant 9.99999974E-6 : f32
      %29 = vector.broadcast %cst_20 : f32 to vector<16x1xf32>
      %30 = arith.addf %28, %29 : vector<16x1xf32>
      %31 = math.rsqrt %30 : vector<16x1xf32>
      %32 = vector.broadcast %31 : vector<16x1xf32> to vector<16x32xf32>
      %33 = arith.mulf %23, %32 : vector<16x32xf32>
      %c0_21 = arith.constant 0 : index
      %c0_22 = arith.constant 0 : index
      %34 = vector.load %arg6[%c0_21, %c0_22] : memref<1x32xf32, #tpu.memory_space<vmem>>, vector<1x32xf32>
      %35 = vector.broadcast %34 : vector<1x32xf32> to vector<16x32xf32>
      %36 = arith.mulf %33, %35 : vector<16x32xf32>
      %c0_23 = arith.constant 0 : index
      %c0_24 = arith.constant 0 : index
      %37 = vector.load %arg7[%c0_23, %c0_24] : memref<1x32xf32, #tpu.memory_space<vmem>>, vector<1x32xf32>
      %38 = vector.broadcast %37 : vector<1x32xf32> to vector<16x32xf32>
      %39 = arith.addf %36, %38 : vector<16x32xf32>
      %c0_25 = arith.constant 0 : index
      %c0_26 = arith.constant 0 : index
      %40 = vector.load %arg8[%c0_25, %c0_26] : memref<16x32xf32, #tpu.memory_space<vmem>>, vector<16x32xf32>
      tpu.vector_store %arg8[%c0_25, %c0_26], %39 {strides = array<i32>} : memref<16x32xf32, #tpu.memory_space<vmem>>, vector<16x32xf32>,
    } else {
    }
    return
  }
  func.func @transform_0(%arg0: i32, %arg1: i32) -> (i32, i32) {
    %c0_i32 = arith.constant 0 : i32
    return %arg0, %arg1 : i32, i32
  }
  func.func @transform_1(%arg0: i32, %arg1: i32) -> (i32, i32) {
    %c0_i32 = arith.constant 0 : i32
    %c0_i32_0 = arith.constant 0 : i32
    return %arg1, %c0_i32 : i32, i32
  }
  func.func @transform_2(%arg0: i32, %arg1: i32) -> (i32, i32) {
    %c0_i32 = arith.constant 0 : i32
    %c0_i32_0 = arith.constant 0 : i32
    %c0_i32_1 = arith.constant 0 : i32
    return %c0_i32, %c0_i32_0 : i32, i32
  }
  func.func @transform_3(%arg0: i32, %arg1: i32) -> (i32, i32) {
    %c0_i32 = arith.constant 0 : i32
    %c0_i32_0 = arith.constant 0 : i32
    return %arg0, %c0_i32 : i32, i32
  }
  func.func @transform_4(%arg0: i32, %arg1: i32) -> (i32, i32) {
    %c0_i32 = arith.constant 0 : i32
    %c0_i32_0 = arith.constant 0 : i32
    %c0_i32_1 = arith.constant 0 : i32
    return %c0_i32, %c0_i32_0 : i32, i32
  }
  func.func @transform_5(%arg0: i32, %arg1: i32) -> (i32, i32) {
    %c0_i32 = arith.constant 0 : i32
    %c0_i32_0 = arith.constant 0 : i32
    %c0_i32_1 = arith.constant 0 : i32
    return %c0_i32, %c0_i32_0 : i32, i32
  }
  func.func @transform_6(%arg0: i32, %arg1: i32) -> (i32, i32) {
    %c0_i32 = arith.constant 0 : i32
    %c0_i32_0 = arith.constant 0 : i32
    return %arg0, %c0_i32 : i32, i32
  }
}

module attributes {stable_mosaic.version = 11 : i64} {
  func.func @_linear_residual_ln_kernel(%arg0: i32, %arg1: i32, %arg2: memref<16x64xf32, #tpu.memory_space<vmem>>, %arg3: memref<64x32xf32, #tpu.memory_space<vmem>>, %arg4: memref<1x32xf32, #tpu.memory_space<vmem>>, %arg5: memref<16x32xf32, #tpu.memory_space<vmem>>, %arg6: memref<1x32xf32, #tpu.memory_space<vmem>>, %arg7: memref<1x32xf32, #tpu.memory_space<vmem>>, %arg8: memref<16x32xf32, #tpu.memory_space<vmem>>, %arg9: memref<16x32xf32, #tpu.memory_space<vmem>>) attributes {dimension_semantics = [#tpu.dimension_semantics<parallel>, #tpu.dimension_semantics<arbitrary>], iteration_bounds = array<i64: 1, 1>, scalar_prefetch = 0 : i64, scratch_operands = 1 : i64, tpu.core_type = #tpu.core_type<tc>, window_params = [{transform_indices = @transform_0, window_bounds = array<i64: 16, 64>}, {transform_indices = @transform_1, window_bounds = array<i64: 64, 32>}, {pipeline_mode = #tpu.pipeline_mode<synchronous>, transform_indices = @transform_2, window_bounds = array<i64: 1, 32>}, {transform_indices = @transform_3, window_bounds = array<i64: 16, 32>}, {pipeline_mode = #tpu.pipeline_mode<synchronous>, transform_indices = @transform_4, window_bounds = array<i64: 1, 32>}, {pipeline_mode = #tpu.pipeline_mode<synchronous>, transform_indices = @transform_5, window_bounds = array<i64: 1, 32>}, {transform_indices = @transform_6, window_bounds = array<i64: 16, 32>}]} {
    %c0_i32 = arith.constant 0 : i32
    %0 = arith.cmpi eq, %arg1, %c0_i32 : i32
    %1 = arith.extui %0 : i1 to i32
    %c0_i32_0 = arith.constant 0 : i32
    %2 = arith.cmpi ne, %1, %c0_i32_0 : i32
    scf.if %2 {
      %cst_10 = arith.constant 0.000000e+00 : f32
      %12 = vector.broadcast %cst_10 : f32 to vector<16x32xf32>
      %c0_11 = arith.constant 0 : index
      %c0_12 = arith.constant 0 : index
      %13 = vector.load %arg9[%c0_11, %c0_12] : memref<16x32xf32, #tpu.memory_space<vmem>>, vector<16x32xf32>
      tpu.vector_store %arg9[%c0_11, %c0_12], %12 {strides = array<i32>} : memref<16x32xf32, #tpu.memory_space<vmem>>, vector<16x32xf32>,
    } else {
    }
    %c0 = arith.constant 0 : index
    %c0_1 = arith.constant 0 : index
    %3 = vector.load %arg9[%c0, %c0_1] : memref<16x32xf32, #tpu.memory_space<vmem>>, vector<16x32xf32>
    %c0_2 = arith.constant 0 : index
    %c0_3 = arith.constant 0 : index
    %4 = vector.load %arg2[%c0_2, %c0_3] : memref<16x64xf32, #tpu.memory_space<vmem>>, vector<16x64xf32>
    %c0_4 = arith.constant 0 : index
    %c0_5 = arith.constant 0 : index
    %5 = vector.load %arg3[%c0_4, %c0_5] : memref<64x32xf32, #tpu.memory_space<vmem>>, vector<64x32xf32>
    %cst = arith.constant dense<0.000000e+00> : vector<16x32xf32>
    %6 = tpu.matmul %4, %5, %cst {dimension_numbers = #tpu.dot_dimension_numbers<[1], [0], [0], [1], [0, 0, 1, 1], [], []>} : vector<16x64xf32>, vector<64x32xf32>, vector<16x32xf32> -> vector<16x32xf32>
    %7 = arith.addf %3, %6 : vector<16x32xf32>
    %c0_6 = arith.constant 0 : index
    %c0_7 = arith.constant 0 : index
    %8 = vector.load %arg9[%c0_6, %c0_7] : memref<16x32xf32, #tpu.memory_space<vmem>>, vector<16x32xf32>
    tpu.vector_store %arg9[%c0_6, %c0_7], %7 {strides = array<i32>} : memref<16x32xf32, #tpu.memory_space<vmem>>, vector<16x32xf32>,
    %c0_i32_8 = arith.constant 0 : i32
    %9 = arith.cmpi eq, %arg1, %c0_i32_8 : i32
    %10 = arith.extui %9 : i1 to i32
    %c0_i32_9 = arith.constant 0 : i32
    %11 = arith.cmpi ne, %10, %c0_i32_9 : i32
    scf.if %11 {
      %c0_10 = arith.constant 0 : index
      %c0_11 = arith.constant 0 : index
      %12 = vector.load %arg9[%c0_10, %c0_11] : memref<16x32xf32, #tpu.memory_space<vmem>>, vector<16x32xf32>
      %c0_12 = arith.constant 0 : index
      %c0_13 = arith.constant 0 : index
      %13 = vector.load %arg4[%c0_12, %c0_13] : memref<1x32xf32, #tpu.memory_space<vmem>>, vector<1x32xf32>
      %14 = vector.broadcast %13 : vector<1x32xf32> to vector<16x32xf32>
      %15 = arith.addf %12, %14 : vector<16x32xf32>
      %c0_14 = arith.constant 0 : index
      %c0_15 = arith.constant 0 : index
      %16 = vector.load %arg5[%c0_14, %c0_15] : memref<16x32xf32, #tpu.memory_space<vmem>>, vector<16x32xf32>
      %17 = arith.addf %15, %16 : vector<16x32xf32>
      %cst_16 = arith.constant dense<0.000000e+00> : vector<16xf32>
      %18 = vector.multi_reduction <add>, %17, %cst_16 [1] : vector<16x32xf32> to vector<16xf32>
      %19 = vector.shape_cast %18 : vector<16xf32> to vector<16x1xf32>
      %cst_17 = arith.constant 3.200000e+01 : f32
      %20 = vector.broadcast %cst_17 : f32 to vector<16x1xf32>
      %21 = arith.divf %19, %20 : vector<16x1xf32>
      %22 = vector.broadcast %21 : vector<16x1xf32> to vector<16x32xf32>
      %23 = arith.subf %17, %22 : vector<16x32xf32>
      %24 = arith.mulf %23, %23 : vector<16x32xf32>
      %cst_18 = arith.constant dense<0.000000e+00> : vector<16xf32>
      %25 = vector.multi_reduction <add>, %24, %cst_18 [1] : vector<16x32xf32> to vector<16xf32>
      %26 = vector.shape_cast %25 : vector<16xf32> to vector<16x1xf32>
      %cst_19 = arith.constant 3.200000e+01 : f32
      %27 = vector.broadcast %cst_19 : f32 to vector<16x1xf32>
      %28 = arith.divf %26, %27 : vector<16x1xf32>
      %cst_20 = arith.constant 9.99999974E-6 : f32
      %29 = vector.broadcast %cst_20 : f32 to vector<16x1xf32>
      %30 = arith.addf %28, %29 : vector<16x1xf32>
      %31 = math.rsqrt %30 : vector<16x1xf32>
      %32 = vector.broadcast %31 : vector<16x1xf32> to vector<16x32xf32>
      %33 = arith.mulf %23, %32 : vector<16x32xf32>
      %c0_21 = arith.constant 0 : index
      %c0_22 = arith.constant 0 : index
      %34 = vector.load %arg6[%c0_21, %c0_22] : memref<1x32xf32, #tpu.memory_space<vmem>>, vector<1x32xf32>
      %35 = vector.broadcast %34 : vector<1x32xf32> to vector<16x32xf32>
      %36 = arith.mulf %33, %35 : vector<16x32xf32>
      %c0_23 = arith.constant 0 : index
      %c0_24 = arith.constant 0 : index
      %37 = vector.load %arg7[%c0_23, %c0_24] : memref<1x32xf32, #tpu.memory_space<vmem>>, vector<1x32xf32>
      %38 = vector.broadcast %37 : vector<1x32xf32> to vector<16x32xf32>
      %39 = arith.addf %36, %38 : vector<16x32xf32>
      %c0_25 = arith.constant 0 : index
      %c0_26 = arith.constant 0 : index
      %40 = vector.load %arg8[%c0_25, %c0_26] : memref<16x32xf32, #tpu.memory_space<vmem>>, vector<16x32xf32>
      tpu.vector_store %arg8[%c0_25, %c0_26], %39 {strides = array<i32>} : memref<16x32xf32, #tpu.memory_space<vmem>>, vector<16x32xf32>,
    } else {
    }
    return
  }
  func.func @transform_0(%arg0: i32, %arg1: i32) -> (i32, i32) {
    %c0_i32 = arith.constant 0 : i32
    return %arg0, %arg1 : i32, i32
  }
  func.func @transform_1(%arg0: i32, %arg1: i32) -> (i32, i32) {
    %c0_i32 = arith.constant 0 : i32
    %c0_i32_0 = arith.constant 0 : i32
    return %arg1, %c0_i32 : i32, i32
  }
  func.func @transform_2(%arg0: i32, %arg1: i32) -> (i32, i32) {
    %c0_i32 = arith.constant 0 : i32
    %c0_i32_0 = arith.constant 0 : i32
    %c0_i32_1 = arith.constant 0 : i32
    return %c0_i32, %c0_i32_0 : i32, i32
  }
  func.func @transform_3(%arg0: i32, %arg1: i32) -> (i32, i32) {
    %c0_i32 = arith.constant 0 : i32
    %c0_i32_0 = arith.constant 0 : i32
    return %arg0, %c0_i32 : i32, i32
  }
  func.func @transform_4(%arg0: i32, %arg1: i32) -> (i32, i32) {
    %c0_i32 = arith.constant 0 : i32
    %c0_i32_0 = arith.constant 0 : i32
    %c0_i32_1 = arith.constant 0 : i32
    return %c0_i32, %c0_i32_0 : i32, i32
  }
  func.func @transform_5(%arg0: i32, %arg1: i32) -> (i32, i32) {
    %c0_i32 = arith.constant 0 : i32
    %c0_i32_0 = arith.constant 0 : i32
    %c0_i32_1 = arith.constant 0 : i32
    return %c0_i32, %c0_i32_0 : i32, i32
  }
  func.func @transform_6(%arg0: i32, %arg1: i32) -> (i32, i32) {
    %c0_i32 = arith.constant 0 : i32
    %c0_i32_0 = arith.constant 0 : i32
    return %arg0, %c0_i32 : i32, i32
  }
}

</mosaic_0001>

<llo_original>
// kernel: transformer_encoder_forward.19
$region0: #{transformer_encoder_forward.19}
  #allocation0 [shape = 'u32[]', space=smem, size = 0x4, offset = 0x4, fixed_abs, tag = 'smem constant byte address 0x4 - core index']
  #allocation1 [shape = 'u32[144,128]{1,0:T(1,128)}', space=vmem, size = 0x12000, scoped, tag = 'internal scratch']
  #allocation2 [shape = 'f32[16,64]{1,0:T(8,128)}', space=vmem, size = 0x2000, scoped, tag = 'scratch operand']
  %s0 = inlined_call_operand.vmem [shape: f32[16,32], index: 0, kind: input, shape index: {}]
  %s1 = inlined_call_operand.vmem [shape: f32[32,64], index: 1, kind: input, shape index: {}]
  %s2 = inlined_call_operand.vmem [shape: f32[1,64], index: 2, kind: input, shape index: {}]
  %s3 = inlined_call_operand.vmem [shape: f32[16,64], index: 3, kind: output, shape index: {}]
  %s4 = sld [smem:[#allocation0]]
  $region30: #{transformer_encoder_forward.19} parent=0
    _
  %s6 = ssub.s32 1, %s4
  %s7 = scalar_select 0, %s6, %s4
  // Predicated region
  $region2: #{transformer_encoder_forward.19} parent=0 // pred_check
    _
  $region3: #{transformer_encoder_forward.19} parent=0 // pred_check_branch
    %9 = sbr.rel (0) target = $region5
  $region4: #{transformer_encoder_forward.19} parent=0 // pred_region
    _
  $region5: #{transformer_encoder_forward.19} parent=0 // pred_fallthru
    _
  // Predicated region
  $region6: #{transformer_encoder_forward.19} parent=0 // pred_check
    _
  $region7: #{transformer_encoder_forward.19} parent=0 // pred_check_branch
    %11 = sbr.rel (0) target = $region9
  $region8: #{transformer_encoder_forward.19} parent=0 // pred_region
    _
  $region9: #{transformer_encoder_forward.19} parent=0 // pred_fallthru
    _
  // Predicated region
  $region10: #{transformer_encoder_forward.19} parent=0 // pred_check
    _
  $region11: #{transformer_encoder_forward.19} parent=0 // pred_check_branch
    %13 = sbr.rel (0) target = $region13
  $region12: #{transformer_encoder_forward.19} parent=0 // pred_region
    _
  $region13: #{transformer_encoder_forward.19} parent=0 // pred_fallthru
    _
  %p14 = scmp.eq.s32.totalorder 0, 0
  // Predicated region
  $region14: #{transformer_encoder_forward.19} parent=0 // pred_check
    %p15 = pneg %p14
  $region15: #{transformer_encoder_forward.19} parent=0 // pred_check_branch
    %17 = sbr.rel (%p15) target = $region17
  $region16: #{transformer_encoder_forward.19} parent=0 // pred_region
    %vm18 = vcmask 523264
    %19 = vst.msk [vmem:[#allocation2] sm:$0xff] %vm18, 0.0
    %20 = vst.msk [vmem:[#allocation2 + $0x8] sm:$0xff] %vm18, 0.0
  $region17: #{transformer_encoder_forward.19} parent=0 // pred_fallthru
    _
  %v21 = vld [vmem:[#allocation2] sm:$0xff]
  %v22 = vld [vmem:[#allocation2 + $0x8] sm:$0xff]
  %v23 = vld [vmem:[%s0] sm:$0xff]
  %v24 = vld [vmem:[%s0 + $0x8] sm:$0xff]
  %v25 = vld [vmem:[%s1] sm:$0xff]
  %v26 = vld [vmem:[%s1 + $0x8] sm:$0xff]
  %v27 = vld [vmem:[%s1 + $0x10] sm:$0xff]
  %v28 = vld [vmem:[%s1 + $0x18] sm:$0xff]
  %vm29 = vcmask 261120
  %v31 = vsel %vm29, %v23, 0
  %v34 = vsel %vm29, %v24, 0
  %36 = vmatprep.subr.mxu0 0.0
  %37 = vmatpush1.msra.mxu0 %v25
  %38 = vmatprep.subr.mxu0 0.0
  %39 = vmatpush1.msra.mxu0 %v26
  %40 = vmatprep.subr.mxu0 0.0
  %41 = vmatpush1.msra.mxu0 %v27
  %42 = vmatprep.subr.mxu0 0.0
  %43 = vmatpush1.msra.mxu0 %v28
  %44 = vmatprep.subr.mxu0 0.0
  %45 = vmatpush1.msra.mxu0 0.0
  %46 = vmatprep.subr.mxu0 0.0
  %47 = vmatpush1.msra.mxu0 0.0
  %48 = vmatprep.subr.mxu0 0.0
  %49 = vmatpush1.msra.mxu0 0.0
  %50 = vmatprep.subr.mxu0 0.0
  %51 = vmatpush1.msra.mxu0 0.0
  %52 = vmatprep.subr.mxu0 0.0
  %53 = vmatpush1.msra.mxu0 0.0
  %54 = vmatprep.subr.mxu0 0.0
  %55 = vmatpush1.msra.mxu0 0.0
  %56 = vmatprep.subr.mxu0 0.0
  %57 = vmatpush1.msra.mxu0 0.0
  %58 = vmatprep.subr.mxu0 0.0
  %59 = vmatpush1.msra.mxu0 0.0
  %60 = vmatprep.subr.mxu0 0.0
  %61 = vmatpush1.msra.mxu0 0.0
  %62 = vmatprep.subr.mxu0 0.0
  %63 = vmatpush1.msra.mxu0 0.0
  %64 = vmatprep.subr.mxu0 0.0
  %65 = vmatpush1.msra.mxu0 0.0
  %66 = vmatprep.subr.mxu0 0.0
  %67 = vmatpush1.msra.mxu0 0.0
  %68 = vmatprep.subr.mxu0 0.0
  %69 = vmatpush1.msra.mxu0 0.0
  %70 = vmatprep.subr.mxu0 0.0
  %71 = vmatpush1.msra.mxu0 0.0
  %72 = vmatprep.subr.mxu0 0.0
  %73 = vmatpush1.msra.mxu0 0.0
  %74 = vmatprep.subr.mxu0 0.0
  %75 = vmatpush1.msra.mxu0 0.0
  %76 = vmatprep.subr.mxu0 0.0
  %77 = vmatpush1.msra.mxu0 0.0
  %78 = vmatprep.subr.mxu0 0.0
  %79 = vmatpush1.msra.mxu0 0.0
  %80 = vmatprep.subr.mxu0 0.0
  %81 = vmatpush1.msra.mxu0 0.0
  %82 = vmatprep.subr.mxu0 0.0
  %83 = vmatpush1.msra.mxu0 0.0
  %84 = vmatprep.subr.mxu0 0.0
  %85 = vmatpush1.msra.mxu0 0.0
  %86 = vmatprep.subr.mxu0 0.0
  %87 = vmatpush1.msra.mxu0 0.0
  %88 = vmatprep.subr.mxu0 0.0
  %89 = vmatpush1.msra.mxu0 0.0
  %90 = vmatprep.subr.mxu0 0.0
  %91 = vmatpush1.msra.mxu0 0.0
  %92 = vmatprep.subr.mxu0 0.0
  %93 = vmatpush1.msra.mxu0 0.0
  %94 = vmatprep.subr.mxu0 0.0
  %95 = vmatpush1.msra.mxu0 0.0
  %96 = vmatprep.subr.mxu0 0.0
  %97 = vmatpush1.msra.mxu0 0.0
  %98 = vmatprep.subr.mxu0 0.0
  %99 = vmatpush1.msra.mxu0 0.0
  %100 = vmatprep.mubr.f32.mxu0 0.0
  %101 = vmatmul.mubr.f32.gmra.mrb[0].mxu0 %v31
  %v102 = vpop.f32.mrb[0].mxu0
  %v103 = vadd.f32 0.0, %v102
  %v104 = vpop.f32.mrb[0].mxu0
  %105 = vmatprep.mubr.f32.mxu0 0.0
  %106 = vmatmul.mubr.f32.gmra.mrb[0].mxu0 %v34
  %v107 = vpop.f32.mrb[0].mxu0
  %v108 = vadd.f32 0.0, %v107
  %v109 = vpop.f32.mrb[0].mxu0
  %110 = vdwg.mxu0
  %v111 = vadd.f32 %v21, %v103
  %v112 = vadd.f32 %v22, %v108
  %vm113 = vcmask 523264
  %114 = vst.msk [vmem:[#allocation2] sm:$0xff] %vm113, %v111
  %115 = vst.msk [vmem:[#allocation2 + $0x8] sm:$0xff] %vm113, %v112
  // Predicated region
  $region18: #{transformer_encoder_forward.19} parent=0 // pred_check
    %p116 = pneg %p14
  $region19: #{transformer_encoder_forward.19} parent=0 // pred_check_branch
    %118 = sbr.rel (%p116) target = $region21
  $region20: #{transformer_encoder_forward.19} parent=0 // pred_region
    %v119 = vld [vmem:[#allocation2] sm:$0xff]
    %v120 = vld [vmem:[#allocation2 + $0x8] sm:$0xff]
    %v121 = vld [vmem:[%s2] sm:$0x1]
    %v123 = vlaneseq
    %v124 = vshrl.u32 %v123, 7
    %v125 = vsub.s32 0, %v124
    %v126 = vrot.slane %v121, %v125
    %v128 = vadd.f32 %v119, %v126
    %v129 = vadd.f32 %v120, %v126
    %v130 = vmax.f32 %v128, 0.0
    %v131 = vmax.f32 %v129, 0.0
    %132 = vst.msk [vmem:[%s3] sm:$0xff] %vm113, %v130
    %133 = vst.msk [vmem:[%s3 + $0x8] sm:$0xff] %vm113, %v131
  $region21: #{transformer_encoder_forward.19} parent=0 // pred_fallthru
    _
  // Predicated region
  $region22: #{transformer_encoder_forward.19} parent=0 // pred_check
    _
  $region23: #{transformer_encoder_forward.19} parent=0 // pred_check_branch
    %135 = sbr.rel (0) target = $region25
  $region24: #{transformer_encoder_forward.19} parent=0 // pred_region
    _
  $region25: #{transformer_encoder_forward.19} parent=0 // pred_fallthru
    _
  // Predicated region
  $region26: #{transformer_encoder_forward.19} parent=0 // pred_check
    _
  $region27: #{transformer_encoder_forward.19} parent=0 // pred_check_branch
    %137 = sbr.rel (0) target = $region29
  $region28: #{transformer_encoder_forward.19} parent=0 // pred_region
    _
  $region29: #{transformer_encoder_forward.19} parent=0 // pred_fallthru
    _

// kernel: transformer_encoder_forward.15
$region0: #{transformer_encoder_forward.15}
  #allocation0 [shape = 'u32[]', space=smem, size = 0x4, offset = 0x4, fixed_abs, tag = 'smem constant byte address 0x4 - core index']
  #allocation1 [shape = 'u32[144,128]{1,0:T(1,128)}', space=vmem, size = 0x12000, scoped, tag = 'internal scratch']
  #allocation2 [shape = 'f32[16,32]{1,0:T(8,128)}', space=vmem, size = 0x2000, scoped, tag = 'scratch operand']
  %s0 = inlined_call_operand.vmem [shape: f32[16,32], index: 0, kind: input, shape index: {}]
  %s1 = inlined_call_operand.vmem [shape: f32[32,32], index: 1, kind: input, shape index: {}]
  %s2 = inlined_call_operand.vmem [shape: f32[1,32], index: 2, kind: input, shape index: {}]
  %s3 = inlined_call_operand.vmem [shape: f32[16,32], index: 3, kind: output, shape index: {}]
  %s4 = sld [smem:[#allocation0]]
  $region30: #{transformer_encoder_forward.15} parent=0
    _
  %s6 = ssub.s32 1, %s4
  %s7 = scalar_select 0, %s6, %s4
  // Predicated region
  $region2: #{transformer_encoder_forward.15} parent=0 // pred_check
    _
  $region3: #{transformer_encoder_forward.15} parent=0 // pred_check_branch
    %9 = sbr.rel (0) target = $region5
  $region4: #{transformer_encoder_forward.15} parent=0 // pred_region
    _
  $region5: #{transformer_encoder_forward.15} parent=0 // pred_fallthru
    _
  // Predicated region
  $region6: #{transformer_encoder_forward.15} parent=0 // pred_check
    _
  $region7: #{transformer_encoder_forward.15} parent=0 // pred_check_branch
    %11 = sbr.rel (0) target = $region9
  $region8: #{transformer_encoder_forward.15} parent=0 // pred_region
    _
  $region9: #{transformer_encoder_forward.15} parent=0 // pred_fallthru
    _
  // Predicated region
  $region10: #{transformer_encoder_forward.15} parent=0 // pred_check
    _
  $region11: #{transformer_encoder_forward.15} parent=0 // pred_check_branch
    %13 = sbr.rel (0) target = $region13
  $region12: #{transformer_encoder_forward.15} parent=0 // pred_region
    _
  $region13: #{transformer_encoder_forward.15} parent=0 // pred_fallthru
    _
  %p14 = scmp.eq.s32.totalorder 0, 0
  // Predicated region
  $region14: #{transformer_encoder_forward.15} parent=0 // pred_check
    %p15 = pneg %p14
  $region15: #{transformer_encoder_forward.15} parent=0 // pred_check_branch
    %17 = sbr.rel (%p15) target = $region17
  $region16: #{transformer_encoder_forward.15} parent=0 // pred_region
    %vm18 = vcmask 261120
    %19 = vst.msk [vmem:[#allocation2] sm:$0xff] %vm18, 0.0
    %20 = vst.msk [vmem:[#allocation2 + $0x8] sm:$0xff] %vm18, 0.0
  $region17: #{transformer_encoder_forward.15} parent=0 // pred_fallthru
    _
  %v21 = vld [vmem:[#allocation2] sm:$0xff]
  %v22 = vld [vmem:[#allocation2 + $0x8] sm:$0xff]
  %v23 = vld [vmem:[%s0] sm:$0xff]
  %v24 = vld [vmem:[%s0 + $0x8] sm:$0xff]
  %v25 = vld [vmem:[%s1] sm:$0xff]
  %v26 = vld [vmem:[%s1 + $0x8] sm:$0xff]
  %v27 = vld [vmem:[%s1 + $0x10] sm:$0xff]
  %v28 = vld [vmem:[%s1 + $0x18] sm:$0xff]
  %vm29 = vcmask 261120
  %v31 = vsel %vm29, %v23, 0
  %v34 = vsel %vm29, %v24, 0
  %36 = vmatprep.subr.mxu0 0.0
  %37 = vmatpush1.msra.mxu0 %v25
  %38 = vmatprep.subr.mxu0 0.0
  %39 = vmatpush1.msra.mxu0 %v26
  %40 = vmatprep.subr.mxu0 0.0
  %41 = vmatpush1.msra.mxu0 %v27
  %42 = vmatprep.subr.mxu0 0.0
  %43 = vmatpush1.msra.mxu0 %v28
  %44 = vmatprep.subr.mxu0 0.0
  %45 = vmatpush1.msra.mxu0 0.0
  %46 = vmatprep.subr.mxu0 0.0
  %47 = vmatpush1.msra.mxu0 0.0
  %48 = vmatprep.subr.mxu0 0.0
  %49 = vmatpush1.msra.mxu0 0.0
  %50 = vmatprep.subr.mxu0 0.0
  %51 = vmatpush1.msra.mxu0 0.0
  %52 = vmatprep.subr.mxu0 0.0
  %53 = vmatpush1.msra.mxu0 0.0
  %54 = vmatprep.subr.mxu0 0.0
  %55 = vmatpush1.msra.mxu0 0.0
  %56 = vmatprep.subr.mxu0 0.0
  %57 = vmatpush1.msra.mxu0 0.0
  %58 = vmatprep.subr.mxu0 0.0
  %59 = vmatpush1.msra.mxu0 0.0
  %60 = vmatprep.subr.mxu0 0.0
  %61 = vmatpush1.msra.mxu0 0.0
  %62 = vmatprep.subr.mxu0 0.0
  %63 = vmatpush1.msra.mxu0 0.0
  %64 = vmatprep.subr.mxu0 0.0
  %65 = vmatpush1.msra.mxu0 0.0
  %66 = vmatprep.subr.mxu0 0.0
  %67 = vmatpush1.msra.mxu0 0.0
  %68 = vmatprep.subr.mxu0 0.0
  %69 = vmatpush1.msra.mxu0 0.0
  %70 = vmatprep.subr.mxu0 0.0
  %71 = vmatpush1.msra.mxu0 0.0
  %72 = vmatprep.subr.mxu0 0.0
  %73 = vmatpush1.msra.mxu0 0.0
  %74 = vmatprep.subr.mxu0 0.0
  %75 = vmatpush1.msra.mxu0 0.0
  %76 = vmatprep.subr.mxu0 0.0
  %77 = vmatpush1.msra.mxu0 0.0
  %78 = vmatprep.subr.mxu0 0.0
  %79 = vmatpush1.msra.mxu0 0.0
  %80 = vmatprep.subr.mxu0 0.0
  %81 = vmatpush1.msra.mxu0 0.0
  %82 = vmatprep.subr.mxu0 0.0
  %83 = vmatpush1.msra.mxu0 0.0
  %84 = vmatprep.subr.mxu0 0.0
  %85 = vmatpush1.msra.mxu0 0.0
  %86 = vmatprep.subr.mxu0 0.0
  %87 = vmatpush1.msra.mxu0 0.0
  %88 = vmatprep.subr.mxu0 0.0
  %89 = vmatpush1.msra.mxu0 0.0
  %90 = vmatprep.subr.mxu0 0.0
  %91 = vmatpush1.msra.mxu0 0.0
  %92 = vmatprep.subr.mxu0 0.0
  %93 = vmatpush1.msra.mxu0 0.0
  %94 = vmatprep.subr.mxu0 0.0
  %95 = vmatpush1.msra.mxu0 0.0
  %96 = vmatprep.subr.mxu0 0.0
  %97 = vmatpush1.msra.mxu0 0.0
  %98 = vmatprep.subr.mxu0 0.0
  %99 = vmatpush1.msra.mxu0 0.0
  %100 = vmatprep.mubr.f32.mxu0 0.0
  %101 = vmatmul.mubr.f32.gmra.mrb[0].mxu0 %v31
  %v102 = vpop.f32.mrb[0].mxu0
  %v103 = vadd.f32 0.0, %v102
  %v104 = vpop.f32.mrb[0].mxu0
  %105 = vmatprep.mubr.f32.mxu0 0.0
  %106 = vmatmul.mubr.f32.gmra.mrb[0].mxu0 %v34
  %v107 = vpop.f32.mrb[0].mxu0
  %v108 = vadd.f32 0.0, %v107
  %v109 = vpop.f32.mrb[0].mxu0
  %110 = vdwg.mxu0
  %v111 = vadd.f32 %v21, %v103
  %v112 = vadd.f32 %v22, %v108
  %113 = vst.msk [vmem:[#allocation2] sm:$0xff] %vm29, %v111
  %114 = vst.msk [vmem:[#allocation2 + $0x8] sm:$0xff] %vm29, %v112
  // Predicated region
  $region18: #{transformer_encoder_forward.15} parent=0 // pred_check
    %p115 = pneg %p14
  $region19: #{transformer_encoder_forward.15} parent=0 // pred_check_branch
    %117 = sbr.rel (%p115) target = $region21
  $region20: #{transformer_encoder_forward.15} parent=0 // pred_region
    %v118 = vld [vmem:[#allocation2] sm:$0xff]
    %v119 = vld [vmem:[#allocation2 + $0x8] sm:$0xff]
    %v120 = vld [vmem:[%s2] sm:$0x1]
    %v122 = vlaneseq
    %v123 = vshrl.u32 %v122, 7
    %v124 = vsub.s32 0, %v123
    %v125 = vrot.slane %v120, %v124
    %v127 = vadd.f32 %v118, %v125
    %v128 = vadd.f32 %v119, %v125
    %129 = vst.msk [vmem:[%s3] sm:$0xff] %vm29, %v127
    %130 = vst.msk [vmem:[%s3 + $0x8] sm:$0xff] %vm29, %v128
  $region21: #{transformer_encoder_forward.15} parent=0 // pred_fallthru
    _
  // Predicated region
  $region22: #{transformer_encoder_forward.15} parent=0 // pred_check
    _
  $region23: #{transformer_encoder_forward.15} parent=0 // pred_check_branch
    %132 = sbr.rel (0) target = $region25
  $region24: #{transformer_encoder_forward.15} parent=0 // pred_region
    _
  $region25: #{transformer_encoder_forward.15} parent=0 // pred_fallthru
    _
  // Predicated region
  $region26: #{transformer_encoder_forward.15} parent=0 // pred_check
    _
  $region27: #{transformer_encoder_forward.15} parent=0 // pred_check_branch
    %134 = sbr.rel (0) target = $region29
  $region28: #{transformer_encoder_forward.15} parent=0 // pred_region
    _
  $region29: #{transformer_encoder_forward.15} parent=0 // pred_fallthru
    _

// kernel: transformer_encoder_forward.18
$region0: #{transformer_encoder_forward.18}
  #allocation0 [shape = 'u32[]', space=smem, size = 0x4, offset = 0x4, fixed_abs, tag = 'smem constant byte address 0x4 - core index']
  #allocation1 [shape = 'u32[144,128]{1,0:T(1,128)}', space=vmem, size = 0x12000, scoped, tag = 'internal scratch']
  #allocation2 [shape = 'f32[16,32]{1,0:T(8,128)}', space=vmem, size = 0x2000, scoped, tag = 'scratch operand']
  %s0 = inlined_call_operand.vmem [shape: f32[16,32], index: 0, kind: input, shape index: {}]
  %s1 = inlined_call_operand.vmem [shape: f32[32,32], index: 1, kind: input, shape index: {}]
  %s2 = inlined_call_operand.vmem [shape: f32[1,32], index: 2, kind: input, shape index: {}]
  %s3 = inlined_call_operand.vmem [shape: f32[16,32], index: 3, kind: input, shape index: {}]
  %s4 = inlined_call_operand.vmem [shape: f32[1,32], index: 4, kind: input, shape index: {}]
  %s5 = inlined_call_operand.vmem [shape: f32[1,32], index: 5, kind: input, shape index: {}]
  %s6 = inlined_call_operand.vmem [shape: f32[16,32], index: 6, kind: output, shape index: {}]
  %s7 = sld [smem:[#allocation0]]
  $region42: #{transformer_encoder_forward.18} parent=0
    _
  %s9 = ssub.s32 1, %s7
  %s10 = scalar_select 0, %s9, %s7
  // Predicated region
  $region2: #{transformer_encoder_forward.18} parent=0 // pred_check
    _
  $region3: #{transformer_encoder_forward.18} parent=0 // pred_check_branch
    %12 = sbr.rel (0) target = $region5
  $region4: #{transformer_encoder_forward.18} parent=0 // pred_region
    _
  $region5: #{transformer_encoder_forward.18} parent=0 // pred_fallthru
    _
  // Predicated region
  $region6: #{transformer_encoder_forward.18} parent=0 // pred_check
    _
  $region7: #{transformer_encoder_forward.18} parent=0 // pred_check_branch
    %14 = sbr.rel (0) target = $region9
  $region8: #{transformer_encoder_forward.18} parent=0 // pred_region
    _
  $region9: #{transformer_encoder_forward.18} parent=0 // pred_fallthru
    _
  // Predicated region
  $region10: #{transformer_encoder_forward.18} parent=0 // pred_check
    _
  $region11: #{transformer_encoder_forward.18} parent=0 // pred_check_branch
    %16 = sbr.rel (0) target = $region13
  $region12: #{transformer_encoder_forward.18} parent=0 // pred_region
    _
  $region13: #{transformer_encoder_forward.18} parent=0 // pred_fallthru
    _
  // Predicated region
  $region14: #{transformer_encoder_forward.18} parent=0 // pred_check
    _
  $region15: #{transformer_encoder_forward.18} parent=0 // pred_check_branch
    %18 = sbr.rel (0) target = $region17
  $region16: #{transformer_encoder_forward.18} parent=0 // pred_region
    _
  $region17: #{transformer_encoder_forward.18} parent=0 // pred_fallthru
    _
  // Predicated region
  $region18: #{transformer_encoder_forward.18} parent=0 // pred_check
    _
  $region19: #{transformer_encoder_forward.18} parent=0 // pred_check_branch
    %20 = sbr.rel (0) target = $region21
  $region20: #{transformer_encoder_forward.18} parent=0 // pred_region
    _
  $region21: #{transformer_encoder_forward.18} parent=0 // pred_fallthru
    _
  // Predicated region
  $region22: #{transformer_encoder_forward.18} parent=0 // pred_check
    _
  $region23: #{transformer_encoder_forward.18} parent=0 // pred_check_branch
    %22 = sbr.rel (0) target = $region25
  $region24: #{transformer_encoder_forward.18} parent=0 // pred_region
    _
  $region25: #{transformer_encoder_forward.18} parent=0 // pred_fallthru
    _
  %p23 = scmp.eq.s32.totalorder 0, 0
  // Predicated region
  $region26: #{transformer_encoder_forward.18} parent=0 // pred_check
    %p24 = pneg %p23
  $region27: #{transformer_encoder_forward.18} parent=0 // pred_check_branch
    %26 = sbr.rel (%p24) target = $region29
  $region28: #{transformer_encoder_forward.18} parent=0 // pred_region
    %vm27 = vcmask 261120
    %28 = vst.msk [vmem:[#allocation2] sm:$0xff] %vm27, 0.0
    %29 = vst.msk [vmem:[#allocation2 + $0x8] sm:$0xff] %vm27, 0.0
  $region29: #{transformer_encoder_forward.18} parent=0 // pred_fallthru
    _
  %v30 = vld [vmem:[#allocation2] sm:$0xff]
  %v31 = vld [vmem:[#allocation2 + $0x8] sm:$0xff]
  %v32 = vld [vmem:[%s0] sm:$0xff]
  %v33 = vld [vmem:[%s0 + $0x8] sm:$0xff]
  %v34 = vld [vmem:[%s1] sm:$0xff]
  %v35 = vld [vmem:[%s1 + $0x8] sm:$0xff]
  %v36 = vld [vmem:[%s1 + $0x10] sm:$0xff]
  %v37 = vld [vmem:[%s1 + $0x18] sm:$0xff]
  %vm38 = vcmask 261120
  %v40 = vsel %vm38, %v32, 0
  %v43 = vsel %vm38, %v33, 0
  %45 = vmatprep.subr.mxu0 0.0
  %46 = vmatpush1.msra.mxu0 %v34
  %47 = vmatprep.subr.mxu0 0.0
  %48 = vmatpush1.msra.mxu0 %v35
  %49 = vmatprep.subr.mxu0 0.0
  %50 = vmatpush1.msra.mxu0 %v36
  %51 = vmatprep.subr.mxu0 0.0
  %52 = vmatpush1.msra.mxu0 %v37
  %53 = vmatprep.subr.mxu0 0.0
  %54 = vmatpush1.msra.mxu0 0.0
  %55 = vmatprep.subr.mxu0 0.0
  %56 = vmatpush1.msra.mxu0 0.0
  %57 = vmatprep.subr.mxu0 0.0
  %58 = vmatpush1.msra.mxu0 0.0
  %59 = vmatprep.subr.mxu0 0.0
  %60 = vmatpush1.msra.mxu0 0.0
  %61 = vmatprep.subr.mxu0 0.0
  %62 = vmatpush1.msra.mxu0 0.0
  %63 = vmatprep.subr.mxu0 0.0
  %64 = vmatpush1.msra.mxu0 0.0
  %65 = vmatprep.subr.mxu0 0.0
  %66 = vmatpush1.msra.mxu0 0.0
  %67 = vmatprep.subr.mxu0 0.0
  %68 = vmatpush1.msra.mxu0 0.0
  %69 = vmatprep.subr.mxu0 0.0
  %70 = vmatpush1.msra.mxu0 0.0
  %71 = vmatprep.subr.mxu0 0.0
  %72 = vmatpush1.msra.mxu0 0.0
  %73 = vmatprep.subr.mxu0 0.0
  %74 = vmatpush1.msra.mxu0 0.0
  %75 = vmatprep.subr.mxu0 0.0
  %76 = vmatpush1.msra.mxu0 0.0
  %77 = vmatprep.subr.mxu0 0.0
  %78 = vmatpush1.msra.mxu0 0.0
  %79 = vmatprep.subr.mxu0 0.0
  %80 = vmatpush1.msra.mxu0 0.0
  %81 = vmatprep.subr.mxu0 0.0
  %82 = vmatpush1.msra.mxu0 0.0
  %83 = vmatprep.subr.mxu0 0.0
  %84 = vmatpush1.msra.mxu0 0.0
  %85 = vmatprep.subr.mxu0 0.0
  %86 = vmatpush1.msra.mxu0 0.0
  %87 = vmatprep.subr.mxu0 0.0
  %88 = vmatpush1.msra.mxu0 0.0
  %89 = vmatprep.subr.mxu0 0.0
  %90 = vmatpush1.msra.mxu0 0.0
  %91 = vmatprep.subr.mxu0 0.0
  %92 = vmatpush1.msra.mxu0 0.0
  %93 = vmatprep.subr.mxu0 0.0
  %94 = vmatpush1.msra.mxu0 0.0
  %95 = vmatprep.subr.mxu0 0.0
  %96 = vmatpush1.msra.mxu0 0.0
  %97 = vmatprep.subr.mxu0 0.0
  %98 = vmatpush1.msra.mxu0 0.0
  %99 = vmatprep.subr.mxu0 0.0
  %100 = vmatpush1.msra.mxu0 0.0
  %101 = vmatprep.subr.mxu0 0.0
  %102 = vmatpush1.msra.mxu0 0.0
  %103 = vmatprep.subr.mxu0 0.0
  %104 = vmatpush1.msra.mxu0 0.0
  %105 = vmatprep.subr.mxu0 0.0
  %106 = vmatpush1.msra.mxu0 0.0
  %107 = vmatprep.subr.mxu0 0.0
  %108 = vmatpush1.msra.mxu0 0.0
  %109 = vmatprep.mubr.f32.mxu0 0.0
  %110 = vmatmul.mubr.f32.gmra.mrb[0].mxu0 %v40
  %v111 = vpop.f32.mrb[0].mxu0
  %v112 = vadd.f32 0.0, %v111
  %v113 = vpop.f32.mrb[0].mxu0
  %114 = vmatprep.mubr.f32.mxu0 0.0
  %115 = vmatmul.mubr.f32.gmra.mrb[0].mxu0 %v43
  %v116 = vpop.f32.mrb[0].mxu0
  %v117 = vadd.f32 0.0, %v116
  %v118 = vpop.f32.mrb[0].mxu0
  %119 = vdwg.mxu0
  %v120 = vadd.f32 %v30, %v112
  %v121 = vadd.f32 %v31, %v117
  %122 = vst.msk [vmem:[#allocation2] sm:$0xff] %vm38, %v120
  %123 = vst.msk [vmem:[#allocation2 + $0x8] sm:$0xff] %vm38, %v121
  // Predicated region
  $region30: #{transformer_encoder_forward.18} parent=0 // pred_check
    %p124 = pneg %p23
  $region31: #{transformer_encoder_forward.18} parent=0 // pred_check_branch
    %126 = sbr.rel (%p124) target = $region33
  $region32: #{transformer_encoder_forward.18} parent=0 // pred_region
    %v127 = vld [vmem:[#allocation2] sm:$0xff]
    %v128 = vld [vmem:[#allocation2 + $0x8] sm:$0xff]
    %v129 = vld [vmem:[%s2] sm:$0x1]
    %v131 = vlaneseq
    %v132 = vshrl.u32 %v131, 7
    %v133 = vsub.s32 0, %v132
    %v134 = vrot.slane %v129, %v133
    %v136 = vadd.f32 %v127, %v134
    %v137 = vadd.f32 %v128, %v134
    %v138 = vld [vmem:[%s3] sm:$0xff]
    %v139 = vld [vmem:[%s3 + $0x8] sm:$0xff]
    %v140 = vadd.f32 %v136, %v138
    %v141 = vadd.f32 %v137, %v139
    %v142 = vsel %vm38, %v140, 0.0
    %143 = vadd.xlane.f32.xlu0 %v142
    %v144 = vpop.xlane.xlu0 %143
    %v145 = vsel %vm38, %v141, 0.0
    %146 = vadd.xlane.f32.xlu0 %v145
    %v147 = vpop.xlane.xlu0 %146
    %v148 = vrcp.pop 32.0
    %v149 = vmul.f32 %v144, %v148
    %v150 = vmul.f32 %v147, %v148
    %v151 = vsub.f32 %v140, %v149
    %v152 = vsub.f32 %v141, %v150
    %v153 = vmul.f32 %v151, %v151
    %v154 = vmul.f32 %v152, %v152
    %v155 = vsel %vm38, %v153, 0.0
    %156 = vadd.xlane.f32.xlu0 %v155
    %v157 = vpop.xlane.xlu0 %156
    %v158 = vsel %vm38, %v154, 0.0
    %159 = vadd.xlane.f32.xlu0 %v158
    %v160 = vpop.xlane.xlu0 %159
    %v161 = vmul.f32 %v157, %v148
    %v162 = vmul.f32 %v160, %v148
    %v163 = vadd.f32 %v161, 1e-05
    %v164 = vadd.f32 %v162, 1e-05
    %v165 = vrsqrt.pop %v163
    %v166 = vrsqrt.pop %v164
    %v167 = vmul.f32 %v151, %v165
    %v168 = vmul.f32 %v152, %v166
    %v169 = vld [vmem:[%s4] sm:$0x1]
    %v171 = vlaneseq
    %v172 = vshrl.u32 %v171, 7
    %v173 = vsub.s32 0, %v172
    %v174 = vrot.slane %v169, %v173
    %v176 = vmul.f32 %v167, %v174
    %v177 = vmul.f32 %v168, %v174
    %v178 = vld [vmem:[%s5] sm:$0x1]
    %v180 = vlaneseq
    %v181 = vshrl.u32 %v180, 7
    %v182 = vsub.s32 0, %v181
    %v183 = vrot.slane %v178, %v182
    %v185 = vadd.f32 %v176, %v183
    %v186 = vadd.f32 %v177, %v183
    %187 = vst.msk [vmem:[%s6] sm:$0xff] %vm38, %v185
    %188 = vst.msk [vmem:[%s6 + $0x8] sm:$0xff] %vm38, %v186
  $region33: #{transformer_encoder_forward.18} parent=0 // pred_fallthru
    _
  // Predicated region
  $region34: #{transformer_encoder_forward.18} parent=0 // pred_check
    _
  $region35: #{transformer_encoder_forward.18} parent=0 // pred_check_branch
    %190 = sbr.rel (0) target = $region37
  $region36: #{transformer_encoder_forward.18} parent=0 // pred_region
    _
  $region37: #{transformer_encoder_forward.18} parent=0 // pred_fallthru
    _
  // Predicated region
  $region38: #{transformer_encoder_forward.18} parent=0 // pred_check
    _
  $region39: #{transformer_encoder_forward.18} parent=0 // pred_check_branch
    %192 = sbr.rel (0) target = $region41
  $region40: #{transformer_encoder_forward.18} parent=0 // pred_region
    _
  $region41: #{transformer_encoder_forward.18} parent=0 // pred_fallthru
    _

// kernel: transformer_encoder_forward.17
$region0: #{transformer_encoder_forward.17}
  #allocation0 [shape = 'u32[]', space=smem, size = 0x4, offset = 0x4, fixed_abs, tag = 'smem constant byte address 0x4 - core index']
  #allocation1 [shape = 'u32[144,128]{1,0:T(1,128)}', space=vmem, size = 0x12000, scoped, tag = 'internal scratch']
  #allocation2 [shape = 'f32[4,8,1]{2,1,0:T(8,128)}', space=vmem, size = 0x4000, scoped, tag = 'scratch operand']
  #allocation3 [shape = 'f32[4,8,1]{2,1,0:T(8,128)}', space=vmem, size = 0x4000, scoped, tag = 'scratch operand']
  #allocation4 [shape = 'f32[8,32]{1,0:T(8,128)}', space=vmem, size = 0x1000, scoped, tag = 'scratch operand']
  %s0 = inlined_call_operand.vmem [shape: f32[2,8,32], index: 0, kind: input, shape index: {}]
  %s1 = inlined_call_operand.vmem [shape: f32[2,8,32], index: 1, kind: input, shape index: {}]
  %s2 = inlined_call_operand.vmem [shape: f32[2,8,32], index: 2, kind: input, shape index: {}]
  %s3 = inlined_call_operand.vmem [shape: f32[2,8,32], index: 3, kind: output, shape index: {}]
  %s4 = sld [smem:[#allocation0]]
  $region53: #{transformer_encoder_forward.17} parent=0
    _
  %s6 = ssub.s32 1, %s4
  %s7 = scalar_select 0, %s6, %s4
  loop: start=0, step=1, limit=4
  $region2: #{transformer_encoder_forward.17} parent=0 // loop_pre_header
    _
  $region3: #{transformer_encoder_forward.17} parent=0 // loop_header
    %s9 = sphi 0, %s13
    %p10 = scmp.ge.s32.totalorder %s9, 4
    %s16 = sphi 0, %s35
    %s17 = sphi 0, %s31
    %s18 = sphi 0, %s27
    %s19 = sphi 0, %s16
    %s20 = sphi 0, %s17
    %s21 = sphi 0, %s18
    %s22 = sphi 0, %s19
    %s23 = sphi 0, %s20
    %s24 = sphi 0, %s21
    %s40 = sphi 0, %s42
    %s43 = sphi 0, %s40
    %s44 = sphi 0, %s43
    %s60 = sphi 0, %s44
    %s68 = sphi 0, %s70
    %s71 = sphi 0, %s68
    %s72 = sphi 0, %s71
    %s88 = sphi 0, %s72
    %s96 = sphi 0, %s98
    %s99 = sphi 0, %s96
    %s100 = sphi 0, %s99
    %s116 = sphi 0, %s100
    %s124 = sphi 0, %s126
    %s127 = sphi 0, %s124
    %s128 = sphi 0, %s127
    %s144 = sphi 0, %s128
  $region4: #{transformer_encoder_forward.17} parent=0 // loop_header_branch
    %12 = sbr.rel (%p10) target = $region8
  $region5: #{transformer_encoder_forward.17} parent=0 // loop_body
    %s14 = ssub.s32 %s9, 1
    %s15 = ssub.s32 %s9, 2
    %s25 = sadd.s32 1, %s18
    %p26 = scmp.ge.s32.totalorder %s25, 1
    %s27 = scalar_select %p26, 0, %s25
    %s28 = sadd.s32 1, %s17
    %s29 = scalar_select %p26, %s28, %s17
    %p30 = scmp.ge.s32.totalorder %s29, 1
    %s31 = scalar_select %p30, 0, %s29
    %s32 = sadd.s32 1, %s16
    %s33 = scalar_select %p30, %s32, %s16
    %p34 = scmp.ge.s32.totalorder %s33, 2
    %s35 = scalar_select %p34, 0, %s33
    %s36 = ssub.s32 %s16, %s35
    %s37 = ssub.s32 %s17, %s31
    %s38 = sor.u32 %s36, %s37
    %p39 = scmp.eq.s32.totalorder %s38, 0
    %s41 = sadd.s32 %s40, 1
    %s42 = scalar_select %p39, %s40, %s41
    %p45 = pneg %p39
    %p46 = scmp.eq.s32.totalorder %s9, 1
    %p47 = por %p45, %p46
    %p48 = scmp.ne.s32.totalorder %s40, %s43
    %p49 = scmp.eq.s32.totalorder %s9, 0
    %p50 = por %p48, %p49
    %p51 = scmp.ne.s32.totalorder %s40, %s43
    %p52 = scmp.eq.s32.totalorder %s14, 1
    %p53 = por %p51, %p52
    %p54 = scmp.ne.s32.totalorder %s43, %s44
    %p55 = scmp.eq.s32.totalorder %s14, 0
    %p56 = por %p54, %p55
    %p57 = scmp.ne.s32.totalorder %s43, %s44
    %p58 = scmp.eq.s32.totalorder %s15, 1
    %p59 = por %p57, %p58
    %p61 = scmp.ne.s32.totalorder %s44, %s60
    %p62 = scmp.eq.s32.totalorder %s15, 0
    %p63 = por %p61, %p62
    %s64 = ssub.s32 %s16, %s35
    %s65 = ssub.s32 %s18, %s27
    %s66 = sor.u32 %s64, %s65
    %p67 = scmp.eq.s32.totalorder %s66, 0
    %s69 = sadd.s32 %s68, 1
    %s70 = scalar_select %p67, %s68, %s69
    %p73 = pneg %p67
    %p74 = scmp.eq.s32.totalorder %s9, 1
    %p75 = por %p73, %p74
    %p76 = scmp.ne.s32.totalorder %s68, %s71
    %p77 = scmp.eq.s32.totalorder %s9, 0
    %p78 = por %p76, %p77
    %p79 = scmp.ne.s32.totalorder %s68, %s71
    %p80 = scmp.eq.s32.totalorder %s14, 1
    %p81 = por %p79, %p80
    %p82 = scmp.ne.s32.totalorder %s71, %s72
    %p83 = scmp.eq.s32.totalorder %s14, 0
    %p84 = por %p82, %p83
    %p85 = scmp.ne.s32.totalorder %s71, %s72
    %p86 = scmp.eq.s32.totalorder %s15, 1
    %p87 = por %p85, %p86
    %p89 = scmp.ne.s32.totalorder %s72, %s88
    %p90 = scmp.eq.s32.totalorder %s15, 0
    %p91 = por %p89, %p90
    %s92 = ssub.s32 %s16, %s35
    %s93 = ssub.s32 %s18, %s27
    %s94 = sor.u32 %s92, %s93
    %p95 = scmp.eq.s32.totalorder %s94, 0
    %s97 = sadd.s32 %s96, 1
    %s98 = scalar_select %p95, %s96, %s97
    %p101 = pneg %p95
    %p102 = scmp.eq.s32.totalorder %s9, 1
    %p103 = por %p101, %p102
    %p104 = scmp.ne.s32.totalorder %s96, %s99
    %p105 = scmp.eq.s32.totalorder %s9, 0
    %p106 = por %p104, %p105
    %p107 = scmp.ne.s32.totalorder %s96, %s99
    %p108 = scmp.eq.s32.totalorder %s14, 1
    %p109 = por %p107, %p108
    %p110 = scmp.ne.s32.totalorder %s99, %s100
    %p111 = scmp.eq.s32.totalorder %s14, 0
    %p112 = por %p110, %p111
    %p113 = scmp.ne.s32.totalorder %s99, %s100
    %p114 = scmp.eq.s32.totalorder %s15, 1
    %p115 = por %p113, %p114
    %p117 = scmp.ne.s32.totalorder %s100, %s116
    %p118 = scmp.eq.s32.totalorder %s15, 0
    %p119 = por %p117, %p118
    %s120 = ssub.s32 %s16, %s35
    %s121 = ssub.s32 %s17, %s31
    %s122 = sor.u32 %s120, %s121
    %p123 = scmp.eq.s32.totalorder %s122, 0
    %s125 = sadd.s32 %s124, 1
    %s126 = scalar_select %p123, %s124, %s125
    %p129 = pneg %p123
    %p130 = scmp.eq.s32.totalorder %s9, 1
    %p131 = por %p129, %p130
    %p132 = scmp.ne.s32.totalorder %s124, %s127
    %p133 = scmp.eq.s32.totalorder %s9, 0
    %p134 = por %p132, %p133
    %p135 = scmp.ne.s32.totalorder %s124, %s127
    %p136 = scmp.eq.s32.totalorder %s14, 1
    %p137 = por %p135, %p136
    %p138 = scmp.ne.s32.totalorder %s127, %s128
    %p139 = scmp.eq.s32.totalorder %s14, 0
    %p140 = por %p138, %p139
    %p141 = scmp.ne.s32.totalorder %s127, %s128
    %p142 = scmp.eq.s32.totalorder %s15, 1
    %p143 = por %p141, %p142
    %p145 = scmp.ne.s32.totalorder %s128, %s144
    %p146 = scmp.eq.s32.totalorder %s15, 0
    %p147 = por %p145, %p146
    %p148 = scmp.le.s32.totalorder 1, %s9
    %p149 = scmp.lt.s32.totalorder %s9, 3
    %p150 = pnand %p148, %p149
    %p151 = pneg %p150
    // Predicated region
    $region9: #{transformer_encoder_forward.17} parent=5 // pred_check
      _
    $region10: #{transformer_encoder_forward.17} parent=5 // pred_check_branch
      %153 = sbr.rel (%p150) target = $region12
    $region11: #{transformer_encoder_forward.17} parent=5 // pred_region
      %s154 = ssub.s32 %s9, 1
    $region12: #{transformer_encoder_forward.17} parent=5 // pred_fallthru
      _
    %p155 = scmp.lt.s32.totalorder %s9, 2
    // Predicated region
    $region13: #{transformer_encoder_forward.17} parent=5 // pred_check
      %p156 = pneg %p155
    $region14: #{transformer_encoder_forward.17} parent=5 // pred_check_branch
      %158 = sbr.rel (%p156) target = $region16
    $region15: #{transformer_encoder_forward.17} parent=5 // pred_region
      // Predicated region
      $region17: #{transformer_encoder_forward.17} parent=15 // pred_check
        %p159 = pneg %p50
      $region18: #{transformer_encoder_forward.17} parent=15 // pred_check_branch
        %161 = sbr.rel (%p159) target = $region20
      $region19: #{transformer_encoder_forward.17} parent=15 // pred_region
        %p162 = scmp.lt.s32.totalorder %s16, 1
        %s163 = scalar_select %p162, %s16, 1
        %p164 = scmp.lt.s32.totalorder %s17, 0
        %s165 = scalar_select %p164, %s17, 0
        %s166 = sadd.s32 %s165, %s163
        %s167 = smul.addr %s166, 8
        %s168 = scalar_lea.vmem %s0, %s167
      $region20: #{transformer_encoder_forward.17} parent=15 // pred_fallthru
        _
      // Predicated region
      $region21: #{transformer_encoder_forward.17} parent=15 // pred_check
        %p169 = pneg %p78
      $region22: #{transformer_encoder_forward.17} parent=15 // pred_check_branch
        %171 = sbr.rel (%p169) target = $region24
      $region23: #{transformer_encoder_forward.17} parent=15 // pred_region
        %p172 = scmp.lt.s32.totalorder %s16, 1
        %s173 = scalar_select %p172, %s16, 1
        %p174 = scmp.lt.s32.totalorder %s18, 0
        %s175 = scalar_select %p174, %s18, 0
        %s176 = sadd.s32 %s175, %s173
        %s177 = smul.addr %s176, 8
        %s178 = scalar_lea.vmem %s1, %s177
      $region24: #{transformer_encoder_forward.17} parent=15 // pred_fallthru
        _
      // Predicated region
      $region25: #{transformer_encoder_forward.17} parent=15 // pred_check
        %p179 = pneg %p106
      $region26: #{transformer_encoder_forward.17} parent=15 // pred_check_branch
        %181 = sbr.rel (%p179) target = $region28
      $region27: #{transformer_encoder_forward.17} parent=15 // pred_region
        %p182 = scmp.lt.s32.totalorder %s16, 1
        %s183 = scalar_select %p182, %s16, 1
        %p184 = scmp.lt.s32.totalorder %s18, 0
        %s185 = scalar_select %p184, %s18, 0
        %s186 = sadd.s32 %s185, %s183
        %s187 = smul.addr %s186, 8
        %s188 = scalar_lea.vmem %s2, %s187
      $region28: #{transformer_encoder_forward.17} parent=15 // pred_fallthru
        _
    $region16: #{transformer_encoder_forward.17} parent=5 // pred_fallthru
      _
    %p189 = scmp.le.s32.totalorder 1, %s9
    %p190 = scmp.lt.s32.totalorder %s9, 3
    %p191 = pnand %p189, %p190
    %p192 = pneg %p191
    // Predicated region
    $region29: #{transformer_encoder_forward.17} parent=5 // pred_check
      _
    $region30: #{transformer_encoder_forward.17} parent=5 // pred_check_branch
      %194 = sbr.rel (%p191) target = $region32
    $region31: #{transformer_encoder_forward.17} parent=5 // pred_region
      %s195 = ssub.s32 %s9, 1
      %p196 = scmp.lt.s32.totalorder %s19, 1
      %s197 = scalar_select %p196, %s19, 1
      %p198 = scmp.lt.s32.totalorder %s20, 0
      %s199 = scalar_select %p198, %s20, 0
      %s200 = sadd.s32 %s199, %s197
      %s201 = smul.addr %s200, 8
      %s202 = scalar_lea.vmem %s0, %s201
      %p203 = pneg %p56
      %p204 = pneg %p53
      %p205 = scmp.lt.s32.totalorder %s19, 1
      %s206 = scalar_select %p205, %s19, 1
      %p207 = scmp.lt.s32.totalorder %s21, 0
      %s208 = scalar_select %p207, %s21, 0
      %s209 = sadd.s32 %s208, %s206
      %s210 = smul.addr %s209, 8
      %s211 = scalar_lea.vmem %s1, %s210
      %p212 = pneg %p84
      %p213 = pneg %p81
      %p214 = scmp.lt.s32.totalorder %s19, 1
      %s215 = scalar_select %p214, %s19, 1
      %p216 = scmp.lt.s32.totalorder %s21, 0
      %s217 = scalar_select %p216, %s21, 0
      %s218 = sadd.s32 %s217, %s215
      %s219 = smul.addr %s218, 8
      %s220 = scalar_lea.vmem %s2, %s219
      %p221 = pneg %p112
      %p222 = pneg %p109
      %p223 = pneg %p140
      %p224 = pneg %p137
      %p225 = scmp.lt.s32.totalorder %s19, 1
      %s226 = scalar_select %p225, %s19, 1
      %p227 = scmp.lt.s32.totalorder %s20, 0
      %s228 = scalar_select %p227, %s20, 0
      %s229 = sadd.s32 %s228, %s226
      %s230 = smul.addr %s229, 8
      %s231 = scalar_lea.vmem %s3, %s230
      %p232 = scmp.lt.s32.totalorder %s19, 1
      %s233 = scalar_select %p232, %s19, 1
      %p234 = scmp.lt.s32.totalorder %s20, 0
      %s235 = scalar_select %p234, %s20, 0
      %s236 = sadd.s32 %s235, %s233
      %s237 = smul.addr %s236, 8
      %s238 = scalar_lea.vmem %s0, %s237
      %p239 = scmp.lt.s32.totalorder %s19, 1
      %s240 = scalar_select %p239, %s19, 1
      %p241 = scmp.lt.s32.totalorder %s21, 0
      %s242 = scalar_select %p241, %s21, 0
      %s243 = sadd.s32 %s242, %s240
      %s244 = smul.addr %s243, 8
      %s245 = scalar_lea.vmem %s1, %s244
      %p246 = scmp.lt.s32.totalorder %s19, 1
      %s247 = scalar_select %p246, %s19, 1
      %p248 = scmp.lt.s32.totalorder %s21, 0
      %s249 = scalar_select %p248, %s21, 0
      %s250 = sadd.s32 %s249, %s247
      %s251 = smul.addr %s250, 8
      %s252 = scalar_lea.vmem %s2, %s251
      %p253 = scmp.lt.s32.totalorder %s19, 1
      %s254 = scalar_select %p253, %s19, 1
      %p255 = scmp.lt.s32.totalorder %s20, 0
      %s256 = scalar_select %p255, %s20, 0
      %s257 = sadd.s32 %s256, %s254
      %s258 = smul.addr %s257, 8
      %s259 = scalar_lea.vmem %s3, %s258
      %p260 = scmp.eq.s32.totalorder %s21, 0
      // Predicated region
      $region33: #{transformer_encoder_forward.17} parent=31 // pred_check
        %p261 = pneg %p260
      $region34: #{transformer_encoder_forward.17} parent=31 // pred_check_branch
        %263 = sbr.rel (%p261) target = $region36
      $region35: #{transformer_encoder_forward.17} parent=31 // pred_region
        %vm264 = vcmask 7168
        %265 = vst.msk [vmem:[#allocation2] sm:$0xff] %vm264, -inf
        %266 = vst.msk [vmem:[#allocation2 + $0x8] sm:$0xff] %vm264, -inf
        %267 = vst.msk [vmem:[#allocation2 + $0x10] sm:$0xff] %vm264, -inf
        %268 = vst.msk [vmem:[#allocation2 + $0x18] sm:$0xff] %vm264, -inf
        %269 = vst.msk [vmem:[#allocation3] sm:$0xff] %vm264, 0.0
        %270 = vst.msk [vmem:[#allocation3 + $0x8] sm:$0xff] %vm264, 0.0
        %271 = vst.msk [vmem:[#allocation3 + $0x10] sm:$0xff] %vm264, 0.0
        %272 = vst.msk [vmem:[#allocation3 + $0x18] sm:$0xff] %vm264, 0.0
        %vm273 = vcmask 261120
        %274 = vst.msk [vmem:[#allocation4] sm:$0xff] %vm273, 0.0
      $region36: #{transformer_encoder_forward.17} parent=31 // pred_fallthru
        _
      %v275 = vld [vmem:[%s238] sm:$0xff]
      %v276 = vld [vmem:[%s245] sm:$0xff]
      %v277 = vld [vmem:[%s252] sm:$0xff]
      %v278 = vmul.f32 %v275, 0.35355338
      %vm279 = vcmask 64512
      %v281 = vsel %vm279, %v278, 0
      %v284 = vsel %vm279, %v276, 0
      %286 = vmatprep.subr.mxu0 0.0
      %287 = vmatpush1.xpose.msra.mxu0 %v284
      %288 = vmatprep.subr.mxu0 0.0
      %289 = vmatpush1.xpose.msra.mxu0 0.0
      %290 = vmatprep.subr.mxu0 0.0
      %291 = vmatpush1.xpose.msra.mxu0 0.0
      %292 = vmatprep.subr.mxu0 0.0
      %293 = vmatpush1.xpose.msra.mxu0 0.0
      %294 = vmatprep.subr.mxu0 0.0
      %295 = vmatpush1.xpose.msra.mxu0 0.0
      %296 = vmatprep.subr.mxu0 0.0
      %297 = vmatpush1.xpose.msra.mxu0 0.0
      %298 = vmatprep.subr.mxu0 0.0
      %299 = vmatpush1.xpose.msra.mxu0 0.0
      %300 = vmatprep.subr.mxu0 0.0
      %301 = vmatpush1.xpose.msra.mxu0 0.0
      %302 = vmatprep.subr.mxu0 0.0
      %303 = vmatpush1.xpose.msra.mxu0 0.0
      %304 = vmatprep.subr.mxu0 0.0
      %305 = vmatpush1.xpose.msra.mxu0 0.0
      %306 = vmatprep.subr.mxu0 0.0
      %307 = vmatpush1.xpose.msra.mxu0 0.0
      %308 = vmatprep.subr.mxu0 0.0
      %309 = vmatpush1.xpose.msra.mxu0 0.0
      %310 = vmatprep.subr.mxu0 0.0
      %311 = vmatpush1.xpose.msra.mxu0 0.0
      %312 = vmatprep.subr.mxu0 0.0
      %313 = vmatpush1.xpose.msra.mxu0 0.0
      %314 = vmatprep.subr.mxu0 0.0
      %315 = vmatpush1.xpose.msra.mxu0 0.0
      %316 = vmatprep.subr.mxu0 0.0
      %317 = vmatpush1.xpose.msra.mxu0 0.0
      %318 = vmatprep.subr.mxu0 0.0
      %319 = vmatpush1.xpose.msra.mxu0 0.0
      %320 = vmatprep.subr.mxu0 0.0
      %321 = vmatpush1.xpose.msra.mxu0 0.0
      %322 = vmatprep.subr.mxu0 0.0
      %323 = vmatpush1.xpose.msra.mxu0 0.0
      %324 = vmatprep.subr.mxu0 0.0
      %325 = vmatpush1.xpose.msra.mxu0 0.0
      %326 = vmatprep.subr.mxu0 0.0
      %327 = vmatpush1.xpose.msra.mxu0 0.0
      %328 = vmatprep.subr.mxu0 0.0
      %329 = vmatpush1.xpose.msra.mxu0 0.0
      %330 = vmatprep.subr.mxu0 0.0
      %331 = vmatpush1.xpose.msra.mxu0 0.0
      %332 = vmatprep.subr.mxu0 0.0
      %333 = vmatpush1.xpose.msra.mxu0 0.0
      %334 = vmatprep.subr.mxu0 0.0
      %335 = vmatpush1.xpose.msra.mxu0 0.0
      %336 = vmatprep.subr.mxu0 0.0
      %337 = vmatpush1.xpose.msra.mxu0 0.0
      %338 = vmatprep.subr.mxu0 0.0
      %339 = vmatpush1.xpose.msra.mxu0 0.0
      %340 = vmatprep.subr.mxu0 0.0
      %341 = vmatpush1.xpose.msra.mxu0 0.0
      %342 = vmatprep.subr.mxu0 0.0
      %343 = vmatpush1.xpose.msra.mxu0 0.0
      %344 = vmatprep.subr.mxu0 0.0
      %345 = vmatpush1.xpose.msra.mxu0 0.0
      %346 = vmatprep.subr.mxu0 0.0
      %347 = vmatpush1.xpose.msra.mxu0 0.0
      %348 = vmatprep.subr.mxu0 0.0
      %349 = vmatpush1.xpose.msra.mxu0 0.0
      %350 = vmatprep.mubr.f32.mxu0 0.0
      %351 = vmatmul.mubr.f32.gmra.mrb[0].mxu0 %v281
      %v352 = vpop.f32.mrb[0].mxu0
      %v353 = vadd.f32 0.0, %v352
      %v354 = vpop.f32.mrb[0].mxu0
      %355 = vdwg.mxu0
      %v356 = vld [vmem:[#allocation2] sm:$0xff]
      %v357 = vld [vmem:[#allocation3] sm:$0xff]
      %v358 = vsel %vm279, %v353, -inf
      %359 = vmax.xlane.f32.xlu0 %v358
      %v360 = vpop.xlane.xlu0 %359
      %v361 = vmax.f32 %v356, %v360
      %v362 = vsub.f32 %v356, %v361
      %v363 = vmul.f32 %v362, 1.442695
      %v364 = vpow.pop %v363
      %366 = vset.pattern.permute.xlu0 0
      %367 = vperm.xlu0 %366, %v361
      %v368 = vpop.permute.xlu0 %367
      %v370 = vsub.f32 %v353, %v368
      %v371 = vmul.f32 %v370, 1.442695
      %v372 = vpow.pop %v371
      %v373 = vmul.f32 %v364, %v357
      %v374 = vsel %vm279, %v372, 0.0
      %375 = vadd.xlane.f32.xlu0 %v374
      %v376 = vpop.xlane.xlu0 %375
      %v377 = vadd.f32 %v373, %v376
      %vm378 = vcmask 7168
      %379 = vst.msk [vmem:[#allocation3] sm:$0xff] %vm378, %v377
      %v380 = vld [vmem:[#allocation4] sm:$0xff]
      %382 = vset.pattern.permute.xlu0 0
      %383 = vperm.xlu0 %382, %v364
      %v384 = vpop.permute.xlu0 %383
      %v386 = vmul.f32 %v384, %v380
      %v388 = vsel %vm279, %v372, 0
      %390 = vmatprep.subr.mxu0 0.0
      %391 = vmatpush1.msra.mxu0 %v277
      %392 = vmatprep.subr.mxu0 0.0
      %393 = vmatpush1.msra.mxu0 0.0
      %394 = vmatprep.subr.mxu0 0.0
      %395 = vmatpush1.msra.mxu0 0.0
      %396 = vmatprep.subr.mxu0 0.0
      %397 = vmatpush1.msra.mxu0 0.0
      %398 = vmatprep.subr.mxu0 0.0
      %399 = vmatpush1.msra.mxu0 0.0
      %400 = vmatprep.subr.mxu0 0.0
      %401 = vmatpush1.msra.mxu0 0.0
      %402 = vmatprep.subr.mxu0 0.0
      %403 = vmatpush1.msra.mxu0 0.0
      %404 = vmatprep.subr.mxu0 0.0
      %405 = vmatpush1.msra.mxu0 0.0
      %406 = vmatprep.subr.mxu0 0.0
      %407 = vmatpush1.msra.mxu0 0.0
      %408 = vmatprep.subr.mxu0 0.0
      %409 = vmatpush1.msra.mxu0 0.0
      %410 = vmatprep.subr.mxu0 0.0
      %411 = vmatpush1.msra.mxu0 0.0
      %412 = vmatprep.subr.mxu0 0.0
      %413 = vmatpush1.msra.mxu0 0.0
      %414 = vmatprep.subr.mxu0 0.0
      %415 = vmatpush1.msra.mxu0 0.0
      %416 = vmatprep.subr.mxu0 0.0
      %417 = vmatpush1.msra.mxu0 0.0
      %418 = vmatprep.subr.mxu0 0.0
      %419 = vmatpush1.msra.mxu0 0.0
      %420 = vmatprep.subr.mxu0 0.0
      %421 = vmatpush1.msra.mxu0 0.0
      %422 = vmatprep.subr.mxu0 0.0
      %423 = vmatpush1.msra.mxu0 0.0
      %424 = vmatprep.subr.mxu0 0.0
      %425 = vmatpush1.msra.mxu0 0.0
      %426 = vmatprep.subr.mxu0 0.0
      %427 = vmatpush1.msra.mxu0 0.0
      %428 = vmatprep.subr.mxu0 0.0
      %429 = vmatpush1.msra.mxu0 0.0
      %430 = vmatprep.subr.mxu0 0.0
      %431 = vmatpush1.msra.mxu0 0.0
      %432 = vmatprep.subr.mxu0 0.0
      %433 = vmatpush1.msra.mxu0 0.0
      %434 = vmatprep.subr.mxu0 0.0
      %435 = vmatpush1.msra.mxu0 0.0
      %436 = vmatprep.subr.mxu0 0.0
      %437 = vmatpush1.msra.mxu0 0.0
      %438 = vmatprep.subr.mxu0 0.0
      %439 = vmatpush1.msra.mxu0 0.0
      %440 = vmatprep.subr.mxu0 0.0
      %441 = vmatpush1.msra.mxu0 0.0
      %442 = vmatprep.subr.mxu0 0.0
      %443 = vmatpush1.msra.mxu0 0.0
      %444 = vmatprep.subr.mxu0 0.0
      %445 = vmatpush1.msra.mxu0 0.0
      %446 = vmatprep.subr.mxu0 0.0
      %447 = vmatpush1.msra.mxu0 0.0
      %448 = vmatprep.subr.mxu0 0.0
      %449 = vmatpush1.msra.mxu0 0.0
      %450 = vmatprep.subr.mxu0 0.0
      %451 = vmatpush1.msra.mxu0 0.0
      %452 = vmatprep.subr.mxu0 0.0
      %453 = vmatpush1.msra.mxu0 0.0
      %454 = vmatprep.mubr.f32.mxu0 0.0
      %455 = vmatmul.mubr.f32.gmra.mrb[0].mxu0 %v388
      %v456 = vpop.f32.mrb[0].mxu0
      %v457 = vadd.f32 0.0, %v456
      %v458 = vpop.f32.mrb[0].mxu0
      %459 = vdwg.mxu0
      %v460 = vadd.f32 %v386, %v457
      %461 = vst.msk [vmem:[#allocation4] sm:$0xff] %vm279, %v460
      %462 = vst.msk [vmem:[#allocation2] sm:$0xff] %vm378, %v361
      %463 = vrot.lane.b32.xlu0 %v278, 120
      %v464 = vpop.permute.xlu0 %463
      %465 = vrot.lane.b32.xlu0 %v276, 120
      %v466 = vpop.permute.xlu0 %465
      %v467 = vsel %vm279, %v464, 0
      %v469 = vsel %vm279, %v466, 0
      %471 = vmatprep.subr.mxu0 0.0
      %472 = vmatpush1.xpose.msra.mxu0 %v469
      %473 = vmatprep.subr.mxu0 0.0
      %474 = vmatpush1.xpose.msra.mxu0 0.0
      %475 = vmatprep.subr.mxu0 0.0
      %476 = vmatpush1.xpose.msra.mxu0 0.0
      %477 = vmatprep.subr.mxu0 0.0
      %478 = vmatpush1.xpose.msra.mxu0 0.0
      %479 = vmatprep.subr.mxu0 0.0
      %480 = vmatpush1.xpose.msra.mxu0 0.0
      %481 = vmatprep.subr.mxu0 0.0
      %482 = vmatpush1.xpose.msra.mxu0 0.0
      %483 = vmatprep.subr.mxu0 0.0
      %484 = vmatpush1.xpose.msra.mxu0 0.0
      %485 = vmatprep.subr.mxu0 0.0
      %486 = vmatpush1.xpose.msra.mxu0 0.0
      %487 = vmatprep.subr.mxu0 0.0
      %488 = vmatpush1.xpose.msra.mxu0 0.0
      %489 = vmatprep.subr.mxu0 0.0
      %490 = vmatpush1.xpose.msra.mxu0 0.0
      %491 = vmatprep.subr.mxu0 0.0
      %492 = vmatpush1.xpose.msra.mxu0 0.0
      %493 = vmatprep.subr.mxu0 0.0
      %494 = vmatpush1.xpose.msra.mxu0 0.0
      %495 = vmatprep.subr.mxu0 0.0
      %496 = vmatpush1.xpose.msra.mxu0 0.0
      %497 = vmatprep.subr.mxu0 0.0
      %498 = vmatpush1.xpose.msra.mxu0 0.0
      %499 = vmatprep.subr.mxu0 0.0
      %500 = vmatpush1.xpose.msra.mxu0 0.0
      %501 = vmatprep.subr.mxu0 0.0
      %502 = vmatpush1.xpose.msra.mxu0 0.0
      %503 = vmatprep.subr.mxu0 0.0
      %504 = vmatpush1.xpose.msra.mxu0 0.0
      %505 = vmatprep.subr.mxu0 0.0
      %506 = vmatpush1.xpose.msra.mxu0 0.0
      %507 = vmatprep.subr.mxu0 0.0
      %508 = vmatpush1.xpose.msra.mxu0 0.0
      %509 = vmatprep.subr.mxu0 0.0
      %510 = vmatpush1.xpose.msra.mxu0 0.0
      %511 = vmatprep.subr.mxu0 0.0
      %512 = vmatpush1.xpose.msra.mxu0 0.0
      %513 = vmatprep.subr.mxu0 0.0
      %514 = vmatpush1.xpose.msra.mxu0 0.0
      %515 = vmatprep.subr.mxu0 0.0
      %516 = vmatpush1.xpose.msra.mxu0 0.0
      %517 = vmatprep.subr.mxu0 0.0
      %518 = vmatpush1.xpose.msra.mxu0 0.0
      %519 = vmatprep.subr.mxu0 0.0
      %520 = vmatpush1.xpose.msra.mxu0 0.0
      %521 = vmatprep.subr.mxu0 0.0
      %522 = vmatpush1.xpose.msra.mxu0 0.0
      %523 = vmatprep.subr.mxu0 0.0
      %524 = vmatpush1.xpose.msra.mxu0 0.0
      %525 = vmatprep.subr.mxu0 0.0
      %526 = vmatpush1.xpose.msra.mxu0 0.0
      %527 = vmatprep.subr.mxu0 0.0
      %528 = vmatpush1.xpose.msra.mxu0 0.0
      %529 = vmatprep.subr.mxu0 0.0
      %530 = vmatpush1.xpose.msra.mxu0 0.0
      %531 = vmatprep.subr.mxu0 0.0
      %532 = vmatpush1.xpose.msra.mxu0 0.0
      %533 = vmatprep.subr.mxu0 0.0
      %534 = vmatpush1.xpose.msra.mxu0 0.0
      %535 = vmatprep.mubr.f32.mxu0 0.0
      %536 = vmatmul.mubr.f32.gmra.mrb[0].mxu0 %v467
      %v537 = vpop.f32.mrb[0].mxu0
      %v538 = vadd.f32 0.0, %v537
      %v539 = vpop.f32.mrb[0].mxu0
      %540 = vdwg.mxu0
      %s541 = scalar_lea.vmem [#allocation2], 8
      %v542 = vld [vmem:[%s541] sm:$0xff]
      %s543 = scalar_lea.vmem [#allocation3], 8
      %v544 = vld [vmem:[%s543] sm:$0xff]
      %v545 = vsel %vm279, %v538, -inf
      %546 = vmax.xlane.f32.xlu0 %v545
      %v547 = vpop.xlane.xlu0 %546
      %v548 = vmax.f32 %v542, %v547
      %v549 = vsub.f32 %v542, %v548
      %v550 = vmul.f32 %v549, 1.442695
      %v551 = vpow.pop %v550
      %553 = vset.pattern.permute.xlu0 0
      %554 = vperm.xlu0 %553, %v548
      %v555 = vpop.permute.xlu0 %554
      %v557 = vsub.f32 %v538, %v555
      %v558 = vmul.f32 %v557, 1.442695
      %v559 = vpow.pop %v558
      %v560 = vmul.f32 %v551, %v544
      %v561 = vsel %vm279, %v559, 0.0
      %562 = vadd.xlane.f32.xlu0 %v561
      %v563 = vpop.xlane.xlu0 %562
      %v564 = vadd.f32 %v560, %v563
      %565 = vst.msk [vmem:[%s543] sm:$0xff] %vm378, %v564
      %v566 = vld [vmem:[#allocation4] sm:$0xff]
      %568 = vset.pattern.permute.xlu0 0
      %569 = vperm.xlu0 %568, %v551
      %v570 = vpop.permute.xlu0 %569
      %v572 = vmul.f32 %v570, %v566
      %574 = vrot.lane.b32.xlu0 %v277, 120
      %v575 = vpop.permute.xlu0 %574
      %v578 = vsel %vm279, %v559, 0
      %580 = vmatprep.subr.mxu0 0.0
      %581 = vmatpush1.msra.mxu0 %v575
      %582 = vmatprep.subr.mxu0 0.0
      %583 = vmatpush1.msra.mxu0 0.0
      %584 = vmatprep.subr.mxu0 0.0
      %585 = vmatpush1.msra.mxu0 0.0
      %586 = vmatprep.subr.mxu0 0.0
      %587 = vmatpush1.msra.mxu0 0.0
      %588 = vmatprep.subr.mxu0 0.0
      %589 = vmatpush1.msra.mxu0 0.0
      %590 = vmatprep.subr.mxu0 0.0
      %591 = vmatpush1.msra.mxu0 0.0
      %592 = vmatprep.subr.mxu0 0.0
      %593 = vmatpush1.msra.mxu0 0.0
      %594 = vmatprep.subr.mxu0 0.0
      %595 = vmatpush1.msra.mxu0 0.0
      %596 = vmatprep.subr.mxu0 0.0
      %597 = vmatpush1.msra.mxu0 0.0
      %598 = vmatprep.subr.mxu0 0.0
      %599 = vmatpush1.msra.mxu0 0.0
      %600 = vmatprep.subr.mxu0 0.0
      %601 = vmatpush1.msra.mxu0 0.0
      %602 = vmatprep.subr.mxu0 0.0
      %603 = vmatpush1.msra.mxu0 0.0
      %604 = vmatprep.subr.mxu0 0.0
      %605 = vmatpush1.msra.mxu0 0.0
      %606 = vmatprep.subr.mxu0 0.0
      %607 = vmatpush1.msra.mxu0 0.0
      %608 = vmatprep.subr.mxu0 0.0
      %609 = vmatpush1.msra.mxu0 0.0
      %610 = vmatprep.subr.mxu0 0.0
      %611 = vmatpush1.msra.mxu0 0.0
      %612 = vmatprep.subr.mxu0 0.0
      %613 = vmatpush1.msra.mxu0 0.0
      %614 = vmatprep.subr.mxu0 0.0
      %615 = vmatpush1.msra.mxu0 0.0
      %616 = vmatprep.subr.mxu0 0.0
      %617 = vmatpush1.msra.mxu0 0.0
      %618 = vmatprep.subr.mxu0 0.0
      %619 = vmatpush1.msra.mxu0 0.0
      %620 = vmatprep.subr.mxu0 0.0
      %621 = vmatpush1.msra.mxu0 0.0
      %622 = vmatprep.subr.mxu0 0.0
      %623 = vmatpush1.msra.mxu0 0.0
      %624 = vmatprep.subr.mxu0 0.0
      %625 = vmatpush1.msra.mxu0 0.0
      %626 = vmatprep.subr.mxu0 0.0
      %627 = vmatpush1.msra.mxu0 0.0
      %628 = vmatprep.subr.mxu0 0.0
      %629 = vmatpush1.msra.mxu0 0.0
      %630 = vmatprep.subr.mxu0 0.0
      %631 = vmatpush1.msra.mxu0 0.0
      %632 = vmatprep.subr.mxu0 0.0
      %633 = vmatpush1.msra.mxu0 0.0
      %634 = vmatprep.subr.mxu0 0.0
      %635 = vmatpush1.msra.mxu0 0.0
      %636 = vmatprep.subr.mxu0 0.0
      %637 = vmatpush1.msra.mxu0 0.0
      %638 = vmatprep.subr.mxu0 0.0
      %639 = vmatpush1.msra.mxu0 0.0
      %640 = vmatprep.subr.mxu0 0.0
      %641 = vmatpush1.msra.mxu0 0.0
      %642 = vmatprep.subr.mxu0 0.0
      %643 = vmatpush1.msra.mxu0 0.0
      %644 = vmatprep.mubr.f32.mxu0 0.0
      %645 = vmatmul.mubr.f32.gmra.mrb[0].mxu0 %v578
      %v646 = vpop.f32.mrb[0].mxu0
      %v647 = vadd.f32 0.0, %v646
      %v648 = vpop.f32.mrb[0].mxu0
      %649 = vdwg.mxu0
      %651 = vrot.lane.b32.xlu0 %v647, 8
      %v652 = vpop.permute.xlu0 %651
      %v654 = vadd.f32 %v572, %v652
      %vm655 = vcmask 130112
      %656 = vst.msk [vmem:[#allocation4] sm:$0xff] %vm655, %v654
      %657 = vst.msk [vmem:[%s541] sm:$0xff] %vm378, %v548
      %658 = vrot.lane.b32.xlu0 %v278, 112
      %v659 = vpop.permute.xlu0 %658
      %660 = vrot.lane.b32.xlu0 %v276, 112
      %v661 = vpop.permute.xlu0 %660
      %v662 = vsel %vm279, %v659, 0
      %v664 = vsel %vm279, %v661, 0
      %666 = vmatprep.subr.mxu0 0.0
      %667 = vmatpush1.xpose.msra.mxu0 %v664
      %668 = vmatprep.subr.mxu0 0.0
      %669 = vmatpush1.xpose.msra.mxu0 0.0
      %670 = vmatprep.subr.mxu0 0.0
      %671 = vmatpush1.xpose.msra.mxu0 0.0
      %672 = vmatprep.subr.mxu0 0.0
      %673 = vmatpush1.xpose.msra.mxu0 0.0
      %674 = vmatprep.subr.mxu0 0.0
      %675 = vmatpush1.xpose.msra.mxu0 0.0
      %676 = vmatprep.subr.mxu0 0.0
      %677 = vmatpush1.xpose.msra.mxu0 0.0
      %678 = vmatprep.subr.mxu0 0.0
      %679 = vmatpush1.xpose.msra.mxu0 0.0
      %680 = vmatprep.subr.mxu0 0.0
      %681 = vmatpush1.xpose.msra.mxu0 0.0
      %682 = vmatprep.subr.mxu0 0.0
      %683 = vmatpush1.xpose.msra.mxu0 0.0
      %684 = vmatprep.subr.mxu0 0.0
      %685 = vmatpush1.xpose.msra.mxu0 0.0
      %686 = vmatprep.subr.mxu0 0.0
      %687 = vmatpush1.xpose.msra.mxu0 0.0
      %688 = vmatprep.subr.mxu0 0.0
      %689 = vmatpush1.xpose.msra.mxu0 0.0
      %690 = vmatprep.subr.mxu0 0.0
      %691 = vmatpush1.xpose.msra.mxu0 0.0
      %692 = vmatprep.subr.mxu0 0.0
      %693 = vmatpush1.xpose.msra.mxu0 0.0
      %694 = vmatprep.subr.mxu0 0.0
      %695 = vmatpush1.xpose.msra.mxu0 0.0
      %696 = vmatprep.subr.mxu0 0.0
      %697 = vmatpush1.xpose.msra.mxu0 0.0
      %698 = vmatprep.subr.mxu0 0.0
      %699 = vmatpush1.xpose.msra.mxu0 0.0
      %700 = vmatprep.subr.mxu0 0.0
      %701 = vmatpush1.xpose.msra.mxu0 0.0
      %702 = vmatprep.subr.mxu0 0.0
      %703 = vmatpush1.xpose.msra.mxu0 0.0
      %704 = vmatprep.subr.mxu0 0.0
      %705 = vmatpush1.xpose.msra.mxu0 0.0
      %706 = vmatprep.subr.mxu0 0.0
      %707 = vmatpush1.xpose.msra.mxu0 0.0
      %708 = vmatprep.subr.mxu0 0.0
      %709 = vmatpush1.xpose.msra.mxu0 0.0
      %710 = vmatprep.subr.mxu0 0.0
      %711 = vmatpush1.xpose.msra.mxu0 0.0
      %712 = vmatprep.subr.mxu0 0.0
      %713 = vmatpush1.xpose.msra.mxu0 0.0
      %714 = vmatprep.subr.mxu0 0.0
      %715 = vmatpush1.xpose.msra.mxu0 0.0
      %716 = vmatprep.subr.mxu0 0.0
      %717 = vmatpush1.xpose.msra.mxu0 0.0
      %718 = vmatprep.subr.mxu0 0.0
      %719 = vmatpush1.xpose.msra.mxu0 0.0
      %720 = vmatprep.subr.mxu0 0.0
      %721 = vmatpush1.xpose.msra.mxu0 0.0
      %722 = vmatprep.subr.mxu0 0.0
      %723 = vmatpush1.xpose.msra.mxu0 0.0
      %724 = vmatprep.subr.mxu0 0.0
      %725 = vmatpush1.xpose.msra.mxu0 0.0
      %726 = vmatprep.subr.mxu0 0.0
      %727 = vmatpush1.xpose.msra.mxu0 0.0
      %728 = vmatprep.subr.mxu0 0.0
      %729 = vmatpush1.xpose.msra.mxu0 0.0
      %730 = vmatprep.mubr.f32.mxu0 0.0
      %731 = vmatmul.mubr.f32.gmra.mrb[0].mxu0 %v662
      %v732 = vpop.f32.mrb[0].mxu0
      %v733 = vadd.f32 0.0, %v732
      %v734 = vpop.f32.mrb[0].mxu0
      %735 = vdwg.mxu0
      %s736 = scalar_lea.vmem [#allocation2], 16
      %v737 = vld [vmem:[%s736] sm:$0xff]
      %s738 = scalar_lea.vmem [#allocation3], 16
      %v739 = vld [vmem:[%s738] sm:$0xff]
      %v740 = vsel %vm279, %v733, -inf
      %741 = vmax.xlane.f32.xlu0 %v740
      %v742 = vpop.xlane.xlu0 %741
      %v743 = vmax.f32 %v737, %v742
      %v744 = vsub.f32 %v737, %v743
      %v745 = vmul.f32 %v744, 1.442695
      %v746 = vpow.pop %v745
      %748 = vset.pattern.permute.xlu0 0
      %749 = vperm.xlu0 %748, %v743
      %v750 = vpop.permute.xlu0 %749
      %v752 = vsub.f32 %v733, %v750
      %v753 = vmul.f32 %v752, 1.442695
      %v754 = vpow.pop %v753
      %v755 = vmul.f32 %v746, %v739
      %v756 = vsel %vm279, %v754, 0.0
      %757 = vadd.xlane.f32.xlu0 %v756
      %v758 = vpop.xlane.xlu0 %757
      %v759 = vadd.f32 %v755, %v758
      %760 = vst.msk [vmem:[%s738] sm:$0xff] %vm378, %v759
      %v761 = vld [vmem:[#allocation4] sm:$0xff]
      %763 = vset.pattern.permute.xlu0 0
      %764 = vperm.xlu0 %763, %v746
      %v765 = vpop.permute.xlu0 %764
      %v767 = vmul.f32 %v765, %v761
      %768 = vrot.lane.b32.xlu0 %v277, 112
      %v769 = vpop.permute.xlu0 %768
      %v772 = vsel %vm279, %v754, 0
      %774 = vmatprep.subr.mxu0 0.0
      %775 = vmatpush1.msra.mxu0 %v769
      %776 = vmatprep.subr.mxu0 0.0
      %777 = vmatpush1.msra.mxu0 0.0
      %778 = vmatprep.subr.mxu0 0.0
      %779 = vmatpush1.msra.mxu0 0.0
      %780 = vmatprep.subr.mxu0 0.0
      %781 = vmatpush1.msra.mxu0 0.0
      %782 = vmatprep.subr.mxu0 0.0
      %783 = vmatpush1.msra.mxu0 0.0
      %784 = vmatprep.subr.mxu0 0.0
      %785 = vmatpush1.msra.mxu0 0.0
      %786 = vmatprep.subr.mxu0 0.0
      %787 = vmatpush1.msra.mxu0 0.0
      %788 = vmatprep.subr.mxu0 0.0
      %789 = vmatpush1.msra.mxu0 0.0
      %790 = vmatprep.subr.mxu0 0.0
      %791 = vmatpush1.msra.mxu0 0.0
      %792 = vmatprep.subr.mxu0 0.0
      %793 = vmatpush1.msra.mxu0 0.0
      %794 = vmatprep.subr.mxu0 0.0
      %795 = vmatpush1.msra.mxu0 0.0
      %796 = vmatprep.subr.mxu0 0.0
      %797 = vmatpush1.msra.mxu0 0.0
      %798 = vmatprep.subr.mxu0 0.0
      %799 = vmatpush1.msra.mxu0 0.0
      %800 = vmatprep.subr.mxu0 0.0
      %801 = vmatpush1.msra.mxu0 0.0
      %802 = vmatprep.subr.mxu0 0.0
      %803 = vmatpush1.msra.mxu0 0.0
      %804 = vmatprep.subr.mxu0 0.0
      %805 = vmatpush1.msra.mxu0 0.0
      %806 = vmatprep.subr.mxu0 0.0
      %807 = vmatpush1.msra.mxu0 0.0
      %808 = vmatprep.subr.mxu0 0.0
      %809 = vmatpush1.msra.mxu0 0.0
      %810 = vmatprep.subr.mxu0 0.0
      %811 = vmatpush1.msra.mxu0 0.0
      %812 = vmatprep.subr.mxu0 0.0
      %813 = vmatpush1.msra.mxu0 0.0
      %814 = vmatprep.subr.mxu0 0.0
      %815 = vmatpush1.msra.mxu0 0.0
      %816 = vmatprep.subr.mxu0 0.0
      %817 = vmatpush1.msra.mxu0 0.0
      %818 = vmatprep.subr.mxu0 0.0
      %819 = vmatpush1.msra.mxu0 0.0
      %820 = vmatprep.subr.mxu0 0.0
      %821 = vmatpush1.msra.mxu0 0.0
      %822 = vmatprep.subr.mxu0 0.0
      %823 = vmatpush1.msra.mxu0 0.0
      %824 = vmatprep.subr.mxu0 0.0
      %825 = vmatpush1.msra.mxu0 0.0
      %826 = vmatprep.subr.mxu0 0.0
      %827 = vmatpush1.msra.mxu0 0.0
      %828 = vmatprep.subr.mxu0 0.0
      %829 = vmatpush1.msra.mxu0 0.0
      %830 = vmatprep.subr.mxu0 0.0
      %831 = vmatpush1.msra.mxu0 0.0
      %832 = vmatprep.subr.mxu0 0.0
      %833 = vmatpush1.msra.mxu0 0.0
      %834 = vmatprep.subr.mxu0 0.0
      %835 = vmatpush1.msra.mxu0 0.0
      %836 = vmatprep.subr.mxu0 0.0
      %837 = vmatpush1.msra.mxu0 0.0
      %838 = vmatprep.mubr.f32.mxu0 0.0
      %839 = vmatmul.mubr.f32.gmra.mrb[0].mxu0 %v772
      %v840 = vpop.f32.mrb[0].mxu0
      %v841 = vadd.f32 0.0, %v840
      %v842 = vpop.f32.mrb[0].mxu0
      %843 = vdwg.mxu0
      %845 = vrot.lane.b32.xlu0 %v841, 16
      %v846 = vpop.permute.xlu0 %845
      %v848 = vadd.f32 %v767, %v846
      %vm849 = vcmask 195712
      %850 = vst.msk [vmem:[#allocation4] sm:$0xff] %vm849, %v848
      %851 = vst.msk [vmem:[%s736] sm:$0xff] %vm378, %v743
      %852 = vrot.lane.b32.xlu0 %v278, 104
      %v853 = vpop.permute.xlu0 %852
      %854 = vrot.lane.b32.xlu0 %v276, 104
      %v855 = vpop.permute.xlu0 %854
      %v856 = vsel %vm279, %v853, 0
      %v858 = vsel %vm279, %v855, 0
      %860 = vmatprep.subr.mxu0 0.0
      %861 = vmatpush1.xpose.msra.mxu0 %v858
      %862 = vmatprep.subr.mxu0 0.0
      %863 = vmatpush1.xpose.msra.mxu0 0.0
      %864 = vmatprep.subr.mxu0 0.0
      %865 = vmatpush1.xpose.msra.mxu0 0.0
      %866 = vmatprep.subr.mxu0 0.0
      %867 = vmatpush1.xpose.msra.mxu0 0.0
      %868 = vmatprep.subr.mxu0 0.0
      %869 = vmatpush1.xpose.msra.mxu0 0.0
      %870 = vmatprep.subr.mxu0 0.0
      %871 = vmatpush1.xpose.msra.mxu0 0.0
      %872 = vmatprep.subr.mxu0 0.0
      %873 = vmatpush1.xpose.msra.mxu0 0.0
      %874 = vmatprep.subr.mxu0 0.0
      %875 = vmatpush1.xpose.msra.mxu0 0.0
      %876 = vmatprep.subr.mxu0 0.0
      %877 = vmatpush1.xpose.msra.mxu0 0.0
      %878 = vmatprep.subr.mxu0 0.0
      %879 = vmatpush1.xpose.msra.mxu0 0.0
      %880 = vmatprep.subr.mxu0 0.0
      %881 = vmatpush1.xpose.msra.mxu0 0.0
      %882 = vmatprep.subr.mxu0 0.0
      %883 = vmatpush1.xpose.msra.mxu0 0.0
      %884 = vmatprep.subr.mxu0 0.0
      %885 = vmatpush1.xpose.msra.mxu0 0.0
      %886 = vmatprep.subr.mxu0 0.0
      %887 = vmatpush1.xpose.msra.mxu0 0.0
      %888 = vmatprep.subr.mxu0 0.0
      %889 = vmatpush1.xpose.msra.mxu0 0.0
      %890 = vmatprep.subr.mxu0 0.0
      %891 = vmatpush1.xpose.msra.mxu0 0.0
      %892 = vmatprep.subr.mxu0 0.0
      %893 = vmatpush1.xpose.msra.mxu0 0.0
      %894 = vmatprep.subr.mxu0 0.0
      %895 = vmatpush1.xpose.msra.mxu0 0.0
      %896 = vmatprep.subr.mxu0 0.0
      %897 = vmatpush1.xpose.msra.mxu0 0.0
      %898 = vmatprep.subr.mxu0 0.0
      %899 = vmatpush1.xpose.msra.mxu0 0.0
      %900 = vmatprep.subr.mxu0 0.0
      %901 = vmatpush1.xpose.msra.mxu0 0.0
      %902 = vmatprep.subr.mxu0 0.0
      %903 = vmatpush1.xpose.msra.mxu0 0.0
      %904 = vmatprep.subr.mxu0 0.0
      %905 = vmatpush1.xpose.msra.mxu0 0.0
      %906 = vmatprep.subr.mxu0 0.0
      %907 = vmatpush1.xpose.msra.mxu0 0.0
      %908 = vmatprep.subr.mxu0 0.0
      %909 = vmatpush1.xpose.msra.mxu0 0.0
      %910 = vmatprep.subr.mxu0 0.0
      %911 = vmatpush1.xpose.msra.mxu0 0.0
      %912 = vmatprep.subr.mxu0 0.0
      %913 = vmatpush1.xpose.msra.mxu0 0.0
      %914 = vmatprep.subr.mxu0 0.0
      %915 = vmatpush1.xpose.msra.mxu0 0.0
      %916 = vmatprep.subr.mxu0 0.0
      %917 = vmatpush1.xpose.msra.mxu0 0.0
      %918 = vmatprep.subr.mxu0 0.0
      %919 = vmatpush1.xpose.msra.mxu0 0.0
      %920 = vmatprep.subr.mxu0 0.0
      %921 = vmatpush1.xpose.msra.mxu0 0.0
      %922 = vmatprep.subr.mxu0 0.0
      %923 = vmatpush1.xpose.msra.mxu0 0.0
      %924 = vmatprep.mubr.f32.mxu0 0.0
      %925 = vmatmul.mubr.f32.gmra.mrb[0].mxu0 %v856
      %v926 = vpop.f32.mrb[0].mxu0
      %v927 = vadd.f32 0.0, %v926
      %v928 = vpop.f32.mrb[0].mxu0
      %929 = vdwg.mxu0
      %s930 = scalar_lea.vmem [#allocation2], 24
      %v931 = vld [vmem:[%s930] sm:$0xff]
      %s932 = scalar_lea.vmem [#allocation3], 24
      %v933 = vld [vmem:[%s932] sm:$0xff]
      %v934 = vsel %vm279, %v927, -inf
      %935 = vmax.xlane.f32.xlu0 %v934
      %v936 = vpop.xlane.xlu0 %935
      %v937 = vmax.f32 %v931, %v936
      %v938 = vsub.f32 %v931, %v937
      %v939 = vmul.f32 %v938, 1.442695
      %v940 = vpow.pop %v939
      %942 = vset.pattern.permute.xlu0 0
      %943 = vperm.xlu0 %942, %v937
      %v944 = vpop.permute.xlu0 %943
      %v946 = vsub.f32 %v927, %v944
      %v947 = vmul.f32 %v946, 1.442695
      %v948 = vpow.pop %v947
      %v949 = vmul.f32 %v940, %v933
      %v950 = vsel %vm279, %v948, 0.0
      %951 = vadd.xlane.f32.xlu0 %v950
      %v952 = vpop.xlane.xlu0 %951
      %v953 = vadd.f32 %v949, %v952
      %954 = vst.msk [vmem:[%s932] sm:$0xff] %vm378, %v953
      %v955 = vld [vmem:[#allocation4] sm:$0xff]
      %957 = vset.pattern.permute.xlu0 0
      %958 = vperm.xlu0 %957, %v940
      %v959 = vpop.permute.xlu0 %958
      %v961 = vmul.f32 %v959, %v955
      %962 = vrot.lane.b32.xlu0 %v277, 104
      %v963 = vpop.permute.xlu0 %962
      %v966 = vsel %vm279, %v948, 0
      %968 = vmatprep.subr.mxu0 0.0
      %969 = vmatpush1.msra.mxu0 %v963
      %970 = vmatprep.subr.mxu0 0.0
      %971 = vmatpush1.msra.mxu0 0.0
      %972 = vmatprep.subr.mxu0 0.0
      %973 = vmatpush1.msra.mxu0 0.0
      %974 = vmatprep.subr.mxu0 0.0
      %975 = vmatpush1.msra.mxu0 0.0
      %976 = vmatprep.subr.mxu0 0.0
      %977 = vmatpush1.msra.mxu0 0.0
      %978 = vmatprep.subr.mxu0 0.0
      %979 = vmatpush1.msra.mxu0 0.0
      %980 = vmatprep.subr.mxu0 0.0
      %981 = vmatpush1.msra.mxu0 0.0
      %982 = vmatprep.subr.mxu0 0.0
      %983 = vmatpush1.msra.mxu0 0.0
      %984 = vmatprep.subr.mxu0 0.0
      %985 = vmatpush1.msra.mxu0 0.0
      %986 = vmatprep.subr.mxu0 0.0
      %987 = vmatpush1.msra.mxu0 0.0
      %988 = vmatprep.subr.mxu0 0.0
      %989 = vmatpush1.msra.mxu0 0.0
      %990 = vmatprep.subr.mxu0 0.0
      %991 = vmatpush1.msra.mxu0 0.0
      %992 = vmatprep.subr.mxu0 0.0
      %993 = vmatpush1.msra.mxu0 0.0
      %994 = vmatprep.subr.mxu0 0.0
      %995 = vmatpush1.msra.mxu0 0.0
      %996 = vmatprep.subr.mxu0 0.0
      %997 = vmatpush1.msra.mxu0 0.0
      %998 = vmatprep.subr.mxu0 0.0
      %999 = vmatpush1.msra.mxu0 0.0
      %1000 = vmatprep.subr.mxu0 0.0
      %1001 = vmatpush1.msra.mxu0 0.0
      %1002 = vmatprep.subr.mxu0 0.0
      %1003 = vmatpush1.msra.mxu0 0.0
      %1004 = vmatprep.subr.mxu0 0.0
      %1005 = vmatpush1.msra.mxu0 0.0
      %1006 = vmatprep.subr.mxu0 0.0
      %1007 = vmatpush1.msra.mxu0 0.0
      %1008 = vmatprep.subr.mxu0 0.0
      %1009 = vmatpush1.msra.mxu0 0.0
      %1010 = vmatprep.subr.mxu0 0.0
      %1011 = vmatpush1.msra.mxu0 0.0
      %1012 = vmatprep.subr.mxu0 0.0
      %1013 = vmatpush1.msra.mxu0 0.0
      %1014 = vmatprep.subr.mxu0 0.0
      %1015 = vmatpush1.msra.mxu0 0.0
      %1016 = vmatprep.subr.mxu0 0.0
      %1017 = vmatpush1.msra.mxu0 0.0
      %1018 = vmatprep.subr.mxu0 0.0
      %1019 = vmatpush1.msra.mxu0 0.0
      %1020 = vmatprep.subr.mxu0 0.0
      %1021 = vmatpush1.msra.mxu0 0.0
      %1022 = vmatprep.subr.mxu0 0.0
      %1023 = vmatpush1.msra.mxu0 0.0
      %1024 = vmatprep.subr.mxu0 0.0
      %1025 = vmatpush1.msra.mxu0 0.0
      %1026 = vmatprep.subr.mxu0 0.0
      %1027 = vmatpush1.msra.mxu0 0.0
      %1028 = vmatprep.subr.mxu0 0.0
      %1029 = vmatpush1.msra.mxu0 0.0
      %1030 = vmatprep.subr.mxu0 0.0
      %1031 = vmatpush1.msra.mxu0 0.0
      %1032 = vmatprep.mubr.f32.mxu0 0.0
      %1033 = vmatmul.mubr.f32.gmra.mrb[0].mxu0 %v966
      %v1034 = vpop.f32.mrb[0].mxu0
      %v1035 = vadd.f32 0.0, %v1034
      %v1036 = vpop.f32.mrb[0].mxu0
      %1037 = vdwg.mxu0
      %1039 = vrot.lane.b32.xlu0 %v1035, 24
      %v1040 = vpop.permute.xlu0 %1039
      %v1042 = vadd.f32 %v961, %v1040
      %vm1043 = vcmask 261312
      %1044 = vst.msk [vmem:[#allocation4] sm:$0xff] %vm1043, %v1042
      %1045 = vst.msk [vmem:[%s930] sm:$0xff] %vm378, %v937
      // Predicated region
      $region37: #{transformer_encoder_forward.17} parent=31 // pred_check
        %p1046 = pneg %p260
      $region38: #{transformer_encoder_forward.17} parent=31 // pred_check_branch
        %1048 = sbr.rel (%p1046) target = $region40
      $region39: #{transformer_encoder_forward.17} parent=31 // pred_region
        %v1049 = vld [vmem:[#allocation4] sm:$0xff]
        %v1050 = vld [vmem:[#allocation3] sm:$0xff]
        %1052 = vset.pattern.permute.xlu0 0
        %1053 = vperm.xlu0 %1052, %v1050
        %v1054 = vpop.permute.xlu0 %1053
        %v1056 = vrcp.pop %v1054
        %v1057 = vmul.f32 %v1049, %v1056
        %1058 = vst.msk [vmem:[#allocation4] sm:$0xff] %vm279, %v1057
        %v1059 = vld [vmem:[#allocation4] sm:$0xff]
        %v1060 = vld [vmem:[%s543] sm:$0xff]
        %1062 = vset.pattern.permute.xlu0 0
        %1063 = vperm.xlu0 %1062, %v1060
        %v1064 = vpop.permute.xlu0 %1063
        %v1066 = vrcp.pop %v1064
        %v1067 = vmul.f32 %v1059, %v1066
        %1068 = vst.msk [vmem:[#allocation4] sm:$0xff] %vm655, %v1067
        %v1069 = vld [vmem:[#allocation4] sm:$0xff]
        %v1070 = vld [vmem:[%s738] sm:$0xff]
        %1072 = vset.pattern.permute.xlu0 0
        %1073 = vperm.xlu0 %1072, %v1070
        %v1074 = vpop.permute.xlu0 %1073
        %v1076 = vrcp.pop %v1074
        %v1077 = vmul.f32 %v1069, %v1076
        %1078 = vst.msk [vmem:[#allocation4] sm:$0xff] %vm849, %v1077
        %v1079 = vld [vmem:[#allocation4] sm:$0xff]
        %v1080 = vld [vmem:[%s932] sm:$0xff]
        %1082 = vset.pattern.permute.xlu0 0
        %1083 = vperm.xlu0 %1082, %v1080
        %v1084 = vpop.permute.xlu0 %1083
        %v1086 = vrcp.pop %v1084
        %v1087 = vmul.f32 %v1079, %v1086
        %1088 = vst.msk [vmem:[#allocation4] sm:$0xff] %vm1043, %v1087
        %v1089 = vld [vmem:[#allocation4] sm:$0xff]
        %vm1090 = vcmask 261120
        %1091 = vst.msk [vmem:[%s259] sm:$0xff] %vm1090, %v1089
      $region40: #{transformer_encoder_forward.17} parent=31 // pred_fallthru
        _
      %p1092 = scmp.lt.s32.totalorder %s19, 1
      %s1093 = scalar_select %p1092, %s19, 1
      %p1094 = scmp.lt.s32.totalorder %s20, 0
      %s1095 = scalar_select %p1094, %s20, 0
      %s1096 = sadd.s32 %s1095, %s1093
      %s1097 = smul.addr %s1096, 8
      %s1098 = scalar_lea.vmem %s3, %s1097
      // Predicated region
      $region41: #{transformer_encoder_forward.17} parent=31 // pred_check
        %p1099 = pneg %p137
      $region42: #{transformer_encoder_forward.17} parent=31 // pred_check_branch
        %1101 = sbr.rel (%p1099) target = $region44
      $region43: #{transformer_encoder_forward.17} parent=31 // pred_region
        _
      $region44: #{transformer_encoder_forward.17} parent=31 // pred_fallthru
        _
    $region32: #{transformer_encoder_forward.17} parent=5 // pred_fallthru
      _
    %p1102 = scmp.le.s32.totalorder 2, %s9
    // Predicated region
    $region45: #{transformer_encoder_forward.17} parent=5 // pred_check
      %p1103 = pneg %p1102
    $region46: #{transformer_encoder_forward.17} parent=5 // pred_check_branch
      %1105 = sbr.rel (%p1103) target = $region48
    $region47: #{transformer_encoder_forward.17} parent=5 // pred_region
      %s1106 = ssub.s32 %s9, 2
      // Predicated region
      $region49: #{transformer_encoder_forward.17} parent=47 // pred_check
        %p1107 = pneg %p143
      $region50: #{transformer_encoder_forward.17} parent=47 // pred_check_branch
        %1109 = sbr.rel (%p1107) target = $region52
      $region51: #{transformer_encoder_forward.17} parent=47 // pred_region
        %p1110 = scmp.lt.s32.totalorder %s22, 1
        %s1111 = scalar_select %p1110, %s22, 1
        %p1112 = scmp.lt.s32.totalorder %s23, 0
        %s1113 = scalar_select %p1112, %s23, 0
        %s1114 = sadd.s32 %s1113, %s1111
        %s1115 = smul.addr %s1114, 8
        %s1116 = scalar_lea.vmem %s3, %s1115
      $region52: #{transformer_encoder_forward.17} parent=47 // pred_fallthru
        _
    $region48: #{transformer_encoder_forward.17} parent=5 // pred_fallthru
      _
  $region6: #{transformer_encoder_forward.17} parent=0 // loop_footer
    %s13 = sadd.s32 1, %s9
  $region7: #{transformer_encoder_forward.17} parent=0 // loop_footer_branch
    %8 = sbr.rel target = $region3
  $region8: #{transformer_encoder_forward.17} parent=0 // loop_exit
    _

// kernel: transformer_encoder_forward.20
$region0: #{transformer_encoder_forward.20}
  #allocation0 [shape = 'u32[]', space=smem, size = 0x4, offset = 0x4, fixed_abs, tag = 'smem constant byte address 0x4 - core index']
  #allocation1 [shape = 'u32[144,128]{1,0:T(1,128)}', space=vmem, size = 0x12000, scoped, tag = 'internal scratch']
  #allocation2 [shape = 'f32[16,32]{1,0:T(8,128)}', space=vmem, size = 0x2000, scoped, tag = 'scratch operand']
  %s0 = inlined_call_operand.vmem [shape: f32[16,64], index: 0, kind: input, shape index: {}]
  %s1 = inlined_call_operand.vmem [shape: f32[64,32], index: 1, kind: input, shape index: {}]
  %s2 = inlined_call_operand.vmem [shape: f32[1,32], index: 2, kind: input, shape index: {}]
  %s3 = inlined_call_operand.vmem [shape: f32[16,32], index: 3, kind: input, shape index: {}]
  %s4 = inlined_call_operand.vmem [shape: f32[1,32], index: 4, kind: input, shape index: {}]
  %s5 = inlined_call_operand.vmem [shape: f32[1,32], index: 5, kind: input, shape index: {}]
  %s6 = inlined_call_operand.vmem [shape: f32[16,32], index: 6, kind: output, shape index: {}]
  %s7 = sld [smem:[#allocation0]]
  $region42: #{transformer_encoder_forward.20} parent=0
    _
  %s9 = ssub.s32 1, %s7
  %s10 = scalar_select 0, %s9, %s7
  // Predicated region
  $region2: #{transformer_encoder_forward.20} parent=0 // pred_check
    _
  $region3: #{transformer_encoder_forward.20} parent=0 // pred_check_branch
    %12 = sbr.rel (0) target = $region5
  $region4: #{transformer_encoder_forward.20} parent=0 // pred_region
    _
  $region5: #{transformer_encoder_forward.20} parent=0 // pred_fallthru
    _
  // Predicated region
  $region6: #{transformer_encoder_forward.20} parent=0 // pred_check
    _
  $region7: #{transformer_encoder_forward.20} parent=0 // pred_check_branch
    %14 = sbr.rel (0) target = $region9
  $region8: #{transformer_encoder_forward.20} parent=0 // pred_region
    _
  $region9: #{transformer_encoder_forward.20} parent=0 // pred_fallthru
    _
  // Predicated region
  $region10: #{transformer_encoder_forward.20} parent=0 // pred_check
    _
  $region11: #{transformer_encoder_forward.20} parent=0 // pred_check_branch
    %16 = sbr.rel (0) target = $region13
  $region12: #{transformer_encoder_forward.20} parent=0 // pred_region
    _
  $region13: #{transformer_encoder_forward.20} parent=0 // pred_fallthru
    _
  // Predicated region
  $region14: #{transformer_encoder_forward.20} parent=0 // pred_check
    _
  $region15: #{transformer_encoder_forward.20} parent=0 // pred_check_branch
    %18 = sbr.rel (0) target = $region17
  $region16: #{transformer_encoder_forward.20} parent=0 // pred_region
    _
  $region17: #{transformer_encoder_forward.20} parent=0 // pred_fallthru
    _
  // Predicated region
  $region18: #{transformer_encoder_forward.20} parent=0 // pred_check
    _
  $region19: #{transformer_encoder_forward.20} parent=0 // pred_check_branch
    %20 = sbr.rel (0) target = $region21
  $region20: #{transformer_encoder_forward.20} parent=0 // pred_region
    _
  $region21: #{transformer_encoder_forward.20} parent=0 // pred_fallthru
    _
  // Predicated region
  $region22: #{transformer_encoder_forward.20} parent=0 // pred_check
    _
  $region23: #{transformer_encoder_forward.20} parent=0 // pred_check_branch
    %22 = sbr.rel (0) target = $region25
  $region24: #{transformer_encoder_forward.20} parent=0 // pred_region
    _
  $region25: #{transformer_encoder_forward.20} parent=0 // pred_fallthru
    _
  %p23 = scmp.eq.s32.totalorder 0, 0
  // Predicated region
  $region26: #{transformer_encoder_forward.20} parent=0 // pred_check
    %p24 = pneg %p23
  $region27: #{transformer_encoder_forward.20} parent=0 // pred_check_branch
    %26 = sbr.rel (%p24) target = $region29
  $region28: #{transformer_encoder_forward.20} parent=0 // pred_region
    %vm27 = vcmask 261120
    %28 = vst.msk [vmem:[#allocation2] sm:$0xff] %vm27, 0.0
    %29 = vst.msk [vmem:[#allocation2 + $0x8] sm:$0xff] %vm27, 0.0
  $region29: #{transformer_encoder_forward.20} parent=0 // pred_fallthru
    _
  %v30 = vld [vmem:[#allocation2] sm:$0xff]
  %v31 = vld [vmem:[#allocation2 + $0x8] sm:$0xff]
  %v32 = vld [vmem:[%s0] sm:$0xff]
  %v33 = vld [vmem:[%s0 + $0x8] sm:$0xff]
  %v34 = vld [vmem:[%s1] sm:$0xff]
  %v35 = vld [vmem:[%s1 + $0x8] sm:$0xff]
  %v36 = vld [vmem:[%s1 + $0x10] sm:$0xff]
  %v37 = vld [vmem:[%s1 + $0x18] sm:$0xff]
  %v38 = vld [vmem:[%s1 + $0x20] sm:$0xff]
  %v39 = vld [vmem:[%s1 + $0x28] sm:$0xff]
  %v40 = vld [vmem:[%s1 + $0x30] sm:$0xff]
  %v41 = vld [vmem:[%s1 + $0x38] sm:$0xff]
  %vm42 = vcmask 523264
  %v44 = vsel %vm42, %v32, 0
  %v47 = vsel %vm42, %v33, 0
  %49 = vmatprep.subr.mxu0 0.0
  %50 = vmatpush1.msra.mxu0 %v34
  %51 = vmatprep.subr.mxu0 0.0
  %52 = vmatpush1.msra.mxu0 %v35
  %53 = vmatprep.subr.mxu0 0.0
  %54 = vmatpush1.msra.mxu0 %v36
  %55 = vmatprep.subr.mxu0 0.0
  %56 = vmatpush1.msra.mxu0 %v37
  %57 = vmatprep.subr.mxu0 0.0
  %58 = vmatpush1.msra.mxu0 %v38
  %59 = vmatprep.subr.mxu0 0.0
  %60 = vmatpush1.msra.mxu0 %v39
  %61 = vmatprep.subr.mxu0 0.0
  %62 = vmatpush1.msra.mxu0 %v40
  %63 = vmatprep.subr.mxu0 0.0
  %64 = vmatpush1.msra.mxu0 %v41
  %65 = vmatprep.subr.mxu0 0.0
  %66 = vmatpush1.msra.mxu0 0.0
  %67 = vmatprep.subr.mxu0 0.0
  %68 = vmatpush1.msra.mxu0 0.0
  %69 = vmatprep.subr.mxu0 0.0
  %70 = vmatpush1.msra.mxu0 0.0
  %71 = vmatprep.subr.mxu0 0.0
  %72 = vmatpush1.msra.mxu0 0.0
  %73 = vmatprep.subr.mxu0 0.0
  %74 = vmatpush1.msra.mxu0 0.0
  %75 = vmatprep.subr.mxu0 0.0
  %76 = vmatpush1.msra.mxu0 0.0
  %77 = vmatprep.subr.mxu0 0.0
  %78 = vmatpush1.msra.mxu0 0.0
  %79 = vmatprep.subr.mxu0 0.0
  %80 = vmatpush1.msra.mxu0 0.0
  %81 = vmatprep.subr.mxu0 0.0
  %82 = vmatpush1.msra.mxu0 0.0
  %83 = vmatprep.subr.mxu0 0.0
  %84 = vmatpush1.msra.mxu0 0.0
  %85 = vmatprep.subr.mxu0 0.0
  %86 = vmatpush1.msra.mxu0 0.0
  %87 = vmatprep.subr.mxu0 0.0
  %88 = vmatpush1.msra.mxu0 0.0
  %89 = vmatprep.subr.mxu0 0.0
  %90 = vmatpush1.msra.mxu0 0.0
  %91 = vmatprep.subr.mxu0 0.0
  %92 = vmatpush1.msra.mxu0 0.0
  %93 = vmatprep.subr.mxu0 0.0
  %94 = vmatpush1.msra.mxu0 0.0
  %95 = vmatprep.subr.mxu0 0.0
  %96 = vmatpush1.msra.mxu0 0.0
  %97 = vmatprep.subr.mxu0 0.0
  %98 = vmatpush1.msra.mxu0 0.0
  %99 = vmatprep.subr.mxu0 0.0
  %100 = vmatpush1.msra.mxu0 0.0
  %101 = vmatprep.subr.mxu0 0.0
  %102 = vmatpush1.msra.mxu0 0.0
  %103 = vmatprep.subr.mxu0 0.0
  %104 = vmatpush1.msra.mxu0 0.0
  %105 = vmatprep.subr.mxu0 0.0
  %106 = vmatpush1.msra.mxu0 0.0
  %107 = vmatprep.subr.mxu0 0.0
  %108 = vmatpush1.msra.mxu0 0.0
  %109 = vmatprep.subr.mxu0 0.0
  %110 = vmatpush1.msra.mxu0 0.0
  %111 = vmatprep.subr.mxu0 0.0
  %112 = vmatpush1.msra.mxu0 0.0
  %113 = vmatprep.mubr.f32.mxu0 0.0
  %114 = vmatmul.mubr.f32.gmra.mrb[0].mxu0 %v44
  %v115 = vpop.f32.mrb[0].mxu0
  %v116 = vadd.f32 0.0, %v115
  %v117 = vpop.f32.mrb[0].mxu0
  %118 = vmatprep.mubr.f32.mxu0 0.0
  %119 = vmatmul.mubr.f32.gmra.mrb[0].mxu0 %v47
  %v120 = vpop.f32.mrb[0].mxu0
  %v121 = vadd.f32 0.0, %v120
  %v122 = vpop.f32.mrb[0].mxu0
  %123 = vdwg.mxu0
  %v124 = vadd.f32 %v30, %v116
  %v125 = vadd.f32 %v31, %v121
  %vm126 = vcmask 261120
  %127 = vst.msk [vmem:[#allocation2] sm:$0xff] %vm126, %v124
  %128 = vst.msk [vmem:[#allocation2 + $0x8] sm:$0xff] %vm126, %v125
  // Predicated region
  $region30: #{transformer_encoder_forward.20} parent=0 // pred_check
    %p129 = pneg %p23
  $region31: #{transformer_encoder_forward.20} parent=0 // pred_check_branch
    %131 = sbr.rel (%p129) target = $region33
  $region32: #{transformer_encoder_forward.20} parent=0 // pred_region
    %v132 = vld [vmem:[#allocation2] sm:$0xff]
    %v133 = vld [vmem:[#allocation2 + $0x8] sm:$0xff]
    %v134 = vld [vmem:[%s2] sm:$0x1]
    %v136 = vlaneseq
    %v137 = vshrl.u32 %v136, 7
    %v138 = vsub.s32 0, %v137
    %v139 = vrot.slane %v134, %v138
    %v141 = vadd.f32 %v132, %v139
    %v142 = vadd.f32 %v133, %v139
    %v143 = vld [vmem:[%s3] sm:$0xff]
    %v144 = vld [vmem:[%s3 + $0x8] sm:$0xff]
    %v145 = vadd.f32 %v141, %v143
    %v146 = vadd.f32 %v142, %v144
    %v147 = vsel %vm126, %v145, 0.0
    %148 = vadd.xlane.f32.xlu0 %v147
    %v149 = vpop.xlane.xlu0 %148
    %v150 = vsel %vm126, %v146, 0.0
    %151 = vadd.xlane.f32.xlu0 %v150
    %v152 = vpop.xlane.xlu0 %151
    %v153 = vrcp.pop 32.0
    %v154 = vmul.f32 %v149, %v153
    %v155 = vmul.f32 %v152, %v153
    %v156 = vsub.f32 %v145, %v154
    %v157 = vsub.f32 %v146, %v155
    %v158 = vmul.f32 %v156, %v156
    %v159 = vmul.f32 %v157, %v157
    %v160 = vsel %vm126, %v158, 0.0
    %161 = vadd.xlane.f32.xlu0 %v160
    %v162 = vpop.xlane.xlu0 %161
    %v163 = vsel %vm126, %v159, 0.0
    %164 = vadd.xlane.f32.xlu0 %v163
    %v165 = vpop.xlane.xlu0 %164
    %v166 = vmul.f32 %v162, %v153
    %v167 = vmul.f32 %v165, %v153
    %v168 = vadd.f32 %v166, 1e-05
    %v169 = vadd.f32 %v167, 1e-05
    %v170 = vrsqrt.pop %v168
    %v171 = vrsqrt.pop %v169
    %v172 = vmul.f32 %v156, %v170
    %v173 = vmul.f32 %v157, %v171
    %v174 = vld [vmem:[%s4] sm:$0x1]
    %v176 = vlaneseq
    %v177 = vshrl.u32 %v176, 7
    %v178 = vsub.s32 0, %v177
    %v179 = vrot.slane %v174, %v178
    %v181 = vmul.f32 %v172, %v179
    %v182 = vmul.f32 %v173, %v179
    %v183 = vld [vmem:[%s5] sm:$0x1]
    %v185 = vlaneseq
    %v186 = vshrl.u32 %v185, 7
    %v187 = vsub.s32 0, %v186
    %v188 = vrot.slane %v183, %v187
    %v190 = vadd.f32 %v181, %v188
    %v191 = vadd.f32 %v182, %v188
    %192 = vst.msk [vmem:[%s6] sm:$0xff] %vm126, %v190
    %193 = vst.msk [vmem:[%s6 + $0x8] sm:$0xff] %vm126, %v191
  $region33: #{transformer_encoder_forward.20} parent=0 // pred_fallthru
    _
  // Predicated region
  $region34: #{transformer_encoder_forward.20} parent=0 // pred_check
    _
  $region35: #{transformer_encoder_forward.20} parent=0 // pred_check_branch
    %195 = sbr.rel (0) target = $region37
  $region36: #{transformer_encoder_forward.20} parent=0 // pred_region
    _
  $region37: #{transformer_encoder_forward.20} parent=0 // pred_fallthru
    _
  // Predicated region
  $region38: #{transformer_encoder_forward.20} parent=0 // pred_check
    _
  $region39: #{transformer_encoder_forward.20} parent=0 // pred_check_branch
    %197 = sbr.rel (0) target = $region41
  $region40: #{transformer_encoder_forward.20} parent=0 // pred_region
    _
  $region41: #{transformer_encoder_forward.20} parent=0 // pred_fallthru
    _

// kernel: transformer_encoder_forward.27
$region0: #{transformer_encoder_forward.27}
  #allocation0 [shape = 'u32[]', space=smem, size = 0x4, offset = 0x4, fixed_abs, tag = 'smem constant byte address 0x4 - core index']
  #allocation1 [shape = 'u32[144,128]{1,0:T(1,128)}', space=vmem, size = 0x12000, scoped, tag = 'internal scratch']
  #allocation2 [shape = 'f32[16,32]{1,0:T(8,128)}', space=vmem, size = 0x2000, scoped, tag = 'scratch operand']
  %s0 = inlined_call_operand.vmem [shape: f32[16,64], index: 0, kind: input, shape index: {}]
  %s1 = inlined_call_operand.vmem [shape: f32[64,32], index: 1, kind: input, shape index: {}]
  %s2 = inlined_call_operand.vmem [shape: f32[1,32], index: 2, kind: input, shape index: {}]
  %s3 = inlined_call_operand.vmem [shape: f32[16,32], index: 3, kind: input, shape index: {}]
  %s4 = inlined_call_operand.vmem [shape: f32[1,32], index: 4, kind: input, shape index: {}]
  %s5 = inlined_call_operand.vmem [shape: f32[1,32], index: 5, kind: input, shape index: {}]
  %s6 = inlined_call_operand.hbm [shape: f32[16,32], index: 6, kind: output, shape index: {}]
  %s7 = sld [smem:[#allocation0]]
  $region42: #{transformer_encoder_forward.27} parent=0
    _
  %s9 = ssub.s32 1, %s7
  %s10 = scalar_select 0, %s9, %s7
  $region1: #{transformer_encoder_forward.27} parent=0
    #allocation3 [shape = 'u8[8192]{0}', space=vmem, size = 0x2000, scoped, tag = 'output window, operand 0, single buffered']
    #allocation4 [shape = 's32[1]{0}', space=sflag, size = 0x4, scoped, tag = 'scoped memory for transformer_encoder_forward.27']
    %11 = vsyncpa [#allocation4], 0
    // Predicated region
    $region2: #{transformer_encoder_forward.27} parent=1 // pred_check
      _
    $region3: #{transformer_encoder_forward.27} parent=1 // pred_check_branch
      %13 = sbr.rel (0) target = $region5
    $region4: #{transformer_encoder_forward.27} parent=1 // pred_region
      _
    $region5: #{transformer_encoder_forward.27} parent=1 // pred_fallthru
      _
    // Predicated region
    $region6: #{transformer_encoder_forward.27} parent=1 // pred_check
      _
    $region7: #{transformer_encoder_forward.27} parent=1 // pred_check_branch
      %15 = sbr.rel (0) target = $region9
    $region8: #{transformer_encoder_forward.27} parent=1 // pred_region
      _
    $region9: #{transformer_encoder_forward.27} parent=1 // pred_fallthru
      _
    // Predicated region
    $region10: #{transformer_encoder_forward.27} parent=1 // pred_check
      _
    $region11: #{transformer_encoder_forward.27} parent=1 // pred_check_branch
      %17 = sbr.rel (0) target = $region13
    $region12: #{transformer_encoder_forward.27} parent=1 // pred_region
      _
    $region13: #{transformer_encoder_forward.27} parent=1 // pred_fallthru
      _
    // Predicated region
    $region14: #{transformer_encoder_forward.27} parent=1 // pred_check
      _
    $region15: #{transformer_encoder_forward.27} parent=1 // pred_check_branch
      %19 = sbr.rel (0) target = $region17
    $region16: #{transformer_encoder_forward.27} parent=1 // pred_region
      _
    $region17: #{transformer_encoder_forward.27} parent=1 // pred_fallthru
      _
    // Predicated region
    $region18: #{transformer_encoder_forward.27} parent=1 // pred_check
      _
    $region19: #{transformer_encoder_forward.27} parent=1 // pred_check_branch
      %21 = sbr.rel (0) target = $region21
    $region20: #{transformer_encoder_forward.27} parent=1 // pred_region
      _
    $region21: #{transformer_encoder_forward.27} parent=1 // pred_fallthru
      _
    // Predicated region
    $region22: #{transformer_encoder_forward.27} parent=1 // pred_check
      _
    $region23: #{transformer_encoder_forward.27} parent=1 // pred_check_branch
      %23 = sbr.rel (0) target = $region25
    $region24: #{transformer_encoder_forward.27} parent=1 // pred_region
      _
    $region25: #{transformer_encoder_forward.27} parent=1 // pred_fallthru
      _
    %p24 = scmp.eq.s32.totalorder 0, 0
    // Predicated region
    $region26: #{transformer_encoder_forward.27} parent=1 // pred_check
      %p25 = pneg %p24
    $region27: #{transformer_encoder_forward.27} parent=1 // pred_check_branch
      %27 = sbr.rel (%p25) target = $region29
    $region28: #{transformer_encoder_forward.27} parent=1 // pred_region
      %vm28 = vcmask 261120
      %29 = vst.msk [vmem:[#allocation2] sm:$0xff] %vm28, 0.0
      %30 = vst.msk [vmem:[#allocation2 + $0x8] sm:$0xff] %vm28, 0.0
    $region29: #{transformer_encoder_forward.27} parent=1 // pred_fallthru
      _
    %v31 = vld [vmem:[#allocation2] sm:$0xff]
    %v32 = vld [vmem:[#allocation2 + $0x8] sm:$0xff]
    %v33 = vld [vmem:[%s0] sm:$0xff]
    %v34 = vld [vmem:[%s0 + $0x8] sm:$0xff]
    %v35 = vld [vmem:[%s1] sm:$0xff]
    %v36 = vld [vmem:[%s1 + $0x8] sm:$0xff]
    %v37 = vld [vmem:[%s1 + $0x10] sm:$0xff]
    %v38 = vld [vmem:[%s1 + $0x18] sm:$0xff]
    %v39 = vld [vmem:[%s1 + $0x20] sm:$0xff]
    %v40 = vld [vmem:[%s1 + $0x28] sm:$0xff]
    %v41 = vld [vmem:[%s1 + $0x30] sm:$0xff]
    %v42 = vld [vmem:[%s1 + $0x38] sm:$0xff]
    %vm43 = vcmask 523264
    %v45 = vsel %vm43, %v33, 0
    %v48 = vsel %vm43, %v34, 0
    %50 = vmatprep.subr.mxu0 0.0
    %51 = vmatpush1.msra.mxu0 %v35
    %52 = vmatprep.subr.mxu0 0.0
    %53 = vmatpush1.msra.mxu0 %v36
    %54 = vmatprep.subr.mxu0 0.0
    %55 = vmatpush1.msra.mxu0 %v37
    %56 = vmatprep.subr.mxu0 0.0
    %57 = vmatpush1.msra.mxu0 %v38
    %58 = vmatprep.subr.mxu0 0.0
    %59 = vmatpush1.msra.mxu0 %v39
    %60 = vmatprep.subr.mxu0 0.0
    %61 = vmatpush1.msra.mxu0 %v40
    %62 = vmatprep.subr.mxu0 0.0
    %63 = vmatpush1.msra.mxu0 %v41
    %64 = vmatprep.subr.mxu0 0.0
    %65 = vmatpush1.msra.mxu0 %v42
    %66 = vmatprep.subr.mxu0 0.0
    %67 = vmatpush1.msra.mxu0 0.0
    %68 = vmatprep.subr.mxu0 0.0
    %69 = vmatpush1.msra.mxu0 0.0
    %70 = vmatprep.subr.mxu0 0.0
    %71 = vmatpush1.msra.mxu0 0.0
    %72 = vmatprep.subr.mxu0 0.0
    %73 = vmatpush1.msra.mxu0 0.0
    %74 = vmatprep.subr.mxu0 0.0
    %75 = vmatpush1.msra.mxu0 0.0
    %76 = vmatprep.subr.mxu0 0.0
    %77 = vmatpush1.msra.mxu0 0.0
    %78 = vmatprep.subr.mxu0 0.0
    %79 = vmatpush1.msra.mxu0 0.0
    %80 = vmatprep.subr.mxu0 0.0
    %81 = vmatpush1.msra.mxu0 0.0
    %82 = vmatprep.subr.mxu0 0.0
    %83 = vmatpush1.msra.mxu0 0.0
    %84 = vmatprep.subr.mxu0 0.0
    %85 = vmatpush1.msra.mxu0 0.0
    %86 = vmatprep.subr.mxu0 0.0
    %87 = vmatpush1.msra.mxu0 0.0
    %88 = vmatprep.subr.mxu0 0.0
    %89 = vmatpush1.msra.mxu0 0.0
    %90 = vmatprep.subr.mxu0 0.0
    %91 = vmatpush1.msra.mxu0 0.0
    %92 = vmatprep.subr.mxu0 0.0
    %93 = vmatpush1.msra.mxu0 0.0
    %94 = vmatprep.subr.mxu0 0.0
    %95 = vmatpush1.msra.mxu0 0.0
    %96 = vmatprep.subr.mxu0 0.0
    %97 = vmatpush1.msra.mxu0 0.0
    %98 = vmatprep.subr.mxu0 0.0
    %99 = vmatpush1.msra.mxu0 0.0
    %100 = vmatprep.subr.mxu0 0.0
    %101 = vmatpush1.msra.mxu0 0.0
    %102 = vmatprep.subr.mxu0 0.0
    %103 = vmatpush1.msra.mxu0 0.0
    %104 = vmatprep.subr.mxu0 0.0
    %105 = vmatpush1.msra.mxu0 0.0
    %106 = vmatprep.subr.mxu0 0.0
    %107 = vmatpush1.msra.mxu0 0.0
    %108 = vmatprep.subr.mxu0 0.0
    %109 = vmatpush1.msra.mxu0 0.0
    %110 = vmatprep.subr.mxu0 0.0
    %111 = vmatpush1.msra.mxu0 0.0
    %112 = vmatprep.subr.mxu0 0.0
    %113 = vmatpush1.msra.mxu0 0.0
    %114 = vmatprep.mubr.f32.mxu0 0.0
    %115 = vmatmul.mubr.f32.gmra.mrb[0].mxu0 %v45
    %v116 = vpop.f32.mrb[0].mxu0
    %v117 = vadd.f32 0.0, %v116
    %v118 = vpop.f32.mrb[0].mxu0
    %119 = vmatprep.mubr.f32.mxu0 0.0
    %120 = vmatmul.mubr.f32.gmra.mrb[0].mxu0 %v48
    %v121 = vpop.f32.mrb[0].mxu0
    %v122 = vadd.f32 0.0, %v121
    %v123 = vpop.f32.mrb[0].mxu0
    %124 = vdwg.mxu0
    %v125 = vadd.f32 %v31, %v117
    %v126 = vadd.f32 %v32, %v122
    %vm127 = vcmask 261120
    %128 = vst.msk [vmem:[#allocation2] sm:$0xff] %vm127, %v125
    %129 = vst.msk [vmem:[#allocation2 + $0x8] sm:$0xff] %vm127, %v126
    // Predicated region
    $region30: #{transformer_encoder_forward.27} parent=1 // pred_check
      %p130 = pneg %p24
    $region31: #{transformer_encoder_forward.27} parent=1 // pred_check_branch
      %132 = sbr.rel (%p130) target = $region33
    $region32: #{transformer_encoder_forward.27} parent=1 // pred_region
      %v133 = vld [vmem:[#allocation2] sm:$0xff]
      %v134 = vld [vmem:[#allocation2 + $0x8] sm:$0xff]
      %v135 = vld [vmem:[%s2] sm:$0x1]
      %v137 = vlaneseq
      %v138 = vshrl.u32 %v137, 7
      %v139 = vsub.s32 0, %v138
      %v140 = vrot.slane %v135, %v139
      %v142 = vadd.f32 %v133, %v140
      %v143 = vadd.f32 %v134, %v140
      %v144 = vld [vmem:[%s3] sm:$0xff]
      %v145 = vld [vmem:[%s3 + $0x8] sm:$0xff]
      %v146 = vadd.f32 %v142, %v144
      %v147 = vadd.f32 %v143, %v145
      %v148 = vsel %vm127, %v146, 0.0
      %149 = vadd.xlane.f32.xlu0 %v148
      %v150 = vpop.xlane.xlu0 %149
      %v151 = vsel %vm127, %v147, 0.0
      %152 = vadd.xlane.f32.xlu0 %v151
      %v153 = vpop.xlane.xlu0 %152
      %v154 = vrcp.pop 32.0
      %v155 = vmul.f32 %v150, %v154
      %v156 = vmul.f32 %v153, %v154
      %v157 = vsub.f32 %v146, %v155
      %v158 = vsub.f32 %v147, %v156
      %v159 = vmul.f32 %v157, %v157
      %v160 = vmul.f32 %v158, %v158
      %v161 = vsel %vm127, %v159, 0.0
      %162 = vadd.xlane.f32.xlu0 %v161
      %v163 = vpop.xlane.xlu0 %162
      %v164 = vsel %vm127, %v160, 0.0
      %165 = vadd.xlane.f32.xlu0 %v164
      %v166 = vpop.xlane.xlu0 %165
      %v167 = vmul.f32 %v163, %v154
      %v168 = vmul.f32 %v166, %v154
      %v169 = vadd.f32 %v167, 1e-05
      %v170 = vadd.f32 %v168, 1e-05
      %v171 = vrsqrt.pop %v169
      %v172 = vrsqrt.pop %v170
      %v173 = vmul.f32 %v157, %v171
      %v174 = vmul.f32 %v158, %v172
      %v175 = vld [vmem:[%s4] sm:$0x1]
      %v177 = vlaneseq
      %v178 = vshrl.u32 %v177, 7
      %v179 = vsub.s32 0, %v178
      %v180 = vrot.slane %v175, %v179
      %v182 = vmul.f32 %v173, %v180
      %v183 = vmul.f32 %v174, %v180
      %v184 = vld [vmem:[%s5] sm:$0x1]
      %v186 = vlaneseq
      %v187 = vshrl.u32 %v186, 7
      %v188 = vsub.s32 0, %v187
      %v189 = vrot.slane %v184, %v188
      %v191 = vadd.f32 %v182, %v189
      %v192 = vadd.f32 %v183, %v189
      %193 = vst.msk [vmem:[#allocation3] sm:$0xff] %vm127, %v191
      %194 = vst.msk [vmem:[#allocation3 + $0x8] sm:$0xff] %vm127, %v192
    $region33: #{transformer_encoder_forward.27} parent=1 // pred_fallthru
      _
    // Predicated region
    $region34: #{transformer_encoder_forward.27} parent=1 // pred_check
      _
    $region35: #{transformer_encoder_forward.27} parent=1 // pred_check_branch
      %196 = sbr.rel (0) target = $region37
    $region36: #{transformer_encoder_forward.27} parent=1 // pred_region
      %s198 = ssub.s32 256, 256
      %199 = vsyncadd [#allocation4], %s198
      %s200 = sshll.u32 [#allocation3], 4
      %s201 = int_to_ptr.vmem [resolvable:$true] %s200
      %206 = dma.vmem_to_hbm [thread:$0]  %s201, 256, %s6, [#allocation4], 128, 128, 8
    $region37: #{transformer_encoder_forward.27} parent=1 // pred_fallthru
      _
    // Predicated region
    $region38: #{transformer_encoder_forward.27} parent=1 // pred_check
      _
    $region39: #{transformer_encoder_forward.27} parent=1 // pred_check_branch
      %208 = sbr.rel (0) target = $region41
    $region40: #{transformer_encoder_forward.27} parent=1 // pred_region
      %209 = dma.done [#allocation4], 256
    $region41: #{transformer_encoder_forward.27} parent=1 // pred_fallthru
      _
    %210 = vsyncpa [#allocation4], 1

</llo_original>
